<compile_context>
chip_gen: v6e
topology: v6e:2x2x1
jax: 0.10.0
libtpu: 0.0.40
codegen_flags: <defaults>
</compile_context>

<pallas_src>
import math

import jax
import jax.numpy as jnp
from jax.experimental import pallas as pl
from jax.experimental.pallas import tpu as pltpu

# ----------------------------- configuration -----------------------------
BATCH = 2
IN_CHANNEL = 3          # input coordinate channels
N_FEATURES = 16         # n_features
N_CLASSES = 5
N_STAGES = 2            # -> 1 asb decoder stage, 1 brb TCN stage
N_LAYERS = 2            # STI encoder layers
N_REFINE = 2            # refinement layers in decoder / TCN
SFI_LAYER = (0,)        # which encoder layers get an SFI block
NODE = 25               # dataset != 'LARA' -> 25 joints
T = 16                  # temporal length
N_HEADS = 4


# ========================= host-side weight packing ========================

class Initializer:
    def __init__(self, seed=0):
        self.key = jax.random.PRNGKey(seed)

    def __call__(self, *shape):
        self.key, sub = jax.random.split(self.key)
        return 0.1 * jax.random.normal(sub, shape, dtype=jnp.float32)


class SlabBuilder:
    """Packs 2-D f32 weights into one (rows, 128) lane-dense slab; returns static
    (row_offset, rows, cols) specs used for in-kernel static slicing."""

    def __init__(self, width=128):
        self.width = width
        self.off = 0
        self.chunks = []

    def add(self, arr):
        arr = jnp.asarray(arr, jnp.float32)
        if arr.ndim == 1:
            arr = arr[None, :]
        r, c = arr.shape
        assert c <= self.width
        rpad = ((r + 7) // 8) * 8                       # sublane-aligned entries
        chunk = jnp.zeros((rpad, self.width), jnp.float32).at[:r, :c].set(arr)
        spec = (self.off, int(r), int(c))
        self.chunks.append(chunk)
        self.off += rpad
        return spec

    def build(self):
        return jnp.concatenate(self.chunks, axis=0)


def init_raw_params():
    """Random params mirroring the PyTorch module structure."""
    init = Initializer(0)
    f, v, c, nc = N_FEATURES, NODE, IN_CHANNEL, N_CLASSES
    num_sfi = len(SFI_LAYER)

    def att_layer():
        # w3 rows are ordered [tap -d | tap 0 | tap +d]
        return {"w3": init(3 * f, f), "b3": init(f),
                "wq": init(f, f), "bq": init(f),
                "wk": init(f, f), "bk": init(f),
                "wv": init(f, f), "bv": init(f),
                "wo": init(f, f), "bo": init(f),
                "wco": init(f, f), "bco": init(f)}

    return {
        # TODO(synk): MultiScale_GraphConv source not provided; per-joint 1x1 channel
        # projection (+ReLU) stand-in.
        "sp": {"w": init(f, c), "b": init(f)},
        "sti": {"wci": init(num_sfi + 1, f), "bci": init(num_sfi + 1),
                "wt": init(v, f), "bt": init(f),
                "sfi": [{"ws": init(v, f), "bs": init(f),
                         "w1": init(f, f), "b1": init(f),
                         "w2": init(f, f), "b2": init(f)} for _ in range(num_sfi)],
                "layers": [att_layer() for _ in range(N_LAYERS)],
                "wout": init(f, f), "bout": init(f)},
        "head": {"wcls": init(f, nc), "bcls": init(nc),
                 "wbnd": init(f, 1), "bbnd": init(1)},
        "asb": [{"win": init(nc, f), "bin": init(f),
                 "layers": [att_layer() for _ in range(N_REFINE)],
                 "wout": init(f, nc), "bout": init(nc)} for _ in range(N_STAGES - 1)],
        # TODO(synk): SingleStageTCN source not provided; MS-TCN single stage stand-in.
        "brb": [{"win": init(1, f), "bin": init(f),
                 "layers": [{"w3": init(3 * f, f), "b3": init(f),
                             "w1": init(f, f), "b1": init(f)} for _ in range(N_REFINE)],
                 "wout": init(f, 1), "bout": init(1)} for _ in range(N_STAGES - 1)],
    }


def fold_and_pack(raw):
    """Fold SP / STI.conv_in / conv_t / conv_s into dense matrices (front fusion) and pack
    everything else into one lane-dense weight slab."""
    f, v, c = N_FEATURES, NODE, IN_CHANNEL
    num_sfi = len(SFI_LAYER)

    # ---- front folding:  h[t, f*V+v] = relu(sum_c Wsp[f,c] x[t, c*V+v] + bsp[f]) -----------
    wsp, bsp = raw["sp"]["w"], raw["sp"]["b"]                       # (F, C), (F,)
    eye_v = jnp.eye(v, dtype=jnp.float32)
    a_mat = (wsp.T[:, None, :, None] * eye_v[None, :, None, :]).reshape(c * v, f * v)
    bsp_cols = jnp.repeat(bsp, v)[None, :]                          # (1, F*V)
    a_aug = jnp.concatenate([a_mat, bsp_cols], axis=0)              # (C*V + 1, F*V)

    wci, bci = raw["sti"]["wci"], raw["sti"]["bci"]                 # conv_in (num_sfi+1, F)
    wt, bt = raw["sti"]["wt"], raw["sti"]["bt"]                     # conv_t  (V, F)

    def bmat(k, w_right):                                           # (F*V, F_out)
        return (wci[k][:, None, None] * w_right[None, :, :]).reshape(f * v, w_right.shape[1])

    sb = SlabBuilder()
    specs = {}
    # conv_in(ch=num_sfi) + conv_t folded:  feature_st0 = h_masked @ B1 + bt_eff
    specs["b1"] = sb.add(bmat(num_sfi, wt))
    specs["bt_eff"] = sb.add(bt + bci[num_sfi] * wt.sum(axis=0))

    specs["sfi"] = []
    for i in range(num_sfi):
        s = raw["sti"]["sfi"][i]
        specs["sfi"].append({
            # conv_in(ch=i) + SFI.conv_s folded:  fs_p = h_masked @ B0 + bs_eff
            "b0": sb.add(bmat(i, s["ws"])),
            "bs_eff": sb.add(s["bs"] + bci[i] * s["ws"].sum(axis=0)),
            "w1": sb.add(s["w1"]), "b1": sb.add(s["b1"]),
            "w2": sb.add(s["w2"]), "b2": sb.add(s["b2"]),
        })

    specs["enc"] = []
    for lp in raw["sti"]["layers"]:                                 # encoder: fuse Q/K/V
        wqkv = jnp.concatenate([lp["wq"], lp["wk"], lp["wv"]], axis=1)
        bqkv = jnp.concatenate([lp["bq"], lp["bk"], lp["bv"]])
        specs["enc"].append({
            "w3": sb.add(lp["w3"]), "b3": sb.add(lp["b3"]),
            "wqkv": sb.add(wqkv), "bqkv": sb.add(bqkv),
            "wo": sb.add(lp["wo"]), "bo": sb.add(lp["bo"]),
            "wco": sb.add(lp["wco"]), "bco": sb.add(lp["bco"]),
        })
    specs["wout"] = sb.add(raw["sti"]["wout"])
    specs["bout"] = sb.add(raw["sti"]["bout"])

    # conv_cls and conv_bound fused into one (F, NC+1) projection
    specs["wcb"] = sb.add(jnp.concatenate([raw["head"]["wcls"], raw["head"]["wbnd"]], axis=1))
    specs["bcb"] = sb.add(jnp.concatenate([raw["head"]["bcls"], raw["head"]["bbnd"]]))

    specs["asb"] = []
    for dp in raw["asb"]:
        dspec = {"win": sb.add(dp["win"]), "bin": sb.add(dp["bin"]), "layers": []}
        for lp in dp["layers"]:                                     # decoder: fuse Q/K only
            wqk = jnp.concatenate([lp["wq"], lp["wk"]], axis=1)
            bqk = jnp.concatenate([lp["bq"], lp["bk"]])
            dspec["layers"].append({
                "w3": sb.add(lp["w3"]), "b3": sb.add(lp["b3"]),
                "wqk": sb.add(wqk), "bqk": sb.add(bqk),
                "wv": sb.add(lp["wv"]), "bv": sb.add(lp["bv"]),
                "wo": sb.add(lp["wo"]), "bo": sb.add(lp["bo"]),
                "wco": sb.add(lp["wco"]), "bco": sb.add(lp["bco"]),
            })
        dspec["wout"] = sb.add(dp["wout"])
        dspec["bout"] = sb.add(dp["bout"])
        specs["asb"].append(dspec)

    specs["brb"] = []
    for tp in raw["brb"]:
        tspec = {"win": sb.add(tp["win"]), "bin": sb.add(tp["bin"]), "layers": []}
        for lp in tp["layers"]:
            tspec["layers"].append({
                "w3": sb.add(lp["w3"]), "b3": sb.add(lp["b3"]),
                "w1": sb.add(lp["w1"]), "b1": sb.add(lp["b1"]),
            })
        tspec["wout"] = sb.add(tp["wout"])
        tspec["bout"] = sb.add(tp["bout"])
        specs["brb"].append(tspec)

    # block-diagonal per-head mask packed as a compile-time constant
    dh = N_FEATURES // N_HEADS
    idx = jnp.arange(N_FEATURES)
    specs["head_mask"] = sb.add((idx[:, None] // dh == idx[None, :] // dh).astype(jnp.float32))

    return a_aug, sb.build(), specs


# ============================== the Pallas kernel ===========================

def _make_kernel(specs):
    F = N_FEATURES

    # ---- weight access: load each weight at its use site from the packed slab ----
    def ld(sl, sp):
        off, r, c = sp
        return sl[off:off + r, 0:c]

    def lin(sl, x, w_sp, b_sp):
        return jnp.dot(x, ld(sl, w_sp), preferred_element_type=jnp.float32) + ld(sl, b_sp)

    # ---- small math helpers ----
    def shift_time(x, d):
        """Zero-padded temporal shifts x[t-d], x[t+d] via slice+concat (off the MXU)."""
        t, w = x.shape
        z = jnp.zeros((d, w), x.dtype)
        xm = jnp.concatenate([z, x[:t - d, :]], axis=0)
        xp = jnp.concatenate([x[d:, :], z], axis=0)
        return xm, xp

    def dconv3(sl, x, w3_sp, b3_sp, d):
        """Conv1d(k=3, padding=d, dilation=d) as ONE (T,3F)@(3F,F) matmul."""
        xm, xp = shift_time(x, d)
        xcat = jnp.concatenate([xm, x, xp], axis=1)
        return jnp.dot(xcat, ld(sl, w3_sp), preferred_element_type=jnp.float32) + ld(sl, b3_sp)

    def inorm(x):
        # InstanceNorm1d(affine=False, eps=1e-5); like PyTorch, stats include padded steps.
        mean = jnp.mean(x, axis=0, keepdims=True)
        var = jnp.mean(jnp.square(x - mean), axis=0, keepdims=True)
        return (x - mean) * jax.lax.rsqrt(var + 1e-5)

    def erf(x):
        # Abramowitz & Stegun 7.1.26 (|err| < 1.5e-7): f32-exact erf that lowers on TPU.
        p = 0.3275911
        a1, a2, a3, a4, a5 = 0.254829592, -0.284496736, 1.421413741, -1.453152027, 1.061405429
        s = jnp.where(x >= 0.0, 1.0, -1.0)
        ax = jnp.abs(x)
        tt = 1.0 / (1.0 + p * ax)
        poly = ((((a5 * tt + a4) * tt + a3) * tt + a2) * tt + a1) * tt
        return s * (1.0 - poly * jnp.exp(-ax * ax))

    def gelu(x):                                  # nn.GELU() default = exact erf
        return 0.5 * x * (1.0 + erf(x * 0.7071067811865476))

    def att_core(sl, lp, sq, sk, val, mask_t, head_mask):
        """Linear_Attention core; reference defines elu(x)=sigmoid(x), applied by callers."""
        t = sq.shape[0]
        # one augmented dot gives KV and k.sum:  sk^T @ [v | 1]  -> (F, F+1)
        v_aug = jnp.concatenate([val, jnp.ones((t, 1), jnp.float32)], axis=1)
        kv_aug = jax.lax.dot_general(sk, v_aug, (((0,), (0,)), ((), ())),
                                     preferred_element_type=jnp.float32)
        kv = kv_aug[:, :F] * head_mask
        ksum = kv_aug[:, F:F + 1] + 1e-6                           # (F, 1)
        # numerator and denominator in ONE matmul: sq @ [KV | head_mask * ksum]
        rhs = jnp.concatenate([kv, head_mask * ksum], axis=1)      # (F, 2F)
        nd = jnp.dot(sq, rhs, preferred_element_type=jnp.float32)  # (T, 2F)
        att = nd[:, :F] / nd[:, F:]                                # exact divide
        out = lin(sl, att, lp["wo"], lp["bo"])
        return out * mask_t                                        # dropout -> identity (eval)

    def att_module_enc(sl, lp, x, mask_t, head_mask, d):
        ff = jnp.maximum(dconv3(sl, x, lp["w3"], lp["b3"], d), 0.0)
        qn = inorm(ff)
        qkv = lin(sl, qn, lp["wqkv"], lp["bqkv"])                  # fused Q/K/V (T, 3F)
        sq = jax.nn.sigmoid(qkv[:, :F])
        sk = jax.nn.sigmoid(qkv[:, F:2 * F])
        val = qkv[:, 2 * F:3 * F]
        att = att_core(sl, lp, sq, sk, val, mask_t, head_mask)
        out = att + ff                                             # encoder alpha = 1
        out = lin(sl, out, lp["wco"], lp["bco"])
        return (x + out) * mask_t

    def att_module_dec(sl, lp, x, fenc, mask_t, head_mask, d, alpha):
        ff = jnp.maximum(dconv3(sl, x, lp["w3"], lp["b3"], d), 0.0)
        qn = inorm(ff)
        qk = lin(sl, qn, lp["wqk"], lp["bqk"])                     # fused Q/K (T, 2F)
        sq = jax.nn.sigmoid(qk[:, :F])
        sk = jax.nn.sigmoid(qk[:, F:2 * F])
        val = lin(sl, fenc, lp["wv"], lp["bv"])
        att = att_core(sl, lp, sq, sk, val, mask_t, head_mask)
        out = alpha * att + ff
        out = lin(sl, out, lp["wco"], lp["bco"])
        return (x + out) * mask_t

    def sfi_block(sl, sp, fs_p, ft, mask_t):
        t = ft.shape[0]
        scores = jax.lax.dot_general(fs_p, ft, (((0,), (0,)), ((), ())),
                                     preferred_element_type=jnp.float32) * (1.0 / t)
        scores = scores - jnp.max(scores, axis=-1, keepdims=True)
        e = jnp.exp(scores)
        attn = e / jnp.sum(e, axis=-1, keepdims=True)
        cross = jax.lax.dot_general(ft, attn, (((1,), (1,)), ((), ())),
                                    preferred_element_type=jnp.float32) + ft
        h = lin(sl, cross, sp["w1"], sp["b1"])
        h = gelu(h)
        h = lin(sl, h, sp["w2"], sp["b2"])
        return (h + ft) * mask_t

    # ------------------------------- kernel body --------------------------------
    def kernel(x_ref, m_ref, a_ref, sl, o_ref):
        mask_t = m_ref[0]                                          # (T, 1)
        x = x_ref[0]                                               # (T, C*V + 1), ones column appended
        head_mask = ld(sl, specs["head_mask"])                     # (F, F) packed constant

        # ---- fused front: SP stand-in + mask + STI.conv_in/conv_t/conv_s (host-folded) ----
        h = jnp.maximum(jnp.dot(x, a_ref[...], preferred_element_type=jnp.float32), 0.0)
        h = h * mask_t                                             # (T, F*V)
        feature_st = (jnp.dot(h, ld(sl, specs["b1"]), preferred_element_type=jnp.float32)
                      + ld(sl, specs["bt_eff"]))                   # conv_t output (T, F)

        # ------------------------------ STI encoder ---------------------------
        count = 0
        for i in range(N_LAYERS):
            if i in SFI_LAYER:
                ssp = specs["sfi"][count]
                fs_p = (jnp.dot(h, ld(sl, ssp["b0"]), preferred_element_type=jnp.float32)
                        + ld(sl, ssp["bs_eff"]))                   # SFI.conv_s output (T, F)
                feature_st = sfi_block(sl, ssp, fs_p, feature_st, mask_t)
                count += 1
            feature_st = att_module_enc(sl, specs["enc"][i], feature_st, mask_t,
                                        head_mask, 2 ** i)
        feature = lin(sl, feature_st, specs["wout"], specs["bout"]) * mask_t

        # ---------------------- cls / boundary heads (fused) ------------------
        head = lin(sl, feature, specs["wcb"], specs["bcb"])        # (T, NC + 1)
        nc = head.shape[1] - 1
        out_cls = head[:, :nc]
        out_bound = head[:, nc:nc + 1]

        # ------------------------ ASB refinement decoders ---------------------
        fenc = feature * mask_t
        for s, dspec in enumerate(specs["asb"]):
            alpha = math.exp(-3.0 * s)                             # exponential_descrease
            a = out_cls - jnp.max(out_cls, axis=1, keepdims=True)  # softmax over classes
            a = jnp.exp(a)
            a = (a / jnp.sum(a, axis=1, keepdims=True)) * mask_t
            feat = lin(sl, a, dspec["win"], dspec["bin"])          # Decoder.conv_in
            for j, lp in enumerate(dspec["layers"]):
                feat = att_module_dec(sl, lp, feat, fenc, mask_t, head_mask, 2 ** j, alpha)
            out_cls = lin(sl, feat, dspec["wout"], dspec["bout"])  # Decoder.conv_out

        # ---------------------- BRB boundary refinement (TCN) -----------------
        # TODO(synk): SingleStageTCN source not provided; standard MS-TCN single stage
        # (1x1 in, dilated residual layers, 1x1 out) implemented instead.
        for tspec in specs["brb"]:
            hb = jax.nn.sigmoid(out_bound)                         # (T, 1)
            hb = hb * ld(sl, tspec["win"]) + ld(sl, tspec["bin"])  # conv_in 1 -> F
            for j, lp in enumerate(tspec["layers"]):
                z = jnp.maximum(dconv3(sl, hb, lp["w3"], lp["b3"], 2 ** j), 0.0)
                z = lin(sl, z, lp["w1"], lp["b1"])
                hb = (hb + z) * mask_t
            out_bound = lin(sl, hb, tspec["wout"], tspec["bout"]) * mask_t

        # single fused output: [cls | bound] -> (T, NC + 1); split on host
        o_ref[0] = jnp.concatenate([out_cls, out_bound], axis=1)

    return kernel


# ============================== model forward ==============================

def build_forward(specs):
    kernel = _make_kernel(specs)
    nc = N_CLASSES

    def forward(x, mask, a_aug, slab):
        """Model.forward (eval branch).  x: (N, C_in, T, V), mask: (N, 1, T)."""
        n, c, t, v = x.shape
        # one-time layout plumbing at the module boundary (tiny tensors, pure reshapes)
        x_cv = x.transpose(0, 2, 1, 3).reshape(n, t, c * v)
        x_aug = jnp.concatenate([x_cv, jnp.ones((n, t, 1), x.dtype)], axis=-1)
        mask_t = mask.transpose(0, 2, 1)                           # (N, T, 1)

        out = pl.pallas_call(
            kernel,
            out_shape=jax.ShapeDtypeStruct((n, t, nc + 1), jnp.float32),
            grid=(n,),
            in_specs=[pl.BlockSpec((1, t, c * v + 1), lambda i: (i, 0, 0)),
                      pl.BlockSpec((1, t, 1), lambda i: (i, 0, 0)),
                      pl.BlockSpec(a_aug.shape, lambda i: (0, 0)),
                      pl.BlockSpec(slab.shape, lambda i: (0, 0))],
            out_specs=pl.BlockSpec((1, t, nc + 1), lambda i: (i, 0, 0)),
            compiler_params=pltpu.CompilerParams(dimension_semantics=("parallel",)),
        )(x_aug, mask_t, a_aug, slab)

        # back to the PyTorch (N, C, T) output convention
        out_cls = out[:, :, :nc].transpose(0, 2, 1)
        out_bound = out[:, :, nc:].transpose(0, 2, 1)
        return out_cls, out_bound

    return forward


# ================================= main ====================================

if __name__ == "__main__":
    key = jax.random.PRNGKey(0)
    kx, _ = jax.random.split(key)
    x = jax.random.normal(kx, (BATCH, IN_CHANNEL, T, NODE), dtype=jnp.float32)
    mask = jnp.ones((BATCH, 1, T), dtype=jnp.float32)
    mask = mask.at[1, 0, T - 4:].set(0.0)        # second sequence is shorter

    raw = init_raw_params()
    a_aug, slab, specs = fold_and_pack(raw)      # host-side folding + one weight slab

    forward = jax.jit(build_forward(specs))
    out_cls, out_bound = forward(x, mask, a_aug, slab)
    jax.block_until_ready((out_cls, out_bound))

    assert out_cls.shape == (BATCH, N_CLASSES, T)
    assert out_bound.shape == (BATCH, 1, T)
    assert bool(jnp.all(jnp.isfinite(out_cls))) and bool(jnp.all(jnp.isfinite(out_bound)))
    print("KERNEL_OK")
</pallas_src>

<mosaic_0001>
module attributes {stable_mosaic.version = 11 : i64} {
  func.func @kernel(%arg0: i32, %arg1: memref<1x16x76xf32, #tpu.memory_space<vmem>>, %arg2: memref<1x16x1xf32, #tpu.memory_space<vmem>>, %arg3: memref<76x400xf32, #tpu.memory_space<vmem>>, %arg4: memref<1728x128xf32, #tpu.memory_space<vmem>>, %arg5: memref<1x16x6xf32, #tpu.memory_space<vmem>>) attributes {dimension_semantics = [#tpu.dimension_semantics<parallel>], iteration_bounds = array<i64: 2>, scalar_prefetch = 0 : i64, scratch_operands = 0 : i64, tpu.core_type = #tpu.core_type<tc>, window_params = [{transform_indices = @transform_0, window_bounds = array<i64: 1, 16, 76>}, {transform_indices = @transform_1, window_bounds = array<i64: 1, 16, 1>}, {pipeline_mode = #tpu.pipeline_mode<synchronous>, transform_indices = @transform_2, window_bounds = array<i64: 76, 400>}, {pipeline_mode = #tpu.pipeline_mode<synchronous>, transform_indices = @transform_3, window_bounds = array<i64: 1728, 128>}, {transform_indices = @transform_4, window_bounds = array<i64: 1, 16, 6>}]} {
    %c0 = arith.constant 0 : index
    %c0_0 = arith.constant 0 : index
    %c0_1 = arith.constant 0 : index
    %0 = vector.load %arg2[%c0, %c0_0, %c0_1] : memref<1x16x1xf32, #tpu.memory_space<vmem>>, vector<1x16x1xf32>
    %1 = vector.shape_cast %0 : vector<1x16x1xf32> to vector<16x1xf32>
    %c0_2 = arith.constant 0 : index
    %c0_3 = arith.constant 0 : index
    %c0_4 = arith.constant 0 : index
    %2 = vector.load %arg1[%c0_2, %c0_3, %c0_4] : memref<1x16x76xf32, #tpu.memory_space<vmem>>, vector<1x16x76xf32>
    %3 = vector.shape_cast %2 : vector<1x16x76xf32> to vector<16x76xf32>
    %c1712 = arith.constant 1712 : index
    %c0_5 = arith.constant 0 : index
    %4 = vector.load %arg4[%c1712, %c0_5] : memref<1728x128xf32, #tpu.memory_space<vmem>>, vector<16x16xf32>
    %c0_6 = arith.constant 0 : index
    %c0_7 = arith.constant 0 : index
    %5 = vector.load %arg3[%c0_6, %c0_7] : memref<76x400xf32, #tpu.memory_space<vmem>>, vector<76x400xf32>
    %cst = arith.constant dense<0.000000e+00> : vector<16x400xf32>
    %6 = tpu.matmul %3, %5, %cst {dimension_numbers = #tpu.dot_dimension_numbers<[1], [0], [0], [1], [0, 0, 1, 1], [], []>} : vector<16x76xf32>, vector<76x400xf32>, vector<16x400xf32> -> vector<16x400xf32>
    %cst_8 = arith.constant 0.000000e+00 : f32
    %7 = vector.broadcast %cst_8 : f32 to vector<16x400xf32>
    %8 = arith.maximumf %6, %7 : vector<16x400xf32>
    %9 = vector.broadcast %1 : vector<16x1xf32> to vector<16x400xf32>
    %10 = arith.mulf %8, %9 : vector<16x400xf32>
    %c0_9 = arith.constant 0 : index
    %c0_10 = arith.constant 0 : index
    %11 = vector.load %arg4[%c0_9, %c0_10] : memref<1728x128xf32, #tpu.memory_space<vmem>>, vector<400x16xf32>
    %cst_11 = arith.constant dense<0.000000e+00> : vector<16x16xf32>
    %12 = tpu.matmul %10, %11, %cst_11 {dimension_numbers = #tpu.dot_dimension_numbers<[1], [0], [0], [1], [0, 0, 1, 1], [], []>} : vector<16x400xf32>, vector<400x16xf32>, vector<16x16xf32> -> vector<16x16xf32>
    %c400 = arith.constant 400 : index
    %c0_12 = arith.constant 0 : index
    %13 = vector.load %arg4[%c400, %c0_12] : memref<1728x128xf32, #tpu.memory_space<vmem>>, vector<1x16xf32>
    %14 = vector.broadcast %13 : vector<1x16xf32> to vector<16x16xf32>
    %15 = arith.addf %12, %14 : vector<16x16xf32>
    %c408 = arith.constant 408 : index
    %c0_13 = arith.constant 0 : index
    %16 = vector.load %arg4[%c408, %c0_13] : memref<1728x128xf32, #tpu.memory_space<vmem>>, vector<400x16xf32>
    %cst_14 = arith.constant dense<0.000000e+00> : vector<16x16xf32>
    %17 = tpu.matmul %10, %16, %cst_14 {dimension_numbers = #tpu.dot_dimension_numbers<[1], [0], [0], [1], [0, 0, 1, 1], [], []>} : vector<16x400xf32>, vector<400x16xf32>, vector<16x16xf32> -> vector<16x16xf32>
    %c808 = arith.constant 808 : index
    %c0_15 = arith.constant 0 : index
    %18 = vector.load %arg4[%c808, %c0_15] : memref<1728x128xf32, #tpu.memory_space<vmem>>, vector<1x16xf32>
    %19 = vector.broadcast %18 : vector<1x16xf32> to vector<16x16xf32>
    %20 = arith.addf %17, %19 : vector<16x16xf32>
    %cst_16 = arith.constant dense<0.000000e+00> : vector<16x16xf32>
    %21 = tpu.matmul %20, %15, %cst_16 {dimension_numbers = #tpu.dot_dimension_numbers<[0], [0], [1], [1], [0, 1, 1, 1], [], []>} : vector<16x16xf32>, vector<16x16xf32>, vector<16x16xf32> -> vector<16x16xf32>
    %cst_17 = arith.constant 6.250000e-02 : f32
    %22 = vector.broadcast %cst_17 : f32 to vector<16x16xf32>
    %23 = arith.mulf %21, %22 : vector<16x16xf32>
    %cst_18 = arith.constant dense<0xFF800000> : vector<16xf32>
    %24 = vector.multi_reduction <maximumf>, %23, %cst_18 [1] : vector<16x16xf32> to vector<16xf32>
    %25 = vector.shape_cast %24 : vector<16xf32> to vector<16x1xf32>
    %26 = vector.broadcast %25 : vector<16x1xf32> to vector<16x16xf32>
    %27 = arith.subf %23, %26 : vector<16x16xf32>
    %28 = math.exp %27 : vector<16x16xf32>
    %cst_19 = arith.constant dense<0.000000e+00> : vector<16xf32>
    %29 = vector.multi_reduction <add>, %28, %cst_19 [1] : vector<16x16xf32> to vector<16xf32>
    %30 = vector.shape_cast %29 : vector<16xf32> to vector<16x1xf32>
    %31 = vector.broadcast %30 : vector<16x1xf32> to vector<16x16xf32>
    %32 = arith.divf %28, %31 : vector<16x16xf32>
    %cst_20 = arith.constant dense<0.000000e+00> : vector<16x16xf32>
    %33 = tpu.matmul %15, %32, %cst_20 {dimension_numbers = #tpu.dot_dimension_numbers<[1], [1], [0], [0], [0, 0, 1, 0], [], []>} : vector<16x16xf32>, vector<16x16xf32>, vector<16x16xf32> -> vector<16x16xf32>
    %34 = arith.addf %33, %15 : vector<16x16xf32>
    %c816 = arith.constant 816 : index
    %c0_21 = arith.constant 0 : index
    %35 = vector.load %arg4[%c816, %c0_21] : memref<1728x128xf32, #tpu.memory_space<vmem>>, vector<16x16xf32>
    %cst_22 = arith.constant dense<0.000000e+00> : vector<16x16xf32>
    %36 = tpu.matmul %34, %35, %cst_22 {dimension_numbers = #tpu.dot_dimension_numbers<[1], [0], [0], [1], [0, 0, 1, 1], [], []>} : vector<16x16xf32>, vector<16x16xf32>, vector<16x16xf32> -> vector<16x16xf32>
    %c832 = arith.constant 832 : index
    %c0_23 = arith.constant 0 : index
    %37 = vector.load %arg4[%c832, %c0_23] : memref<1728x128xf32, #tpu.memory_space<vmem>>, vector<1x16xf32>
    %38 = vector.broadcast %37 : vector<1x16xf32> to vector<16x16xf32>
    %39 = arith.addf %36, %38 : vector<16x16xf32>
    %cst_24 = arith.constant 5.000000e-01 : f32
    %40 = vector.broadcast %cst_24 : f32 to vector<16x16xf32>
    %41 = arith.mulf %40, %39 : vector<16x16xf32>
    %cst_25 = arith.constant 0.707106769 : f32
    %42 = vector.broadcast %cst_25 : f32 to vector<16x16xf32>
    %43 = arith.mulf %39, %42 : vector<16x16xf32>
    %cst_26 = arith.constant 0.000000e+00 : f32
    %44 = vector.broadcast %cst_26 : f32 to vector<16x16xf32>
    %45 = arith.cmpf oge, %43, %44 : vector<16x16xf32>
    %cst_27 = arith.constant 1.000000e+00 : f32
    %cst_28 = arith.constant -1.000000e+00 : f32
    %46 = vector.broadcast %cst_27 : f32 to vector<16x16xf32>
    %47 = vector.broadcast %cst_28 : f32 to vector<16x16xf32>
    %48 = arith.select %45, %46, %47 : vector<16x16xi1>, vector<16x16xf32>
    %49 = math.absf %43 : vector<16x16xf32>
    %cst_29 = arith.constant 0.327591091 : f32
    %50 = vector.broadcast %cst_29 : f32 to vector<16x16xf32>
    %51 = arith.mulf %50, %49 : vector<16x16xf32>
    %cst_30 = arith.constant 1.000000e+00 : f32
    %52 = vector.broadcast %cst_30 : f32 to vector<16x16xf32>
    %53 = arith.addf %52, %51 : vector<16x16xf32>
    %cst_31 = arith.constant 1.000000e+00 : f32
    %54 = vector.broadcast %cst_31 : f32 to vector<16x16xf32>
    %55 = arith.divf %54, %53 : vector<16x16xf32>
    %cst_32 = arith.constant 1.06140542 : f32
    %56 = vector.broadcast %cst_32 : f32 to vector<16x16xf32>
    %57 = arith.mulf %56, %55 : vector<16x16xf32>
    %cst_33 = arith.constant -1.45315206 : f32
    %58 = vector.broadcast %cst_33 : f32 to vector<16x16xf32>
    %59 = arith.addf %57, %58 : vector<16x16xf32>
    %60 = arith.mulf %59, %55 : vector<16x16xf32>
    %cst_34 = arith.constant 1.42141378 : f32
    %61 = vector.broadcast %cst_34 : f32 to vector<16x16xf32>
    %62 = arith.addf %60, %61 : vector<16x16xf32>
    %63 = arith.mulf %62, %55 : vector<16x16xf32>
    %cst_35 = arith.constant -0.284496725 : f32
    %64 = vector.broadcast %cst_35 : f32 to vector<16x16xf32>
    %65 = arith.addf %63, %64 : vector<16x16xf32>
    %66 = arith.mulf %65, %55 : vector<16x16xf32>
    %cst_36 = arith.constant 0.254829586 : f32
    %67 = vector.broadcast %cst_36 : f32 to vector<16x16xf32>
    %68 = arith.addf %66, %67 : vector<16x16xf32>
    %69 = arith.mulf %68, %55 : vector<16x16xf32>
    %cst_37 = arith.constant 0.000000e+00 : f32
    %70 = vector.broadcast %cst_37 : f32 to vector<16x16xf32>
    %71 = arith.subf %70, %49 : vector<16x16xf32>
    %72 = arith.mulf %71, %49 : vector<16x16xf32>
    %73 = math.exp %72 : vector<16x16xf32>
    %74 = arith.mulf %69, %73 : vector<16x16xf32>
    %cst_38 = arith.constant 1.000000e+00 : f32
    %75 = vector.broadcast %cst_38 : f32 to vector<16x16xf32>
    %76 = arith.subf %75, %74 : vector<16x16xf32>
    %77 = arith.mulf %48, %76 : vector<16x16xf32>
    %cst_39 = arith.constant 1.000000e+00 : f32
    %78 = vector.broadcast %cst_39 : f32 to vector<16x16xf32>
    %79 = arith.addf %78, %77 : vector<16x16xf32>
    %80 = arith.mulf %41, %79 : vector<16x16xf32>
    %c840 = arith.constant 840 : index
    %c0_40 = arith.constant 0 : index
    %81 = vector.load %arg4[%c840, %c0_40] : memref<1728x128xf32, #tpu.memory_space<vmem>>, vector<16x16xf32>
    %cst_41 = arith.constant dense<0.000000e+00> : vector<16x16xf32>
    %82 = tpu.matmul %80, %81, %cst_41 {dimension_numbers = #tpu.dot_dimension_numbers<[1], [0], [0], [1], [0, 0, 1, 1], [], []>} : vector<16x16xf32>, vector<16x16xf32>, vector<16x16xf32> -> vector<16x16xf32>
    %c856 = arith.constant 856 : index
    %c0_42 = arith.constant 0 : index
    %83 = vector.load %arg4[%c856, %c0_42] : memref<1728x128xf32, #tpu.memory_space<vmem>>, vector<1x16xf32>
    %84 = vector.broadcast %83 : vector<1x16xf32> to vector<16x16xf32>
    %85 = arith.addf %82, %84 : vector<16x16xf32>
    %86 = arith.addf %85, %15 : vector<16x16xf32>
    %87 = vector.broadcast %1 : vector<16x1xf32> to vector<16x16xf32>
    %88 = arith.mulf %86, %87 : vector<16x16xf32>
    %cst_43 = arith.constant 0.000000e+00 : f32
    %89 = vector.broadcast %cst_43 : f32 to vector<1x16xf32>
    %90 = vector.extract_strided_slice %88 {offsets = [0, 0], sizes = [15, 16], strides = [1, 1]} : vector<16x16xf32> to vector<15x16xf32>
    %91 = tpu.concatenate %89, %90 in 0 : vector<1x16xf32>, vector<15x16xf32> -> vector<16x16xf32>
    %92 = vector.extract_strided_slice %88 {offsets = [1, 0], sizes = [15, 16], strides = [1, 1]} : vector<16x16xf32> to vector<15x16xf32>
    %93 = tpu.concatenate %92, %89 in 0 : vector<15x16xf32>, vector<1x16xf32> -> vector<16x16xf32>
    %94 = tpu.concatenate %91, %88, %93 in 1 : vector<16x16xf32>, vector<16x16xf32>, vector<16x16xf32> -> vector<16x48xf32>
    %c864 = arith.constant 864 : index
    %c0_44 = arith.constant 0 : index
    %95 = vector.load %arg4[%c864, %c0_44] : memref<1728x128xf32, #tpu.memory_space<vmem>>, vector<48x16xf32>
    %cst_45 = arith.constant dense<0.000000e+00> : vector<16x16xf32>
    %96 = tpu.matmul %94, %95, %cst_45 {dimension_numbers = #tpu.dot_dimension_numbers<[1], [0], [0], [1], [0, 0, 1, 1], [], []>} : vector<16x48xf32>, vector<48x16xf32>, vector<16x16xf32> -> vector<16x16xf32>
    %c912 = arith.constant 912 : index
    %c0_46 = arith.constant 0 : index
    %97 = vector.load %arg4[%c912, %c0_46] : memref<1728x128xf32, #tpu.memory_space<vmem>>, vector<1x16xf32>
    %98 = vector.broadcast %97 : vector<1x16xf32> to vector<16x16xf32>
    %99 = arith.addf %96, %98 : vector<16x16xf32>
    %cst_47 = arith.constant 0.000000e+00 : f32
    %100 = vector.broadcast %cst_47 : f32 to vector<16x16xf32>
    %101 = arith.maximumf %99, %100 : vector<16x16xf32>
    %cst_48 = arith.constant dense<0.000000e+00> : vector<16xf32>
    %102 = vector.multi_reduction <add>, %101, %cst_48 [0] : vector<16x16xf32> to vector<16xf32>
    %103 = vector.shape_cast %102 : vector<16xf32> to vector<1x16xf32>
    %cst_49 = arith.constant 1.600000e+01 : f32
    %104 = vector.broadcast %cst_49 : f32 to vector<1x16xf32>
    %105 = arith.divf %103, %104 : vector<1x16xf32>
    %106 = vector.broadcast %105 : vector<1x16xf32> to vector<16x16xf32>
    %107 = arith.subf %101, %106 : vector<16x16xf32>
    %108 = arith.mulf %107, %107 : vector<16x16xf32>
    %cst_50 = arith.constant dense<0.000000e+00> : vector<16xf32>
    %109 = vector.multi_reduction <add>, %108, %cst_50 [0] : vector<16x16xf32> to vector<16xf32>
    %110 = vector.shape_cast %109 : vector<16xf32> to vector<1x16xf32>
    %cst_51 = arith.constant 1.600000e+01 : f32
    %111 = vector.broadcast %cst_51 : f32 to vector<1x16xf32>
    %112 = arith.divf %110, %111 : vector<1x16xf32>
    %113 = vector.broadcast %105 : vector<1x16xf32> to vector<16x16xf32>
    %114 = arith.subf %101, %113 : vector<16x16xf32>
    %cst_52 = arith.constant 9.99999974E-6 : f32
    %115 = vector.broadcast %cst_52 : f32 to vector<1x16xf32>
    %116 = arith.addf %112, %115 : vector<1x16xf32>
    %117 = math.rsqrt %116 : vector<1x16xf32>
    %118 = vector.broadcast %117 : vector<1x16xf32> to vector<16x16xf32>
    %119 = arith.mulf %114, %118 : vector<16x16xf32>
    %c920 = arith.constant 920 : index
    %c0_53 = arith.constant 0 : index
    %120 = vector.load %arg4[%c920, %c0_53] : memref<1728x128xf32, #tpu.memory_space<vmem>>, vector<16x48xf32>
    %cst_54 = arith.constant dense<0.000000e+00> : vector<16x48xf32>
    %121 = tpu.matmul %119, %120, %cst_54 {dimension_numbers = #tpu.dot_dimension_numbers<[1], [0], [0], [1], [0, 0, 1, 1], [], []>} : vector<16x16xf32>, vector<16x48xf32>, vector<16x48xf32> -> vector<16x48xf32>
    %c936 = arith.constant 936 : index
    %c0_55 = arith.constant 0 : index
    %122 = vector.load %arg4[%c936, %c0_55] : memref<1728x128xf32, #tpu.memory_space<vmem>>, vector<1x48xf32>
    %123 = vector.broadcast %122 : vector<1x48xf32> to vector<16x48xf32>
    %124 = arith.addf %121, %123 : vector<16x48xf32>
    %125 = vector.extract_strided_slice %124 {offsets = [0, 0], sizes = [16, 16], strides = [1, 1]} : vector<16x48xf32> to vector<16x16xf32>
    %126 = arith.negf %125 : vector<16x16xf32>
    %127 = math.exp %126 : vector<16x16xf32>
    %cst_56 = arith.constant 1.000000e+00 : f32
    %128 = vector.broadcast %cst_56 : f32 to vector<16x16xf32>
    %129 = arith.addf %128, %127 : vector<16x16xf32>
    %130 = arith.divf %128, %129 : vector<16x16xf32>
    %131 = vector.extract_strided_slice %124 {offsets = [0, 16], sizes = [16, 16], strides = [1, 1]} : vector<16x48xf32> to vector<16x16xf32>
    %132 = arith.negf %131 : vector<16x16xf32>
    %133 = math.exp %132 : vector<16x16xf32>
    %cst_57 = arith.constant 1.000000e+00 : f32
    %134 = vector.broadcast %cst_57 : f32 to vector<16x16xf32>
    %135 = arith.addf %134, %133 : vector<16x16xf32>
    %136 = arith.divf %134, %135 : vector<16x16xf32>
    %137 = vector.extract_strided_slice %124 {offsets = [0, 32], sizes = [16, 16], strides = [1, 1]} : vector<16x48xf32> to vector<16x16xf32>
    %cst_58 = arith.constant 1.000000e+00 : f32
    %138 = vector.broadcast %cst_58 : f32 to vector<16x1xf32>
    %139 = tpu.concatenate %137, %138 in 1 : vector<16x16xf32>, vector<16x1xf32> -> vector<16x17xf32>
    %cst_59 = arith.constant dense<0.000000e+00> : vector<16x17xf32>
    %140 = tpu.matmul %136, %139, %cst_59 {dimension_numbers = #tpu.dot_dimension_numbers<[0], [0], [1], [1], [0, 1, 1, 1], [], []>} : vector<16x16xf32>, vector<16x17xf32>, vector<16x17xf32> -> vector<16x17xf32>
    %141 = vector.extract_strided_slice %140 {offsets = [0, 0], sizes = [16, 16], strides = [1, 1]} : vector<16x17xf32> to vector<16x16xf32>
    %142 = arith.mulf %141, %4 : vector<16x16xf32>
    %143 = vector.extract_strided_slice %140 {offsets = [0, 16], sizes = [16, 1], strides = [1, 1]} : vector<16x17xf32> to vector<16x1xf32>
    %cst_60 = arith.constant 9.99999997E-7 : f32
    %144 = vector.broadcast %cst_60 : f32 to vector<16x1xf32>
    %145 = arith.addf %143, %144 : vector<16x1xf32>
    %146 = vector.broadcast %145 : vector<16x1xf32> to vector<16x16xf32>
    %147 = arith.mulf %4, %146 : vector<16x16xf32>
    %148 = tpu.concatenate %142, %147 in 1 : vector<16x16xf32>, vector<16x16xf32> -> vector<16x32xf32>
    %cst_61 = arith.constant dense<0.000000e+00> : vector<16x32xf32>
    %149 = tpu.matmul %130, %148, %cst_61 {dimension_numbers = #tpu.dot_dimension_numbers<[1], [0], [0], [1], [0, 0, 1, 1], [], []>} : vector<16x16xf32>, vector<16x32xf32>, vector<16x32xf32> -> vector<16x32xf32>
    %150 = vector.extract_strided_slice %149 {offsets = [0, 0], sizes = [16, 16], strides = [1, 1]} : vector<16x32xf32> to vector<16x16xf32>
    %151 = vector.extract_strided_slice %149 {offsets = [0, 16], sizes = [16, 16], strides = [1, 1]} : vector<16x32xf32> to vector<16x16xf32>
    %152 = arith.divf %150, %151 : vector<16x16xf32>
    %c944 = arith.constant 944 : index
    %c0_62 = arith.constant 0 : index
    %153 = vector.load %arg4[%c944, %c0_62] : memref<1728x128xf32, #tpu.memory_space<vmem>>, vector<16x16xf32>
    %cst_63 = arith.constant dense<0.000000e+00> : vector<16x16xf32>
    %154 = tpu.matmul %152, %153, %cst_63 {dimension_numbers = #tpu.dot_dimension_numbers<[1], [0], [0], [1], [0, 0, 1, 1], [], []>} : vector<16x16xf32>, vector<16x16xf32>, vector<16x16xf32> -> vector<16x16xf32>
    %c960 = arith.constant 960 : index
    %c0_64 = arith.constant 0 : index
    %155 = vector.load %arg4[%c960, %c0_64] : memref<1728x128xf32, #tpu.memory_space<vmem>>, vector<1x16xf32>
    %156 = vector.broadcast %155 : vector<1x16xf32> to vector<16x16xf32>
    %157 = arith.addf %154, %156 : vector<16x16xf32>
    %158 = vector.broadcast %1 : vector<16x1xf32> to vector<16x16xf32>
    %159 = arith.mulf %157, %158 : vector<16x16xf32>
    %160 = arith.addf %159, %101 : vector<16x16xf32>
    %c968 = arith.constant 968 : index
    %c0_65 = arith.constant 0 : index
    %161 = vector.load %arg4[%c968, %c0_65] : memref<1728x128xf32, #tpu.memory_space<vmem>>, vector<16x16xf32>
    %cst_66 = arith.constant dense<0.000000e+00> : vector<16x16xf32>
    %162 = tpu.matmul %160, %161, %cst_66 {dimension_numbers = #tpu.dot_dimension_numbers<[1], [0], [0], [1], [0, 0, 1, 1], [], []>} : vector<16x16xf32>, vector<16x16xf32>, vector<16x16xf32> -> vector<16x16xf32>
    %c984 = arith.constant 984 : index
    %c0_67 = arith.constant 0 : index
    %163 = vector.load %arg4[%c984, %c0_67] : memref<1728x128xf32, #tpu.memory_space<vmem>>, vector<1x16xf32>
    %164 = vector.broadcast %163 : vector<1x16xf32> to vector<16x16xf32>
    %165 = arith.addf %162, %164 : vector<16x16xf32>
    %166 = arith.addf %88, %165 : vector<16x16xf32>
    %167 = vector.broadcast %1 : vector<16x1xf32> to vector<16x16xf32>
    %168 = arith.mulf %166, %167 : vector<16x16xf32>
    %cst_68 = arith.constant 0.000000e+00 : f32
    %169 = vector.broadcast %cst_68 : f32 to vector<2x16xf32>
    %170 = vector.extract_strided_slice %168 {offsets = [0, 0], sizes = [14, 16], strides = [1, 1]} : vector<16x16xf32> to vector<14x16xf32>
    %171 = tpu.concatenate %169, %170 in 0 : vector<2x16xf32>, vector<14x16xf32> -> vector<16x16xf32>
    %172 = vector.extract_strided_slice %168 {offsets = [2, 0], sizes = [14, 16], strides = [1, 1]} : vector<16x16xf32> to vector<14x16xf32>
    %173 = tpu.concatenate %172, %169 in 0 : vector<14x16xf32>, vector<2x16xf32> -> vector<16x16xf32>
    %174 = tpu.concatenate %171, %168, %173 in 1 : vector<16x16xf32>, vector<16x16xf32>, vector<16x16xf32> -> vector<16x48xf32>
    %c992 = arith.constant 992 : index
    %c0_69 = arith.constant 0 : index
    %175 = vector.load %arg4[%c992, %c0_69] : memref<1728x128xf32, #tpu.memory_space<vmem>>, vector<48x16xf32>
    %cst_70 = arith.constant dense<0.000000e+00> : vector<16x16xf32>
    %176 = tpu.matmul %174, %175, %cst_70 {dimension_numbers = #tpu.dot_dimension_numbers<[1], [0], [0], [1], [0, 0, 1, 1], [], []>} : vector<16x48xf32>, vector<48x16xf32>, vector<16x16xf32> -> vector<16x16xf32>
    %c1040 = arith.constant 1040 : index
    %c0_71 = arith.constant 0 : index
    %177 = vector.load %arg4[%c1040, %c0_71] : memref<1728x128xf32, #tpu.memory_space<vmem>>, vector<1x16xf32>
    %178 = vector.broadcast %177 : vector<1x16xf32> to vector<16x16xf32>
    %179 = arith.addf %176, %178 : vector<16x16xf32>
    %cst_72 = arith.constant 0.000000e+00 : f32
    %180 = vector.broadcast %cst_72 : f32 to vector<16x16xf32>
    %181 = arith.maximumf %179, %180 : vector<16x16xf32>
    %cst_73 = arith.constant dense<0.000000e+00> : vector<16xf32>
    %182 = vector.multi_reduction <add>, %181, %cst_73 [0] : vector<16x16xf32> to vector<16xf32>
    %183 = vector.shape_cast %182 : vector<16xf32> to vector<1x16xf32>
    %cst_74 = arith.constant 1.600000e+01 : f32
    %184 = vector.broadcast %cst_74 : f32 to vector<1x16xf32>
    %185 = arith.divf %183, %184 : vector<1x16xf32>
    %186 = vector.broadcast %185 : vector<1x16xf32> to vector<16x16xf32>
    %187 = arith.subf %181, %186 : vector<16x16xf32>
    %188 = arith.mulf %187, %187 : vector<16x16xf32>
    %cst_75 = arith.constant dense<0.000000e+00> : vector<16xf32>
    %189 = vector.multi_reduction <add>, %188, %cst_75 [0] : vector<16x16xf32> to vector<16xf32>
    %190 = vector.shape_cast %189 : vector<16xf32> to vector<1x16xf32>
    %cst_76 = arith.constant 1.600000e+01 : f32
    %191 = vector.broadcast %cst_76 : f32 to vector<1x16xf32>
    %192 = arith.divf %190, %191 : vector<1x16xf32>
    %193 = vector.broadcast %185 : vector<1x16xf32> to vector<16x16xf32>
    %194 = arith.subf %181, %193 : vector<16x16xf32>
    %cst_77 = arith.constant 9.99999974E-6 : f32
    %195 = vector.broadcast %cst_77 : f32 to vector<1x16xf32>
    %196 = arith.addf %192, %195 : vector<1x16xf32>
    %197 = math.rsqrt %196 : vector<1x16xf32>
    %198 = vector.broadcast %197 : vector<1x16xf32> to vector<16x16xf32>
    %199 = arith.mulf %194, %198 : vector<16x16xf32>
    %c1048 = arith.constant 1048 : index
    %c0_78 = arith.constant 0 : index
    %200 = vector.load %arg4[%c1048, %c0_78] : memref<1728x128xf32, #tpu.memory_space<vmem>>, vector<16x48xf32>
    %cst_79 = arith.constant dense<0.000000e+00> : vector<16x48xf32>
    %201 = tpu.matmul %199, %200, %cst_79 {dimension_numbers = #tpu.dot_dimension_numbers<[1], [0], [0], [1], [0, 0, 1, 1], [], []>} : vector<16x16xf32>, vector<16x48xf32>, vector<16x48xf32> -> vector<16x48xf32>
    %c1064 = arith.constant 1064 : index
    %c0_80 = arith.constant 0 : index
    %202 = vector.load %arg4[%c1064, %c0_80] : memref<1728x128xf32, #tpu.memory_space<vmem>>, vector<1x48xf32>
    %203 = vector.broadcast %202 : vector<1x48xf32> to vector<16x48xf32>
    %204 = arith.addf %201, %203 : vector<16x48xf32>
    %205 = vector.extract_strided_slice %204 {offsets = [0, 0], sizes = [16, 16], strides = [1, 1]} : vector<16x48xf32> to vector<16x16xf32>
    %206 = arith.negf %205 : vector<16x16xf32>
    %207 = math.exp %206 : vector<16x16xf32>
    %cst_81 = arith.constant 1.000000e+00 : f32
    %208 = vector.broadcast %cst_81 : f32 to vector<16x16xf32>
    %209 = arith.addf %208, %207 : vector<16x16xf32>
    %210 = arith.divf %208, %209 : vector<16x16xf32>
    %211 = vector.extract_strided_slice %204 {offsets = [0, 16], sizes = [16, 16], strides = [1, 1]} : vector<16x48xf32> to vector<16x16xf32>
    %212 = arith.negf %211 : vector<16x16xf32>
    %213 = math.exp %212 : vector<16x16xf32>
    %cst_82 = arith.constant 1.000000e+00 : f32
    %214 = vector.broadcast %cst_82 : f32 to vector<16x16xf32>
    %215 = arith.addf %214, %213 : vector<16x16xf32>
    %216 = arith.divf %214, %215 : vector<16x16xf32>
    %217 = vector.extract_strided_slice %204 {offsets = [0, 32], sizes = [16, 16], strides = [1, 1]} : vector<16x48xf32> to vector<16x16xf32>
    %cst_83 = arith.constant 1.000000e+00 : f32
    %218 = vector.broadcast %cst_83 : f32 to vector<16x1xf32>
    %219 = tpu.concatenate %217, %218 in 1 : vector<16x16xf32>, vector<16x1xf32> -> vector<16x17xf32>
    %cst_84 = arith.constant dense<0.000000e+00> : vector<16x17xf32>
    %220 = tpu.matmul %216, %219, %cst_84 {dimension_numbers = #tpu.dot_dimension_numbers<[0], [0], [1], [1], [0, 1, 1, 1], [], []>} : vector<16x16xf32>, vector<16x17xf32>, vector<16x17xf32> -> vector<16x17xf32>
    %221 = vector.extract_strided_slice %220 {offsets = [0, 0], sizes = [16, 16], strides = [1, 1]} : vector<16x17xf32> to vector<16x16xf32>
    %222 = arith.mulf %221, %4 : vector<16x16xf32>
    %223 = vector.extract_strided_slice %220 {offsets = [0, 16], sizes = [16, 1], strides = [1, 1]} : vector<16x17xf32> to vector<16x1xf32>
    %cst_85 = arith.constant 9.99999997E-7 : f32
    %224 = vector.broadcast %cst_85 : f32 to vector<16x1xf32>
    %225 = arith.addf %223, %224 : vector<16x1xf32>
    %226 = vector.broadcast %225 : vector<16x1xf32> to vector<16x16xf32>
    %227 = arith.mulf %4, %226 : vector<16x16xf32>
    %228 = tpu.concatenate %222, %227 in 1 : vector<16x16xf32>, vector<16x16xf32> -> vector<16x32xf32>
    %cst_86 = arith.constant dense<0.000000e+00> : vector<16x32xf32>
    %229 = tpu.matmul %210, %228, %cst_86 {dimension_numbers = #tpu.dot_dimension_numbers<[1], [0], [0], [1], [0, 0, 1, 1], [], []>} : vector<16x16xf32>, vector<16x32xf32>, vector<16x32xf32> -> vector<16x32xf32>
    %230 = vector.extract_strided_slice %229 {offsets = [0, 0], sizes = [16, 16], strides = [1, 1]} : vector<16x32xf32> to vector<16x16xf32>
    %231 = vector.extract_strided_slice %229 {offsets = [0, 16], sizes = [16, 16], strides = [1, 1]} : vector<16x32xf32> to vector<16x16xf32>
    %232 = arith.divf %230, %231 : vector<16x16xf32>
    %c1072 = arith.constant 1072 : index
    %c0_87 = arith.constant 0 : index
    %233 = vector.load %arg4[%c1072, %c0_87] : memref<1728x128xf32, #tpu.memory_space<vmem>>, vector<16x16xf32>
    %cst_88 = arith.constant dense<0.000000e+00> : vector<16x16xf32>
    %234 = tpu.matmul %232, %233, %cst_88 {dimension_numbers = #tpu.dot_dimension_numbers<[1], [0], [0], [1], [0, 0, 1, 1], [], []>} : vector<16x16xf32>, vector<16x16xf32>, vector<16x16xf32> -> vector<16x16xf32>
    %c1088 = arith.constant 1088 : index
    %c0_89 = arith.constant 0 : index
    %235 = vector.load %arg4[%c1088, %c0_89] : memref<1728x128xf32, #tpu.memory_space<vmem>>, vector<1x16xf32>
    %236 = vector.broadcast %235 : vector<1x16xf32> to vector<16x16xf32>
    %237 = arith.addf %234, %236 : vector<16x16xf32>
    %238 = vector.broadcast %1 : vector<16x1xf32> to vector<16x16xf32>
    %239 = arith.mulf %237, %238 : vector<16x16xf32>
    %240 = arith.addf %239, %181 : vector<16x16xf32>
    %c1096 = arith.constant 1096 : index
    %c0_90 = arith.constant 0 : index
    %241 = vector.load %arg4[%c1096, %c0_90] : memref<1728x128xf32, #tpu.memory_space<vmem>>, vector<16x16xf32>
    %cst_91 = arith.constant dense<0.000000e+00> : vector<16x16xf32>
    %242 = tpu.matmul %240, %241, %cst_91 {dimension_numbers = #tpu.dot_dimension_numbers<[1], [0], [0], [1], [0, 0, 1, 1], [], []>} : vector<16x16xf32>, vector<16x16xf32>, vector<16x16xf32> -> vector<16x16xf32>
    %c1112 = arith.constant 1112 : index
    %c0_92 = arith.constant 0 : index
    %243 = vector.load %arg4[%c1112, %c0_92] : memref<1728x128xf32, #tpu.memory_space<vmem>>, vector<1x16xf32>
    %244 = vector.broadcast %243 : vector<1x16xf32> to vector<16x16xf32>
    %245 = arith.addf %242, %244 : vector<16x16xf32>
    %246 = arith.addf %168, %245 : vector<16x16xf32>
    %247 = vector.broadcast %1 : vector<16x1xf32> to vector<16x16xf32>
    %248 = arith.mulf %246, %247 : vector<16x16xf32>
    %c1120 = arith.constant 1120 : index
    %c0_93 = arith.constant 0 : index
    %249 = vector.load %arg4[%c1120, %c0_93] : memref<1728x128xf32, #tpu.memory_space<vmem>>, vector<16x16xf32>
    %cst_94 = arith.constant dense<0.000000e+00> : vector<16x16xf32>
    %250 = tpu.matmul %248, %249, %cst_94 {dimension_numbers = #tpu.dot_dimension_numbers<[1], [0], [0], [1], [0, 0, 1, 1], [], []>} : vector<16x16xf32>, vector<16x16xf32>, vector<16x16xf32> -> vector<16x16xf32>
    %c1136 = arith.constant 1136 : index
    %c0_95 = arith.constant 0 : index
    %251 = vector.load %arg4[%c1136, %c0_95] : memref<1728x128xf32, #tpu.memory_space<vmem>>, vector<1x16xf32>
    %252 = vector.broadcast %251 : vector<1x16xf32> to vector<16x16xf32>
    %253 = arith.addf %250, %252 : vector<16x16xf32>
    %254 = vector.broadcast %1 : vector<16x1xf32> to vector<16x16xf32>
    %255 = arith.mulf %253, %254 : vector<16x16xf32>
    %c1144 = arith.constant 1144 : index
    %c0_96 = arith.constant 0 : index
    %256 = vector.load %arg4[%c1144, %c0_96] : memref<1728x128xf32, #tpu.memory_space<vmem>>, vector<16x6xf32>
    %cst_97 = arith.constant dense<0.000000e+00> : vector<16x6xf32>
    %257 = tpu.matmul %255, %256, %cst_97 {dimension_numbers = #tpu.dot_dimension_numbers<[1], [0], [0], [1], [0, 0, 1, 1], [], []>} : vector<16x16xf32>, vector<16x6xf32>, vector<16x6xf32> -> vector<16x6xf32>
    %c1160 = arith.constant 1160 : index
    %c0_98 = arith.constant 0 : index
    %258 = vector.load %arg4[%c1160, %c0_98] : memref<1728x128xf32, #tpu.memory_space<vmem>>, vector<1x6xf32>
    %259 = vector.broadcast %258 : vector<1x6xf32> to vector<16x6xf32>
    %260 = arith.addf %257, %259 : vector<16x6xf32>
    %261 = vector.extract_strided_slice %260 {offsets = [0, 0], sizes = [16, 5], strides = [1, 1]} : vector<16x6xf32> to vector<16x5xf32>
    %262 = vector.extract_strided_slice %260 {offsets = [0, 5], sizes = [16, 1], strides = [1, 1]} : vector<16x6xf32> to vector<16x1xf32>
    %263 = vector.broadcast %1 : vector<16x1xf32> to vector<16x16xf32>
    %264 = arith.mulf %255, %263 : vector<16x16xf32>
    %cst_99 = arith.constant dense<0xFF800000> : vector<16xf32>
    %265 = vector.multi_reduction <maximumf>, %261, %cst_99 [1] : vector<16x5xf32> to vector<16xf32>
    %266 = vector.shape_cast %265 : vector<16xf32> to vector<16x1xf32>
    %267 = vector.broadcast %266 : vector<16x1xf32> to vector<16x5xf32>
    %268 = arith.subf %261, %267 : vector<16x5xf32>
    %269 = math.exp %268 : vector<16x5xf32>
    %cst_100 = arith.constant dense<0.000000e+00> : vector<16xf32>
    %270 = vector.multi_reduction <add>, %269, %cst_100 [1] : vector<16x5xf32> to vector<16xf32>
    %271 = vector.shape_cast %270 : vector<16xf32> to vector<16x1xf32>
    %272 = vector.broadcast %271 : vector<16x1xf32> to vector<16x5xf32>
    %273 = arith.divf %269, %272 : vector<16x5xf32>
    %274 = vector.broadcast %1 : vector<16x1xf32> to vector<16x5xf32>
    %275 = arith.mulf %273, %274 : vector<16x5xf32>
    %c1168 = arith.constant 1168 : index
    %c0_101 = arith.constant 0 : index
    %276 = vector.load %arg4[%c1168, %c0_101] : memref<1728x128xf32, #tpu.memory_space<vmem>>, vector<5x16xf32>
    %cst_102 = arith.constant dense<0.000000e+00> : vector<16x16xf32>
    %277 = tpu.matmul %275, %276, %cst_102 {dimension_numbers = #tpu.dot_dimension_numbers<[1], [0], [0], [1], [0, 0, 1, 1], [], []>} : vector<16x5xf32>, vector<5x16xf32>, vector<16x16xf32> -> vector<16x16xf32>
    %c1176 = arith.constant 1176 : index
    %c0_103 = arith.constant 0 : index
    %278 = vector.load %arg4[%c1176, %c0_103] : memref<1728x128xf32, #tpu.memory_space<vmem>>, vector<1x16xf32>
    %279 = vector.broadcast %278 : vector<1x16xf32> to vector<16x16xf32>
    %280 = arith.addf %277, %279 : vector<16x16xf32>
    %cst_104 = arith.constant 0.000000e+00 : f32
    %281 = vector.broadcast %cst_104 : f32 to vector<1x16xf32>
    %282 = vector.extract_strided_slice %280 {offsets = [0, 0], sizes = [15, 16], strides = [1, 1]} : vector<16x16xf32> to vector<15x16xf32>
    %283 = tpu.concatenate %281, %282 in 0 : vector<1x16xf32>, vector<15x16xf32> -> vector<16x16xf32>
    %284 = vector.extract_strided_slice %280 {offsets = [1, 0], sizes = [15, 16], strides = [1, 1]} : vector<16x16xf32> to vector<15x16xf32>
    %285 = tpu.concatenate %284, %281 in 0 : vector<15x16xf32>, vector<1x16xf32> -> vector<16x16xf32>
    %286 = tpu.concatenate %283, %280, %285 in 1 : vector<16x16xf32>, vector<16x16xf32>, vector<16x16xf32> -> vector<16x48xf32>
    %c1184 = arith.constant 1184 : index
    %c0_105 = arith.constant 0 : index
    %287 = vector.load %arg4[%c1184, %c0_105] : memref<1728x128xf32, #tpu.memory_space<vmem>>, vector<48x16xf32>
    %cst_106 = arith.constant dense<0.000000e+00> : vector<16x16xf32>
    %288 = tpu.matmul %286, %287, %cst_106 {dimension_numbers = #tpu.dot_dimension_numbers<[1], [0], [0], [1], [0, 0, 1, 1], [], []>} : vector<16x48xf32>, vector<48x16xf32>, vector<16x16xf32> -> vector<16x16xf32>
    %c1232 = arith.constant 1232 : index
    %c0_107 = arith.constant 0 : index
    %289 = vector.load %arg4[%c1232, %c0_107] : memref<1728x128xf32, #tpu.memory_space<vmem>>, vector<1x16xf32>
    %290 = vector.broadcast %289 : vector<1x16xf32> to vector<16x16xf32>
    %291 = arith.addf %288, %290 : vector<16x16xf32>
    %cst_108 = arith.constant 0.000000e+00 : f32
    %292 = vector.broadcast %cst_108 : f32 to vector<16x16xf32>
    %293 = arith.maximumf %291, %292 : vector<16x16xf32>
    %cst_109 = arith.constant dense<0.000000e+00> : vector<16xf32>
    %294 = vector.multi_reduction <add>, %293, %cst_109 [0] : vector<16x16xf32> to vector<16xf32>
    %295 = vector.shape_cast %294 : vector<16xf32> to vector<1x16xf32>
    %cst_110 = arith.constant 1.600000e+01 : f32
    %296 = vector.broadcast %cst_110 : f32 to vector<1x16xf32>
    %297 = arith.divf %295, %296 : vector<1x16xf32>
    %298 = vector.broadcast %297 : vector<1x16xf32> to vector<16x16xf32>
    %299 = arith.subf %293, %298 : vector<16x16xf32>
    %300 = arith.mulf %299, %299 : vector<16x16xf32>
    %cst_111 = arith.constant dense<0.000000e+00> : vector<16xf32>
    %301 = vector.multi_reduction <add>, %300, %cst_111 [0] : vector<16x16xf32> to vector<16xf32>
    %302 = vector.shape_cast %301 : vector<16xf32> to vector<1x16xf32>
    %cst_112 = arith.constant 1.600000e+01 : f32
    %303 = vector.broadcast %cst_112 : f32 to vector<1x16xf32>
    %304 = arith.divf %302, %303 : vector<1x16xf32>
    %305 = vector.broadcast %297 : vector<1x16xf32> to vector<16x16xf32>
    %306 = arith.subf %293, %305 : vector<16x16xf32>
    %cst_113 = arith.constant 9.99999974E-6 : f32
    %307 = vector.broadcast %cst_113 : f32 to vector<1x16xf32>
    %308 = arith.addf %304, %307 : vector<1x16xf32>
    %309 = math.rsqrt %308 : vector<1x16xf32>
    %310 = vector.broadcast %309 : vector<1x16xf32> to vector<16x16xf32>
    %311 = arith.mulf %306, %310 : vector<16x16xf32>
    %c1240 = arith.constant 1240 : index
    %c0_114 = arith.constant 0 : index
    %312 = vector.load %arg4[%c1240, %c0_114] : memref<1728x128xf32, #tpu.memory_space<vmem>>, vector<16x32xf32>
    %cst_115 = arith.constant dense<0.000000e+00> : vector<16x32xf32>
    %313 = tpu.matmul %311, %312, %cst_115 {dimension_numbers = #tpu.dot_dimension_numbers<[1], [0], [0], [1], [0, 0, 1, 1], [], []>} : vector<16x16xf32>, vector<16x32xf32>, vector<16x32xf32> -> vector<16x32xf32>
    %c1256 = arith.constant 1256 : index
    %c0_116 = arith.constant 0 : index
    %314 = vector.load %arg4[%c1256, %c0_116] : memref<1728x128xf32, #tpu.memory_space<vmem>>, vector<1x32xf32>
    %315 = vector.broadcast %314 : vector<1x32xf32> to vector<16x32xf32>
    %316 = arith.addf %313, %315 : vector<16x32xf32>
    %317 = vector.extract_strided_slice %316 {offsets = [0, 0], sizes = [16, 16], strides = [1, 1]} : vector<16x32xf32> to vector<16x16xf32>
    %318 = arith.negf %317 : vector<16x16xf32>
    %319 = math.exp %318 : vector<16x16xf32>
    %cst_117 = arith.constant 1.000000e+00 : f32
    %320 = vector.broadcast %cst_117 : f32 to vector<16x16xf32>
    %321 = arith.addf %320, %319 : vector<16x16xf32>
    %322 = arith.divf %320, %321 : vector<16x16xf32>
    %323 = vector.extract_strided_slice %316 {offsets = [0, 16], sizes = [16, 16], strides = [1, 1]} : vector<16x32xf32> to vector<16x16xf32>
    %324 = arith.negf %323 : vector<16x16xf32>
    %325 = math.exp %324 : vector<16x16xf32>
    %cst_118 = arith.constant 1.000000e+00 : f32
    %326 = vector.broadcast %cst_118 : f32 to vector<16x16xf32>
    %327 = arith.addf %326, %325 : vector<16x16xf32>
    %328 = arith.divf %326, %327 : vector<16x16xf32>
    %c1264 = arith.constant 1264 : index
    %c0_119 = arith.constant 0 : index
    %329 = vector.load %arg4[%c1264, %c0_119] : memref<1728x128xf32, #tpu.memory_space<vmem>>, vector<16x16xf32>
    %cst_120 = arith.constant dense<0.000000e+00> : vector<16x16xf32>
    %330 = tpu.matmul %264, %329, %cst_120 {dimension_numbers = #tpu.dot_dimension_numbers<[1], [0], [0], [1], [0, 0, 1, 1], [], []>} : vector<16x16xf32>, vector<16x16xf32>, vector<16x16xf32> -> vector<16x16xf32>
    %c1280 = arith.constant 1280 : index
    %c0_121 = arith.constant 0 : index
    %331 = vector.load %arg4[%c1280, %c0_121] : memref<1728x128xf32, #tpu.memory_space<vmem>>, vector<1x16xf32>
    %332 = vector.broadcast %331 : vector<1x16xf32> to vector<16x16xf32>
    %333 = arith.addf %330, %332 : vector<16x16xf32>
    %cst_122 = arith.constant 1.000000e+00 : f32
    %334 = vector.broadcast %cst_122 : f32 to vector<16x1xf32>
    %335 = tpu.concatenate %333, %334 in 1 : vector<16x16xf32>, vector<16x1xf32> -> vector<16x17xf32>
    %cst_123 = arith.constant dense<0.000000e+00> : vector<16x17xf32>
    %336 = tpu.matmul %328, %335, %cst_123 {dimension_numbers = #tpu.dot_dimension_numbers<[0], [0], [1], [1], [0, 1, 1, 1], [], []>} : vector<16x16xf32>, vector<16x17xf32>, vector<16x17xf32> -> vector<16x17xf32>
    %337 = vector.extract_strided_slice %336 {offsets = [0, 0], sizes = [16, 16], strides = [1, 1]} : vector<16x17xf32> to vector<16x16xf32>
    %338 = arith.mulf %337, %4 : vector<16x16xf32>
    %339 = vector.extract_strided_slice %336 {offsets = [0, 16], sizes = [16, 1], strides = [1, 1]} : vector<16x17xf32> to vector<16x1xf32>
    %cst_124 = arith.constant 9.99999997E-7 : f32
    %340 = vector.broadcast %cst_124 : f32 to vector<16x1xf32>
    %341 = arith.addf %339, %340 : vector<16x1xf32>
    %342 = vector.broadcast %341 : vector<16x1xf32> to vector<16x16xf32>
    %343 = arith.mulf %4, %342 : vector<16x16xf32>
    %344 = tpu.concatenate %338, %343 in 1 : vector<16x16xf32>, vector<16x16xf32> -> vector<16x32xf32>
    %cst_125 = arith.constant dense<0.000000e+00> : vector<16x32xf32>
    %345 = tpu.matmul %322, %344, %cst_125 {dimension_numbers = #tpu.dot_dimension_numbers<[1], [0], [0], [1], [0, 0, 1, 1], [], []>} : vector<16x16xf32>, vector<16x32xf32>, vector<16x32xf32> -> vector<16x32xf32>
    %346 = vector.extract_strided_slice %345 {offsets = [0, 0], sizes = [16, 16], strides = [1, 1]} : vector<16x32xf32> to vector<16x16xf32>
    %347 = vector.extract_strided_slice %345 {offsets = [0, 16], sizes = [16, 16], strides = [1, 1]} : vector<16x32xf32> to vector<16x16xf32>
    %348 = arith.divf %346, %347 : vector<16x16xf32>
    %c1288 = arith.constant 1288 : index
    %c0_126 = arith.constant 0 : index
    %349 = vector.load %arg4[%c1288, %c0_126] : memref<1728x128xf32, #tpu.memory_space<vmem>>, vector<16x16xf32>
    %cst_127 = arith.constant dense<0.000000e+00> : vector<16x16xf32>
    %350 = tpu.matmul %348, %349, %cst_127 {dimension_numbers = #tpu.dot_dimension_numbers<[1], [0], [0], [1], [0, 0, 1, 1], [], []>} : vector<16x16xf32>, vector<16x16xf32>, vector<16x16xf32> -> vector<16x16xf32>
    %c1304 = arith.constant 1304 : index
    %c0_128 = arith.constant 0 : index
    %351 = vector.load %arg4[%c1304, %c0_128] : memref<1728x128xf32, #tpu.memory_space<vmem>>, vector<1x16xf32>
    %352 = vector.broadcast %351 : vector<1x16xf32> to vector<16x16xf32>
    %353 = arith.addf %350, %352 : vector<16x16xf32>
    %354 = vector.broadcast %1 : vector<16x1xf32> to vector<16x16xf32>
    %355 = arith.mulf %353, %354 : vector<16x16xf32>
    %cst_129 = arith.constant 1.000000e+00 : f32
    %356 = vector.broadcast %cst_129 : f32 to vector<16x16xf32>
    %357 = arith.mulf %356, %355 : vector<16x16xf32>
    %358 = arith.addf %357, %293 : vector<16x16xf32>
    %c1312 = arith.constant 1312 : index
    %c0_130 = arith.constant 0 : index
    %359 = vector.load %arg4[%c1312, %c0_130] : memref<1728x128xf32, #tpu.memory_space<vmem>>, vector<16x16xf32>
    %cst_131 = arith.constant dense<0.000000e+00> : vector<16x16xf32>
    %360 = tpu.matmul %358, %359, %cst_131 {dimension_numbers = #tpu.dot_dimension_numbers<[1], [0], [0], [1], [0, 0, 1, 1], [], []>} : vector<16x16xf32>, vector<16x16xf32>, vector<16x16xf32> -> vector<16x16xf32>
    %c1328 = arith.constant 1328 : index
    %c0_132 = arith.constant 0 : index
    %361 = vector.load %arg4[%c1328, %c0_132] : memref<1728x128xf32, #tpu.memory_space<vmem>>, vector<1x16xf32>
    %362 = vector.broadcast %361 : vector<1x16xf32> to vector<16x16xf32>
    %363 = arith.addf %360, %362 : vector<16x16xf32>
    %364 = arith.addf %280, %363 : vector<16x16xf32>
    %365 = vector.broadcast %1 : vector<16x1xf32> to vector<16x16xf32>
    %366 = arith.mulf %364, %365 : vector<16x16xf32>
    %cst_133 = arith.constant 0.000000e+00 : f32
    %367 = vector.broadcast %cst_133 : f32 to vector<2x16xf32>
    %368 = vector.extract_strided_slice %366 {offsets = [0, 0], sizes = [14, 16], strides = [1, 1]} : vector<16x16xf32> to vector<14x16xf32>
    %369 = tpu.concatenate %367, %368 in 0 : vector<2x16xf32>, vector<14x16xf32> -> vector<16x16xf32>
    %370 = vector.extract_strided_slice %366 {offsets = [2, 0], sizes = [14, 16], strides = [1, 1]} : vector<16x16xf32> to vector<14x16xf32>
    %371 = tpu.concatenate %370, %367 in 0 : vector<14x16xf32>, vector<2x16xf32> -> vector<16x16xf32>
    %372 = tpu.concatenate %369, %366, %371 in 1 : vector<16x16xf32>, vector<16x16xf32>, vector<16x16xf32> -> vector<16x48xf32>
    %c1336 = arith.constant 1336 : index
    %c0_134 = arith.constant 0 : index
    %373 = vector.load %arg4[%c1336, %c0_134] : memref<1728x128xf32, #tpu.memory_space<vmem>>, vector<48x16xf32>
    %cst_135 = arith.constant dense<0.000000e+00> : vector<16x16xf32>
    %374 = tpu.matmul %372, %373, %cst_135 {dimension_numbers = #tpu.dot_dimension_numbers<[1], [0], [0], [1], [0, 0, 1, 1], [], []>} : vector<16x48xf32>, vector<48x16xf32>, vector<16x16xf32> -> vector<16x16xf32>
    %c1384 = arith.constant 1384 : index
    %c0_136 = arith.constant 0 : index
    %375 = vector.load %arg4[%c1384, %c0_136] : memref<1728x128xf32, #tpu.memory_space<vmem>>, vector<1x16xf32>
    %376 = vector.broadcast %375 : vector<1x16xf32> to vector<16x16xf32>
    %377 = arith.addf %374, %376 : vector<16x16xf32>
    %cst_137 = arith.constant 0.000000e+00 : f32
    %378 = vector.broadcast %cst_137 : f32 to vector<16x16xf32>
    %379 = arith.maximumf %377, %378 : vector<16x16xf32>
    %cst_138 = arith.constant dense<0.000000e+00> : vector<16xf32>
    %380 = vector.multi_reduction <add>, %379, %cst_138 [0] : vector<16x16xf32> to vector<16xf32>
    %381 = vector.shape_cast %380 : vector<16xf32> to vector<1x16xf32>
    %cst_139 = arith.constant 1.600000e+01 : f32
    %382 = vector.broadcast %cst_139 : f32 to vector<1x16xf32>
    %383 = arith.divf %381, %382 : vector<1x16xf32>
    %384 = vector.broadcast %383 : vector<1x16xf32> to vector<16x16xf32>
    %385 = arith.subf %379, %384 : vector<16x16xf32>
    %386 = arith.mulf %385, %385 : vector<16x16xf32>
    %cst_140 = arith.constant dense<0.000000e+00> : vector<16xf32>
    %387 = vector.multi_reduction <add>, %386, %cst_140 [0] : vector<16x16xf32> to vector<16xf32>
    %388 = vector.shape_cast %387 : vector<16xf32> to vector<1x16xf32>
    %cst_141 = arith.constant 1.600000e+01 : f32
    %389 = vector.broadcast %cst_141 : f32 to vector<1x16xf32>
    %390 = arith.divf %388, %389 : vector<1x16xf32>
    %391 = vector.broadcast %383 : vector<1x16xf32> to vector<16x16xf32>
    %392 = arith.subf %379, %391 : vector<16x16xf32>
    %cst_142 = arith.constant 9.99999974E-6 : f32
    %393 = vector.broadcast %cst_142 : f32 to vector<1x16xf32>
    %394 = arith.addf %390, %393 : vector<1x16xf32>
    %395 = math.rsqrt %394 : vector<1x16xf32>
    %396 = vector.broadcast %395 : vector<1x16xf32> to vector<16x16xf32>
    %397 = arith.mulf %392, %396 : vector<16x16xf32>
    %c1392 = arith.constant 1392 : index
    %c0_143 = arith.constant 0 : index
    %398 = vector.load %arg4[%c1392, %c0_143] : memref<1728x128xf32, #tpu.memory_space<vmem>>, vector<16x32xf32>
    %cst_144 = arith.constant dense<0.000000e+00> : vector<16x32xf32>
    %399 = tpu.matmul %397, %398, %cst_144 {dimension_numbers = #tpu.dot_dimension_numbers<[1], [0], [0], [1], [0, 0, 1, 1], [], []>} : vector<16x16xf32>, vector<16x32xf32>, vector<16x32xf32> -> vector<16x32xf32>
    %c1408 = arith.constant 1408 : index
    %c0_145 = arith.constant 0 : index
    %400 = vector.load %arg4[%c1408, %c0_145] : memref<1728x128xf32, #tpu.memory_space<vmem>>, vector<1x32xf32>
    %401 = vector.broadcast %400 : vector<1x32xf32> to vector<16x32xf32>
    %402 = arith.addf %399, %401 : vector<16x32xf32>
    %403 = vector.extract_strided_slice %402 {offsets = [0, 0], sizes = [16, 16], strides = [1, 1]} : vector<16x32xf32> to vector<16x16xf32>
    %404 = arith.negf %403 : vector<16x16xf32>
    %405 = math.exp %404 : vector<16x16xf32>
    %cst_146 = arith.constant 1.000000e+00 : f32
    %406 = vector.broadcast %cst_146 : f32 to vector<16x16xf32>
    %407 = arith.addf %406, %405 : vector<16x16xf32>
    %408 = arith.divf %406, %407 : vector<16x16xf32>
    %409 = vector.extract_strided_slice %402 {offsets = [0, 16], sizes = [16, 16], strides = [1, 1]} : vector<16x32xf32> to vector<16x16xf32>
    %410 = arith.negf %409 : vector<16x16xf32>
    %411 = math.exp %410 : vector<16x16xf32>
    %cst_147 = arith.constant 1.000000e+00 : f32
    %412 = vector.broadcast %cst_147 : f32 to vector<16x16xf32>
    %413 = arith.addf %412, %411 : vector<16x16xf32>
    %414 = arith.divf %412, %413 : vector<16x16xf32>
    %c1416 = arith.constant 1416 : index
    %c0_148 = arith.constant 0 : index
    %415 = vector.load %arg4[%c1416, %c0_148] : memref<1728x128xf32, #tpu.memory_space<vmem>>, vector<16x16xf32>
    %cst_149 = arith.constant dense<0.000000e+00> : vector<16x16xf32>
    %416 = tpu.matmul %264, %415, %cst_149 {dimension_numbers = #tpu.dot_dimension_numbers<[1], [0], [0], [1], [0, 0, 1, 1], [], []>} : vector<16x16xf32>, vector<16x16xf32>, vector<16x16xf32> -> vector<16x16xf32>
    %c1432 = arith.constant 1432 : index
    %c0_150 = arith.constant 0 : index
    %417 = vector.load %arg4[%c1432, %c0_150] : memref<1728x128xf32, #tpu.memory_space<vmem>>, vector<1x16xf32>
    %418 = vector.broadcast %417 : vector<1x16xf32> to vector<16x16xf32>
    %419 = arith.addf %416, %418 : vector<16x16xf32>
    %cst_151 = arith.constant 1.000000e+00 : f32
    %420 = vector.broadcast %cst_151 : f32 to vector<16x1xf32>
    %421 = tpu.concatenate %419, %420 in 1 : vector<16x16xf32>, vector<16x1xf32> -> vector<16x17xf32>
    %cst_152 = arith.constant dense<0.000000e+00> : vector<16x17xf32>
    %422 = tpu.matmul %414, %421, %cst_152 {dimension_numbers = #tpu.dot_dimension_numbers<[0], [0], [1], [1], [0, 1, 1, 1], [], []>} : vector<16x16xf32>, vector<16x17xf32>, vector<16x17xf32> -> vector<16x17xf32>
    %423 = vector.extract_strided_slice %422 {offsets = [0, 0], sizes = [16, 16], strides = [1, 1]} : vector<16x17xf32> to vector<16x16xf32>
    %424 = arith.mulf %423, %4 : vector<16x16xf32>
    %425 = vector.extract_strided_slice %422 {offsets = [0, 16], sizes = [16, 1], strides = [1, 1]} : vector<16x17xf32> to vector<16x1xf32>
    %cst_153 = arith.constant 9.99999997E-7 : f32
    %426 = vector.broadcast %cst_153 : f32 to vector<16x1xf32>
    %427 = arith.addf %425, %426 : vector<16x1xf32>
    %428 = vector.broadcast %427 : vector<16x1xf32> to vector<16x16xf32>
    %429 = arith.mulf %4, %428 : vector<16x16xf32>
    %430 = tpu.concatenate %424, %429 in 1 : vector<16x16xf32>, vector<16x16xf32> -> vector<16x32xf32>
    %cst_154 = arith.constant dense<0.000000e+00> : vector<16x32xf32>
    %431 = tpu.matmul %408, %430, %cst_154 {dimension_numbers = #tpu.dot_dimension_numbers<[1], [0], [0], [1], [0, 0, 1, 1], [], []>} : vector<16x16xf32>, vector<16x32xf32>, vector<16x32xf32> -> vector<16x32xf32>
    %432 = vector.extract_strided_slice %431 {offsets = [0, 0], sizes = [16, 16], strides = [1, 1]} : vector<16x32xf32> to vector<16x16xf32>
    %433 = vector.extract_strided_slice %431 {offsets = [0, 16], sizes = [16, 16], strides = [1, 1]} : vector<16x32xf32> to vector<16x16xf32>
    %434 = arith.divf %432, %433 : vector<16x16xf32>
    %c1440 = arith.constant 1440 : index
    %c0_155 = arith.constant 0 : index
    %435 = vector.load %arg4[%c1440, %c0_155] : memref<1728x128xf32, #tpu.memory_space<vmem>>, vector<16x16xf32>
    %cst_156 = arith.constant dense<0.000000e+00> : vector<16x16xf32>
    %436 = tpu.matmul %434, %435, %cst_156 {dimension_numbers = #tpu.dot_dimension_numbers<[1], [0], [0], [1], [0, 0, 1, 1], [], []>} : vector<16x16xf32>, vector<16x16xf32>, vector<16x16xf32> -> vector<16x16xf32>
    %c1456 = arith.constant 1456 : index
    %c0_157 = arith.constant 0 : index
    %437 = vector.load %arg4[%c1456, %c0_157] : memref<1728x128xf32, #tpu.memory_space<vmem>>, vector<1x16xf32>
    %438 = vector.broadcast %437 : vector<1x16xf32> to vector<16x16xf32>
    %439 = arith.addf %436, %438 : vector<16x16xf32>
    %440 = vector.broadcast %1 : vector<16x1xf32> to vector<16x16xf32>
    %441 = arith.mulf %439, %440 : vector<16x16xf32>
    %cst_158 = arith.constant 1.000000e+00 : f32
    %442 = vector.broadcast %cst_158 : f32 to vector<16x16xf32>
    %443 = arith.mulf %442, %441 : vector<16x16xf32>
    %444 = arith.addf %443, %379 : vector<16x16xf32>
    %c1464 = arith.constant 1464 : index
    %c0_159 = arith.constant 0 : index
    %445 = vector.load %arg4[%c1464, %c0_159] : memref<1728x128xf32, #tpu.memory_space<vmem>>, vector<16x16xf32>
    %cst_160 = arith.constant dense<0.000000e+00> : vector<16x16xf32>
    %446 = tpu.matmul %444, %445, %cst_160 {dimension_numbers = #tpu.dot_dimension_numbers<[1], [0], [0], [1], [0, 0, 1, 1], [], []>} : vector<16x16xf32>, vector<16x16xf32>, vector<16x16xf32> -> vector<16x16xf32>
    %c1480 = arith.constant 1480 : index
    %c0_161 = arith.constant 0 : index
    %447 = vector.load %arg4[%c1480, %c0_161] : memref<1728x128xf32, #tpu.memory_space<vmem>>, vector<1x16xf32>
    %448 = vector.broadcast %447 : vector<1x16xf32> to vector<16x16xf32>
    %449 = arith.addf %446, %448 : vector<16x16xf32>
    %450 = arith.addf %366, %449 : vector<16x16xf32>
    %451 = vector.broadcast %1 : vector<16x1xf32> to vector<16x16xf32>
    %452 = arith.mulf %450, %451 : vector<16x16xf32>
    %c1488 = arith.constant 1488 : index
    %c0_162 = arith.constant 0 : index
    %453 = vector.load %arg4[%c1488, %c0_162] : memref<1728x128xf32, #tpu.memory_space<vmem>>, vector<16x5xf32>
    %cst_163 = arith.constant dense<0.000000e+00> : vector<16x5xf32>
    %454 = tpu.matmul %452, %453, %cst_163 {dimension_numbers = #tpu.dot_dimension_numbers<[1], [0], [0], [1], [0, 0, 1, 1], [], []>} : vector<16x16xf32>, vector<16x5xf32>, vector<16x5xf32> -> vector<16x5xf32>
    %c1504 = arith.constant 1504 : index
    %c0_164 = arith.constant 0 : index
    %455 = vector.load %arg4[%c1504, %c0_164] : memref<1728x128xf32, #tpu.memory_space<vmem>>, vector<1x5xf32>
    %456 = vector.broadcast %455 : vector<1x5xf32> to vector<16x5xf32>
    %457 = arith.addf %454, %456 : vector<16x5xf32>
    %458 = arith.negf %262 : vector<16x1xf32>
    %459 = math.exp %458 : vector<16x1xf32>
    %cst_165 = arith.constant 1.000000e+00 : f32
    %460 = vector.broadcast %cst_165 : f32 to vector<16x1xf32>
    %461 = arith.addf %460, %459 : vector<16x1xf32>
    %462 = arith.divf %460, %461 : vector<16x1xf32>
    %c1512 = arith.constant 1512 : index
    %c0_166 = arith.constant 0 : index
    %463 = vector.load %arg4[%c1512, %c0_166] : memref<1728x128xf32, #tpu.memory_space<vmem>>, vector<1x16xf32>
    %464 = vector.broadcast %462 : vector<16x1xf32> to vector<16x16xf32>
    %465 = vector.broadcast %463 : vector<1x16xf32> to vector<16x16xf32>
    %466 = arith.mulf %464, %465 : vector<16x16xf32>
    %c1520 = arith.constant 1520 : index
    %c0_167 = arith.constant 0 : index
    %467 = vector.load %arg4[%c1520, %c0_167] : memref<1728x128xf32, #tpu.memory_space<vmem>>, vector<1x16xf32>
    %468 = vector.broadcast %467 : vector<1x16xf32> to vector<16x16xf32>
    %469 = arith.addf %466, %468 : vector<16x16xf32>
    %cst_168 = arith.constant 0.000000e+00 : f32
    %470 = vector.broadcast %cst_168 : f32 to vector<1x16xf32>
    %471 = vector.extract_strided_slice %469 {offsets = [0, 0], sizes = [15, 16], strides = [1, 1]} : vector<16x16xf32> to vector<15x16xf32>
    %472 = tpu.concatenate %470, %471 in 0 : vector<1x16xf32>, vector<15x16xf32> -> vector<16x16xf32>
    %473 = vector.extract_strided_slice %469 {offsets = [1, 0], sizes = [15, 16], strides = [1, 1]} : vector<16x16xf32> to vector<15x16xf32>
    %474 = tpu.concatenate %473, %470 in 0 : vector<15x16xf32>, vector<1x16xf32> -> vector<16x16xf32>
    %475 = tpu.concatenate %472, %469, %474 in 1 : vector<16x16xf32>, vector<16x16xf32>, vector<16x16xf32> -> vector<16x48xf32>
    %c1528 = arith.constant 1528 : index
    %c0_169 = arith.constant 0 : index
    %476 = vector.load %arg4[%c1528, %c0_169] : memref<1728x128xf32, #tpu.memory_space<vmem>>, vector<48x16xf32>
    %cst_170 = arith.constant dense<0.000000e+00> : vector<16x16xf32>
    %477 = tpu.matmul %475, %476, %cst_170 {dimension_numbers = #tpu.dot_dimension_numbers<[1], [0], [0], [1], [0, 0, 1, 1], [], []>} : vector<16x48xf32>, vector<48x16xf32>, vector<16x16xf32> -> vector<16x16xf32>
    %c1576 = arith.constant 1576 : index
    %c0_171 = arith.constant 0 : index
    %478 = vector.load %arg4[%c1576, %c0_171] : memref<1728x128xf32, #tpu.memory_space<vmem>>, vector<1x16xf32>
    %479 = vector.broadcast %478 : vector<1x16xf32> to vector<16x16xf32>
    %480 = arith.addf %477, %479 : vector<16x16xf32>
    %cst_172 = arith.constant 0.000000e+00 : f32
    %481 = vector.broadcast %cst_172 : f32 to vector<16x16xf32>
    %482 = arith.maximumf %480, %481 : vector<16x16xf32>
    %c1584 = arith.constant 1584 : index
    %c0_173 = arith.constant 0 : index
    %483 = vector.load %arg4[%c1584, %c0_173] : memref<1728x128xf32, #tpu.memory_space<vmem>>, vector<16x16xf32>
    %cst_174 = arith.constant dense<0.000000e+00> : vector<16x16xf32>
    %484 = tpu.matmul %482, %483, %cst_174 {dimension_numbers = #tpu.dot_dimension_numbers<[1], [0], [0], [1], [0, 0, 1, 1], [], []>} : vector<16x16xf32>, vector<16x16xf32>, vector<16x16xf32> -> vector<16x16xf32>
    %c1600 = arith.constant 1600 : index
    %c0_175 = arith.constant 0 : index
    %485 = vector.load %arg4[%c1600, %c0_175] : memref<1728x128xf32, #tpu.memory_space<vmem>>, vector<1x16xf32>
    %486 = vector.broadcast %485 : vector<1x16xf32> to vector<16x16xf32>
    %487 = arith.addf %484, %486 : vector<16x16xf32>
    %488 = arith.addf %469, %487 : vector<16x16xf32>
    %489 = vector.broadcast %1 : vector<16x1xf32> to vector<16x16xf32>
    %490 = arith.mulf %488, %489 : vector<16x16xf32>
    %cst_176 = arith.constant 0.000000e+00 : f32
    %491 = vector.broadcast %cst_176 : f32 to vector<2x16xf32>
    %492 = vector.extract_strided_slice %490 {offsets = [0, 0], sizes = [14, 16], strides = [1, 1]} : vector<16x16xf32> to vector<14x16xf32>
    %493 = tpu.concatenate %491, %492 in 0 : vector<2x16xf32>, vector<14x16xf32> -> vector<16x16xf32>
    %494 = vector.extract_strided_slice %490 {offsets = [2, 0], sizes = [14, 16], strides = [1, 1]} : vector<16x16xf32> to vector<14x16xf32>
    %495 = tpu.concatenate %494, %491 in 0 : vector<14x16xf32>, vector<2x16xf32> -> vector<16x16xf32>
    %496 = tpu.concatenate %493, %490, %495 in 1 : vector<16x16xf32>, vector<16x16xf32>, vector<16x16xf32> -> vector<16x48xf32>
    %c1608 = arith.constant 1608 : index
    %c0_177 = arith.constant 0 : index
    %497 = vector.load %arg4[%c1608, %c0_177] : memref<1728x128xf32, #tpu.memory_space<vmem>>, vector<48x16xf32>
    %cst_178 = arith.constant dense<0.000000e+00> : vector<16x16xf32>
    %498 = tpu.matmul %496, %497, %cst_178 {dimension_numbers = #tpu.dot_dimension_numbers<[1], [0], [0], [1], [0, 0, 1, 1], [], []>} : vector<16x48xf32>, vector<48x16xf32>, vector<16x16xf32> -> vector<16x16xf32>
    %c1656 = arith.constant 1656 : index
    %c0_179 = arith.constant 0 : index
    %499 = vector.load %arg4[%c1656, %c0_179] : memref<1728x128xf32, #tpu.memory_space<vmem>>, vector<1x16xf32>
    %500 = vector.broadcast %499 : vector<1x16xf32> to vector<16x16xf32>
    %501 = arith.addf %498, %500 : vector<16x16xf32>
    %cst_180 = arith.constant 0.000000e+00 : f32
    %502 = vector.broadcast %cst_180 : f32 to vector<16x16xf32>
    %503 = arith.maximumf %501, %502 : vector<16x16xf32>
    %c1664 = arith.constant 1664 : index
    %c0_181 = arith.constant 0 : index
    %504 = vector.load %arg4[%c1664, %c0_181] : memref<1728x128xf32, #tpu.memory_space<vmem>>, vector<16x16xf32>
    %cst_182 = arith.constant dense<0.000000e+00> : vector<16x16xf32>
    %505 = tpu.matmul %503, %504, %cst_182 {dimension_numbers = #tpu.dot_dimension_numbers<[1], [0], [0], [1], [0, 0, 1, 1], [], []>} : vector<16x16xf32>, vector<16x16xf32>, vector<16x16xf32> -> vector<16x16xf32>
    %c1680 = arith.constant 1680 : index
    %c0_183 = arith.constant 0 : index
    %506 = vector.load %arg4[%c1680, %c0_183] : memref<1728x128xf32, #tpu.memory_space<vmem>>, vector<1x16xf32>
    %507 = vector.broadcast %506 : vector<1x16xf32> to vector<16x16xf32>
    %508 = arith.addf %505, %507 : vector<16x16xf32>
    %509 = arith.addf %490, %508 : vector<16x16xf32>
    %510 = vector.broadcast %1 : vector<16x1xf32> to vector<16x16xf32>
    %511 = arith.mulf %509, %510 : vector<16x16xf32>
    %c1688 = arith.constant 1688 : index
    %c0_184 = arith.constant 0 : index
    %512 = vector.load %arg4[%c1688, %c0_184] : memref<1728x128xf32, #tpu.memory_space<vmem>>, vector<16x1xf32>
    %cst_185 = arith.constant dense<0.000000e+00> : vector<16x1xf32>
    %513 = tpu.matmul %511, %512, %cst_185 {dimension_numbers = #tpu.dot_dimension_numbers<[1], [0], [0], [1], [0, 0, 1, 1], [], []>} : vector<16x16xf32>, vector<16x1xf32>, vector<16x1xf32> -> vector<16x1xf32>
    %c1704 = arith.constant 1704 : index
    %c0_186 = arith.constant 0 : index
    %514 = vector.load %arg4[%c1704, %c0_186] : memref<1728x128xf32, #tpu.memory_space<vmem>>, vector<1x1xf32>
    %515 = vector.broadcast %514 : vector<1x1xf32> to vector<16x1xf32>
    %516 = arith.addf %513, %515 : vector<16x1xf32>
    %517 = arith.mulf %516, %1 : vector<16x1xf32>
    %518 = tpu.concatenate %457, %517 in 1 : vector<16x5xf32>, vector<16x1xf32> -> vector<16x6xf32>
    %c0_187 = arith.constant 0 : index
    %c0_188 = arith.constant 0 : index
    %c0_189 = arith.constant 0 : index
    %519 = vector.load %arg5[%c0_187, %c0_188, %c0_189] : memref<1x16x6xf32, #tpu.memory_space<vmem>>, vector<1x16x6xf32>
    %520 = vector.shape_cast %519 : vector<1x16x6xf32> to vector<16x6xf32>
    %521 = vector.shape_cast %518 : vector<16x6xf32> to vector<1x16x6xf32>
    tpu.vector_store %arg5[%c0_187, %c0_188, %c0_189], %521 {strides = array<i32>} : memref<1x16x6xf32, #tpu.memory_space<vmem>>, vector<1x16x6xf32>,
    return
  }
  func.func @transform_0(%arg0: i32) -> (i32, i32, i32) {
    %c0_i32 = arith.constant 0 : i32
    %c0_i32_0 = arith.constant 0 : i32
    %c0_i32_1 = arith.constant 0 : i32
    return %arg0, %c0_i32, %c0_i32_0 : i32, i32, i32
  }
  func.func @transform_1(%arg0: i32) -> (i32, i32, i32) {
    %c0_i32 = arith.constant 0 : i32
    %c0_i32_0 = arith.constant 0 : i32
    %c0_i32_1 = arith.constant 0 : i32
    return %arg0, %c0_i32, %c0_i32_0 : i32, i32, i32
  }
  func.func @transform_2(%arg0: i32) -> (i32, i32) {
    %c0_i32 = arith.constant 0 : i32
    %c0_i32_0 = arith.constant 0 : i32
    %c0_i32_1 = arith.constant 0 : i32
    return %c0_i32, %c0_i32_0 : i32, i32
  }
  func.func @transform_3(%arg0: i32) -> (i32, i32) {
    %c0_i32 = arith.constant 0 : i32
    %c0_i32_0 = arith.constant 0 : i32
    %c0_i32_1 = arith.constant 0 : i32
    return %c0_i32, %c0_i32_0 : i32, i32
  }
  func.func @transform_4(%arg0: i32) -> (i32, i32, i32) {
    %c0_i32 = arith.constant 0 : i32
    %c0_i32_0 = arith.constant 0 : i32
    %c0_i32_1 = arith.constant 0 : i32
    return %arg0, %c0_i32, %c0_i32_0 : i32, i32, i32
  }
}

</mosaic_0001>

<llo_original>
// kernel: forward.1
$region0: #{forward.1}
  #allocation0 [shape = 'u32[]', space=smem, size = 0x4, offset = 0x4, fixed_abs, tag = 'smem constant byte address 0x4 - core index']
  #allocation1 [shape = 'u32[144,128]{1,0:T(1,128)}', space=vmem, size = 0x12000, scoped, tag = 'internal scratch']
  %s0 = inlined_call_operand.vmem [shape: f32[2,16,76], index: 0, kind: input, shape index: {}]
  %s1 = inlined_call_operand.vmem [shape: f32[2,16,1], index: 1, kind: input, shape index: {}]
  %s2 = inlined_call_operand.vmem [shape: f32[76,400], index: 2, kind: input, shape index: {}]
  %s3 = inlined_call_operand.hbm [shape: f32[1728,128], index: 3, kind: input, shape index: {}]
  %s4 = inlined_call_operand.vmem [shape: f32[2,16,6], index: 4, kind: output, shape index: {}]
  %s5 = sld [smem:[#allocation0]]
  $region53: #{forward.1} parent=0
    _
  %s7 = ssub.s32 1, %s5
  %s8 = scalar_select 0, %s7, %s5
  $region1: #{forward.1} parent=0
    #allocation2 [shape = 'u8[884736]{0}', space=vmem, size = 0xd8000, scoped, tag = 'input window, operand 3, single buffered']
    #allocation3 [shape = 's32[2]{0}', space=sflag, size = 0x8, scoped, tag = 'scoped memory for forward.1']
    %9 = vsyncpa [#allocation3], 0
    loop: start=0, step=1, limit=4
    $region2: #{forward.1} parent=1 // loop_pre_header
      _
    $region3: #{forward.1} parent=1 // loop_header
      %s11 = sphi 0, %s15
      %p12 = scmp.ge.s32.totalorder %s11, 4
      %s21 = sphi 0, %s23
      %s24 = sphi 0, %s21
      %s25 = sphi 0, %s24
      %s41 = sphi 0, %s25
      %s47 = sphi 0, %s49
      %s50 = sphi 0, %s47
      %s51 = sphi 0, %s50
      %s67 = sphi 0, %s51
      %s71 = sphi 0, %s71
      %s73 = sphi 0, %s71
      %s74 = sphi 0, %s73
      %s88 = sphi 0, %s74
      %s92 = sphi 0, %s92
      %s94 = sphi 0, %s92
      %s95 = sphi 0, %s94
      %s109 = sphi 0, %s95
      %s115 = sphi 0, %s117
      %s118 = sphi 0, %s115
      %s119 = sphi 0, %s118
      %s135 = sphi 0, %s119
    $region4: #{forward.1} parent=1 // loop_header_branch
      %14 = sbr.rel (%p12) target = $region8
    $region5: #{forward.1} parent=1 // loop_body
      %s16 = ssub.s32 %s11, 1
      %s17 = ssub.s32 %s11, 2
      %s18 = sadd.s32 %s11, 1
      %s19 = ssub.s32 %s11, %s18
      %p20 = scmp.eq.s32.totalorder %s19, 0
      %s22 = sadd.s32 %s21, 1
      %s23 = scalar_select %p20, %s21, %s22
      %p26 = pneg %p20
      %p27 = scmp.eq.s32.totalorder %s11, 1
      %p28 = por %p26, %p27
      %p29 = scmp.ne.s32.totalorder %s21, %s24
      %p30 = scmp.eq.s32.totalorder %s11, 0
      %p31 = por %p29, %p30
      %p32 = scmp.ne.s32.totalorder %s21, %s24
      %p33 = scmp.eq.s32.totalorder %s16, 1
      %p34 = por %p32, %p33
      %p35 = scmp.ne.s32.totalorder %s24, %s25
      %p36 = scmp.eq.s32.totalorder %s16, 0
      %p37 = por %p35, %p36
      %p38 = scmp.ne.s32.totalorder %s24, %s25
      %p39 = scmp.eq.s32.totalorder %s17, 1
      %p40 = por %p38, %p39
      %p42 = scmp.ne.s32.totalorder %s25, %s41
      %p43 = scmp.eq.s32.totalorder %s17, 0
      %p44 = por %p42, %p43
      %s45 = ssub.s32 %s11, %s18
      %p46 = scmp.eq.s32.totalorder %s45, 0
      %s48 = sadd.s32 %s47, 1
      %s49 = scalar_select %p46, %s47, %s48
      %p52 = pneg %p46
      %p53 = scmp.eq.s32.totalorder %s11, 1
      %p54 = por %p52, %p53
      %p55 = scmp.ne.s32.totalorder %s47, %s50
      %p56 = scmp.eq.s32.totalorder %s11, 0
      %p57 = por %p55, %p56
      %p58 = scmp.ne.s32.totalorder %s47, %s50
      %p59 = scmp.eq.s32.totalorder %s16, 1
      %p60 = por %p58, %p59
      %p61 = scmp.ne.s32.totalorder %s50, %s51
      %p62 = scmp.eq.s32.totalorder %s16, 0
      %p63 = por %p61, %p62
      %p64 = scmp.ne.s32.totalorder %s50, %s51
      %p65 = scmp.eq.s32.totalorder %s17, 1
      %p66 = por %p64, %p65
      %p68 = scmp.ne.s32.totalorder %s51, %s67
      %p69 = scmp.eq.s32.totalorder %s17, 0
      %p70 = por %p68, %p69
      %s72 = sadd.s32 %s71, 1
      %p75 = scmp.eq.s32.totalorder %s11, 1
      %p76 = scmp.ne.s32.totalorder %s71, %s73
      %p77 = scmp.eq.s32.totalorder %s11, 0
      %p78 = por %p76, %p77
      %p79 = scmp.ne.s32.totalorder %s71, %s73
      %p80 = scmp.eq.s32.totalorder %s16, 1
      %p81 = por %p79, %p80
      %p82 = scmp.ne.s32.totalorder %s73, %s74
      %p83 = scmp.eq.s32.totalorder %s16, 0
      %p84 = por %p82, %p83
      %p85 = scmp.ne.s32.totalorder %s73, %s74
      %p86 = scmp.eq.s32.totalorder %s17, 1
      %p87 = por %p85, %p86
      %p89 = scmp.ne.s32.totalorder %s74, %s88
      %p90 = scmp.eq.s32.totalorder %s17, 0
      %p91 = por %p89, %p90
      %s93 = sadd.s32 %s92, 1
      %p96 = scmp.eq.s32.totalorder %s11, 1
      %p97 = scmp.ne.s32.totalorder %s92, %s94
      %p98 = scmp.eq.s32.totalorder %s11, 0
      %p99 = por %p97, %p98
      %p100 = scmp.ne.s32.totalorder %s92, %s94
      %p101 = scmp.eq.s32.totalorder %s16, 1
      %p102 = por %p100, %p101
      %p103 = scmp.ne.s32.totalorder %s94, %s95
      %p104 = scmp.eq.s32.totalorder %s16, 0
      %p105 = por %p103, %p104
      %p106 = scmp.ne.s32.totalorder %s94, %s95
      %p107 = scmp.eq.s32.totalorder %s17, 1
      %p108 = por %p106, %p107
      %p110 = scmp.ne.s32.totalorder %s95, %s109
      %p111 = scmp.eq.s32.totalorder %s17, 0
      %p112 = por %p110, %p111
      %s113 = ssub.s32 %s11, %s18
      %p114 = scmp.eq.s32.totalorder %s113, 0
      %s116 = sadd.s32 %s115, 1
      %s117 = scalar_select %p114, %s115, %s116
      %p120 = pneg %p114
      %p121 = scmp.eq.s32.totalorder %s11, 1
      %p122 = por %p120, %p121
      %p123 = scmp.ne.s32.totalorder %s115, %s118
      %p124 = scmp.eq.s32.totalorder %s11, 0
      %p125 = por %p123, %p124
      %p126 = scmp.ne.s32.totalorder %s115, %s118
      %p127 = scmp.eq.s32.totalorder %s16, 1
      %p128 = por %p126, %p127
      %p129 = scmp.ne.s32.totalorder %s118, %s119
      %p130 = scmp.eq.s32.totalorder %s16, 0
      %p131 = por %p129, %p130
      %p132 = scmp.ne.s32.totalorder %s118, %s119
      %p133 = scmp.eq.s32.totalorder %s17, 1
      %p134 = por %p132, %p133
      %p136 = scmp.ne.s32.totalorder %s119, %s135
      %p137 = scmp.eq.s32.totalorder %s17, 0
      %p138 = por %p136, %p137
      %p139 = scmp.le.s32.totalorder 1, %s11
      %p140 = scmp.lt.s32.totalorder %s11, 3
      %p141 = pnand %p139, %p140
      %p142 = pneg %p141
      // Predicated region
      $region9: #{forward.1} parent=5 // pred_check
        _
      $region10: #{forward.1} parent=5 // pred_check_branch
        %144 = sbr.rel (%p141) target = $region12
      $region11: #{forward.1} parent=5 // pred_region
        %s145 = ssub.s32 %s11, 1
        // Predicated region
        $region13: #{forward.1} parent=11 // pred_check
          %p146 = pneg %p84
        $region14: #{forward.1} parent=11 // pred_check_branch
          %148 = sbr.rel (%p146) target = $region16
        $region15: #{forward.1} parent=11 // pred_region
          _
        $region16: #{forward.1} parent=11 // pred_fallthru
          _
        // Predicated region
        $region17: #{forward.1} parent=11 // pred_check
          %p149 = pneg %p105
        $region18: #{forward.1} parent=11 // pred_check_branch
          %151 = sbr.rel (%p149) target = $region20
        $region19: #{forward.1} parent=11 // pred_region
          %s153 = ssub.s32 27648, 27648
          %154 = vsyncadd [#allocation3], %s153
          %s155 = sshll.u32 [#allocation2], 4
          %s156 = int_to_ptr.vmem [resolvable:$true] %s155
          %161 = dma.hbm_to_vmem [thread:$0]  %s3, 27648, %s156, [#allocation3], 128, 128, 8
        $region20: #{forward.1} parent=11 // pred_fallthru
          _
      $region12: #{forward.1} parent=5 // pred_fallthru
        _
      %p162 = scmp.lt.s32.totalorder %s11, 2
      // Predicated region
      $region21: #{forward.1} parent=5 // pred_check
        %p163 = pneg %p162
      $region22: #{forward.1} parent=5 // pred_check_branch
        %165 = sbr.rel (%p163) target = $region24
      $region23: #{forward.1} parent=5 // pred_region
        // Predicated region
        $region25: #{forward.1} parent=23 // pred_check
          %p166 = pneg %p31
        $region26: #{forward.1} parent=23 // pred_check_branch
          %168 = sbr.rel (%p166) target = $region28
        $region27: #{forward.1} parent=23 // pred_region
          %p169 = scmp.lt.s32.totalorder %s11, 1
          %s170 = scalar_select %p169, %s11, 1
          %s171 = smul.addr %s170, 2
          %s172 = smul.addr %s171, 8
          %s173 = scalar_lea.vmem %s0, %s172
        $region28: #{forward.1} parent=23 // pred_fallthru
          _
        // Predicated region
        $region29: #{forward.1} parent=23 // pred_check
          %p174 = pneg %p57
        $region30: #{forward.1} parent=23 // pred_check_branch
          %176 = sbr.rel (%p174) target = $region32
        $region31: #{forward.1} parent=23 // pred_region
          %p177 = scmp.lt.s32.totalorder %s11, 1
          %s178 = scalar_select %p177, %s11, 1
          %s179 = smul.addr %s178, 2
          %s180 = smul.addr %s179, 8
          %s181 = scalar_lea.vmem %s1, %s180
        $region32: #{forward.1} parent=23 // pred_fallthru
          _
      $region24: #{forward.1} parent=5 // pred_fallthru
        _
      %p182 = scmp.le.s32.totalorder 1, %s11
      %p183 = scmp.lt.s32.totalorder %s11, 3
      %p184 = pnand %p182, %p183
      %p185 = pneg %p184
      // Predicated region
      $region33: #{forward.1} parent=5 // pred_check
        _
      $region34: #{forward.1} parent=5 // pred_check_branch
        %187 = sbr.rel (%p184) target = $region36
      $region35: #{forward.1} parent=5 // pred_region
        %s188 = ssub.s32 %s11, 1
        // Predicated region
        $region37: #{forward.1} parent=35 // pred_check
          %p189 = pneg %p105
        $region38: #{forward.1} parent=35 // pred_check_branch
          %191 = sbr.rel (%p189) target = $region40
        $region39: #{forward.1} parent=35 // pred_region
          %192 = dma.done [#allocation3], 27648
        $region40: #{forward.1} parent=35 // pred_fallthru
          _
        %p193 = scmp.lt.s32.totalorder %s16, 1
        %s194 = scalar_select %p193, %s16, 1
        %s195 = smul.addr %s194, 2
        %s196 = smul.addr %s195, 8
        %s197 = scalar_lea.vmem %s0, %s196
        %p198 = pneg %p37
        %p199 = pneg %p34
        %p200 = scmp.lt.s32.totalorder %s16, 1
        %s201 = scalar_select %p200, %s16, 1
        %s202 = smul.addr %s201, 2
        %s203 = smul.addr %s202, 8
        %s204 = scalar_lea.vmem %s1, %s203
        %p205 = pneg %p63
        %p206 = pneg %p60
        %p207 = pneg %p84
        %p208 = pneg %p81
        %p209 = pneg %p105
        %p210 = pneg %p102
        %p211 = pneg %p131
        %p212 = pneg %p128
        %p213 = scmp.lt.s32.totalorder %s16, 1
        %s214 = scalar_select %p213, %s16, 1
        %s215 = smul.addr %s214, 2
        %s216 = smul.addr %s215, 8
        %s217 = scalar_lea.vmem %s4, %s216
        %p218 = scmp.lt.s32.totalorder %s16, 1
        %s219 = scalar_select %p218, %s16, 1
        %s220 = smul.addr %s219, 2
        %s221 = smul.addr %s220, 8
        %s222 = scalar_lea.vmem %s0, %s221
        %p223 = scmp.lt.s32.totalorder %s16, 1
        %s224 = scalar_select %p223, %s16, 1
        %s225 = smul.addr %s224, 2
        %s226 = smul.addr %s225, 8
        %s227 = scalar_lea.vmem %s1, %s226
        %p228 = scmp.lt.s32.totalorder %s16, 1
        %s229 = scalar_select %p228, %s16, 1
        %s230 = smul.addr %s229, 2
        %s231 = smul.addr %s230, 8
        %s232 = scalar_lea.vmem %s4, %s231
        %v233 = vld [vmem:[%s227] sm:$0xff]
        %v234 = vld [vmem:[%s227 + $0x8] sm:$0xff]
        %v235 = vld [vmem:[%s222] sm:$0xff]
        %v236 = vld [vmem:[%s222 + $0x8] sm:$0xff]
        %v237 = vld [vmem:[#allocation2 + $0x6b0] sm:$0xff]
        %v238 = vld [vmem:[#allocation2 + $0x6b8] sm:$0xff]
        %v239 = vld [vmem:[%s2] sm:$0xff]
        %v240 = vld [vmem:[%s2 + $0x8] sm:$0xff]
        %v241 = vld [vmem:[%s2 + $0x10] sm:$0xff]
        %v242 = vld [vmem:[%s2 + $0x18] sm:$0xff]
        %v243 = vld [vmem:[%s2 + $0x20] sm:$0xff]
        %v244 = vld [vmem:[%s2 + $0x28] sm:$0xff]
        %v245 = vld [vmem:[%s2 + $0x30] sm:$0xff]
        %v246 = vld [vmem:[%s2 + $0x38] sm:$0xff]
        %v247 = vld [vmem:[%s2 + $0x40] sm:$0xff]
        %v248 = vld [vmem:[%s2 + $0x48] sm:$0xff]
        %v249 = vld [vmem:[%s2 + $0x50] sm:$0xff]
        %v250 = vld [vmem:[%s2 + $0x58] sm:$0xff]
        %v251 = vld [vmem:[%s2 + $0x60] sm:$0xff]
        %v252 = vld [vmem:[%s2 + $0x68] sm:$0xff]
        %v253 = vld [vmem:[%s2 + $0x70] sm:$0xff]
        %v254 = vld [vmem:[%s2 + $0x78] sm:$0xff]
        %v255 = vld [vmem:[%s2 + $0x80] sm:$0xff]
        %v256 = vld [vmem:[%s2 + $0x88] sm:$0xff]
        %v257 = vld [vmem:[%s2 + $0x90] sm:$0xff]
        %v258 = vld [vmem:[%s2 + $0x98] sm:$0xff]
        %v259 = vld [vmem:[%s2 + $0xa0] sm:$0xff]
        %v260 = vld [vmem:[%s2 + $0xa8] sm:$0xff]
        %v261 = vld [vmem:[%s2 + $0xb0] sm:$0xff]
        %v262 = vld [vmem:[%s2 + $0xb8] sm:$0xff]
        %v263 = vld [vmem:[%s2 + $0xc0] sm:$0xff]
        %v264 = vld [vmem:[%s2 + $0xc8] sm:$0xff]
        %v265 = vld [vmem:[%s2 + $0xd0] sm:$0xff]
        %v266 = vld [vmem:[%s2 + $0xd8] sm:$0xff]
        %v267 = vld [vmem:[%s2 + $0xe0] sm:$0xff]
        %v268 = vld [vmem:[%s2 + $0xe8] sm:$0xff]
        %v269 = vld [vmem:[%s2 + $0xf0] sm:$0xff]
        %v270 = vld [vmem:[%s2 + $0xf8] sm:$0xff]
        %v271 = vld [vmem:[%s2 + $0x100] sm:$0xff]
        %v272 = vld [vmem:[%s2 + $0x108] sm:$0xff]
        %v273 = vld [vmem:[%s2 + $0x110] sm:$0xff]
        %v274 = vld [vmem:[%s2 + $0x118] sm:$0xff]
        %v275 = vld [vmem:[%s2 + $0x120] sm:$0xf]
        %v276 = vld [vmem:[%s2 + $0x128] sm:$0xf]
        %v277 = vld [vmem:[%s2 + $0x130] sm:$0xf]
        %v278 = vld [vmem:[%s2 + $0x138] sm:$0xf]
        %vm279 = vcmask 621568
        %v281 = vsel %vm279, %v235, 0
        %v284 = vsel %vm279, %v236, 0
        %vm286 = vcmask 1043456
        %v288 = vsel %vm286, %v275, 0
        %v291 = vsel %vm286, %v276, 0
        %v294 = vsel %vm286, %v277, 0
        %v297 = vsel %vm286, %v278, 0
        %299 = vmatprep.subr.mxu0 0.0
        %300 = vmatpush1.msra.mxu0 0.0
        %301 = vmatprep.subr.mxu0 0.0
        %302 = vmatpush1.msra.mxu0 0.0
        %303 = vmatprep.subr.mxu0 0.0
        %304 = vmatpush1.msra.mxu0 0.0
        %305 = vmatprep.subr.mxu0 0.0
        %306 = vmatpush1.msra.mxu0 0.0
        %307 = vmatprep.subr.mxu0 0.0
        %308 = vmatpush1.msra.mxu0 0.0
        %309 = vmatprep.subr.mxu0 0.0
        %310 = vmatpush1.msra.mxu0 0.0
        %311 = vmatprep.subr.mxu0 %v291
        %312 = vmatpush1.msra.mxu0 %v288
        %313 = vmatprep.subr.mxu0 %v272
        %314 = vmatpush1.msra.mxu0 %v271
        %315 = vmatprep.subr.mxu0 %v268
        %316 = vmatpush1.msra.mxu0 %v267
        %317 = vmatprep.subr.mxu0 %v264
        %318 = vmatpush1.msra.mxu0 %v263
        %319 = vmatprep.subr.mxu0 %v260
        %320 = vmatpush1.msra.mxu0 %v259
        %321 = vmatprep.subr.mxu0 %v256
        %322 = vmatpush1.msra.mxu0 %v255
        %323 = vmatprep.subr.mxu0 %v252
        %324 = vmatpush1.msra.mxu0 %v251
        %325 = vmatprep.subr.mxu0 %v248
        %326 = vmatpush1.msra.mxu0 %v247
        %327 = vmatprep.subr.mxu0 %v244
        %328 = vmatpush1.msra.mxu0 %v243
        %329 = vmatprep.subr.mxu0 %v240
        %330 = vmatpush1.msra.mxu0 %v239
        %331 = vmatprep.subr.mxu0 0.0
        %332 = vmatpush2.msra.mxu0 0.0
        %333 = vmatprep.subr.mxu0 0.0
        %334 = vmatpush2.msra.mxu0 0.0
        %335 = vmatprep.subr.mxu0 0.0
        %336 = vmatpush2.msra.mxu0 0.0
        %337 = vmatprep.subr.mxu0 0.0
        %338 = vmatpush2.msra.mxu0 0.0
        %339 = vmatprep.subr.mxu0 0.0
        %340 = vmatpush2.msra.mxu0 0.0
        %341 = vmatprep.subr.mxu0 0.0
        %342 = vmatpush2.msra.mxu0 0.0
        %343 = vmatprep.subr.mxu0 0.0
        %344 = vmatpush2.msra.mxu0 0.0
        %345 = vmatprep.subr.mxu0 0.0
        %346 = vmatpush2.msra.mxu0 0.0
        %347 = vmatprep.subr.mxu0 0.0
        %348 = vmatpush2.msra.mxu0 0.0
        %349 = vmatprep.subr.mxu0 0.0
        %350 = vmatpush2.msra.mxu0 0.0
        %351 = vmatprep.subr.mxu0 0.0
        %352 = vmatpush2.msra.mxu0 0.0
        %353 = vmatprep.subr.mxu0 0.0
        %354 = vmatpush2.msra.mxu0 0.0
        %355 = vmatprep.subr.mxu0 0.0
        %356 = vmatpush2.msra.mxu0 0.0
        %357 = vmatprep.subr.mxu0 0.0
        %358 = vmatpush2.msra.mxu0 0.0
        %359 = vmatprep.subr.mxu0 0.0
        %360 = vmatpush2.msra.mxu0 0.0
        %361 = vmatprep.subr.mxu0 0.0
        %362 = vmatpush2.msra.mxu0 0.0
        %363 = vmatprep.mubr.f32.mxu0 0.0
        %364 = vmatmul.mubr.f32.gmra.mxu0 %v281
        %v365 = vpop.f32.mrf.mxu0
        %v366 = vadd.f32 0.0, %v365
        %v367 = vpop.f32.mrf.mxu0
        %v368 = vadd.f32 0.0, %v367
        %369 = vmatprep.mubr.f32.mxu0 0.0
        %370 = vmatmul.mubr.f32.gmra.mxu0 %v284
        %v371 = vpop.f32.mrf.mxu0
        %v372 = vadd.f32 0.0, %v371
        %v373 = vpop.f32.mrf.mxu0
        %v374 = vadd.f32 0.0, %v373
        %375 = vdwg.mxu0
        %376 = vmatprep.subr.mxu0 0.0
        %377 = vmatpush1.msra.mxu0 0.0
        %378 = vmatprep.subr.mxu0 0.0
        %379 = vmatpush1.msra.mxu0 0.0
        %380 = vmatprep.subr.mxu0 0.0
        %381 = vmatpush1.msra.mxu0 0.0
        %382 = vmatprep.subr.mxu0 0.0
        %383 = vmatpush1.msra.mxu0 0.0
        %384 = vmatprep.subr.mxu0 0.0
        %385 = vmatpush1.msra.mxu0 0.0
        %386 = vmatprep.subr.mxu0 0.0
        %387 = vmatpush1.msra.mxu0 0.0
        %388 = vmatprep.subr.mxu0 %v297
        %389 = vmatpush1.msra.mxu0 %v294
        %390 = vmatprep.subr.mxu0 %v274
        %391 = vmatpush1.msra.mxu0 %v273
        %392 = vmatprep.subr.mxu0 %v270
        %393 = vmatpush1.msra.mxu0 %v269
        %394 = vmatprep.subr.mxu0 %v266
        %395 = vmatpush1.msra.mxu0 %v265
        %396 = vmatprep.subr.mxu0 %v262
        %397 = vmatpush1.msra.mxu0 %v261
        %398 = vmatprep.subr.mxu0 %v258
        %399 = vmatpush1.msra.mxu0 %v257
        %400 = vmatprep.subr.mxu0 %v254
        %401 = vmatpush1.msra.mxu0 %v253
        %402 = vmatprep.subr.mxu0 %v250
        %403 = vmatpush1.msra.mxu0 %v249
        %404 = vmatprep.subr.mxu0 %v246
        %405 = vmatpush1.msra.mxu0 %v245
        %406 = vmatprep.subr.mxu0 %v242
        %407 = vmatpush1.msra.mxu0 %v241
        %408 = vmatprep.subr.mxu0 0.0
        %409 = vmatpush2.msra.mxu0 0.0
        %410 = vmatprep.subr.mxu0 0.0
        %411 = vmatpush2.msra.mxu0 0.0
        %412 = vmatprep.subr.mxu0 0.0
        %413 = vmatpush2.msra.mxu0 0.0
        %414 = vmatprep.subr.mxu0 0.0
        %415 = vmatpush2.msra.mxu0 0.0
        %416 = vmatprep.subr.mxu0 0.0
        %417 = vmatpush2.msra.mxu0 0.0
        %418 = vmatprep.subr.mxu0 0.0
        %419 = vmatpush2.msra.mxu0 0.0
        %420 = vmatprep.subr.mxu0 0.0
        %421 = vmatpush2.msra.mxu0 0.0
        %422 = vmatprep.subr.mxu0 0.0
        %423 = vmatpush2.msra.mxu0 0.0
        %424 = vmatprep.subr.mxu0 0.0
        %425 = vmatpush2.msra.mxu0 0.0
        %426 = vmatprep.subr.mxu0 0.0
        %427 = vmatpush2.msra.mxu0 0.0
        %428 = vmatprep.subr.mxu0 0.0
        %429 = vmatpush2.msra.mxu0 0.0
        %430 = vmatprep.subr.mxu0 0.0
        %431 = vmatpush2.msra.mxu0 0.0
        %432 = vmatprep.subr.mxu0 0.0
        %433 = vmatpush2.msra.mxu0 0.0
        %434 = vmatprep.subr.mxu0 0.0
        %435 = vmatpush2.msra.mxu0 0.0
        %436 = vmatprep.subr.mxu0 0.0
        %437 = vmatpush2.msra.mxu0 0.0
        %438 = vmatprep.subr.mxu0 0.0
        %439 = vmatpush2.msra.mxu0 0.0
        %440 = vmatprep.mubr.f32.mxu0 0.0
        %441 = vmatmul.mubr.f32.gmra.mxu0 %v281
        %v442 = vpop.f32.mrf.mxu0
        %v443 = vadd.f32 0.0, %v442
        %v444 = vpop.f32.mrf.mxu0
        %v445 = vadd.f32 0.0, %v444
        %446 = vmatprep.mubr.f32.mxu0 0.0
        %447 = vmatmul.mubr.f32.gmra.mxu0 %v284
        %v448 = vpop.f32.mrf.mxu0
        %v449 = vadd.f32 0.0, %v448
        %v450 = vpop.f32.mrf.mxu0
        %v451 = vadd.f32 0.0, %v450
        %452 = vdwg.mxu0
        %v453 = vmax.f32 %v366, 0.0
        %v454 = vmax.f32 %v368, 0.0
        %v455 = vmax.f32 %v443, 0.0
        %v456 = vmax.f32 %v445, 0.0
        %v457 = vmax.f32 %v372, 0.0
        %v458 = vmax.f32 %v374, 0.0
        %v459 = vmax.f32 %v449, 0.0
        %v460 = vmax.f32 %v451, 0.0
        %462 = vset.pattern.permute.xlu0 0
        %463 = vperm.xlu0 %462, %v233
        %v464 = vpop.permute.xlu0 %463
        %467 = vset.pattern.permute.xlu0 0
        %468 = vperm.xlu0 %467, %v234
        %v469 = vpop.permute.xlu0 %468
        %v471 = vmul.f32 %v453, %v464
        %v472 = vmul.f32 %v454, %v464
        %v473 = vmul.f32 %v455, %v464
        %v474 = vmul.f32 %v456, %v464
        %v475 = vmul.f32 %v457, %v469
        %v476 = vmul.f32 %v458, %v469
        %v477 = vmul.f32 %v459, %v469
        %v478 = vmul.f32 %v460, %v469
        %v479 = vld [vmem:[#allocation2] sm:$0xff]
        %v480 = vld [vmem:[#allocation2 + $0x8] sm:$0xff]
        %v481 = vld [vmem:[#allocation2 + $0x10] sm:$0xff]
        %v482 = vld [vmem:[#allocation2 + $0x18] sm:$0xff]
        %v483 = vld [vmem:[#allocation2 + $0x20] sm:$0xff]
        %v484 = vld [vmem:[#allocation2 + $0x28] sm:$0xff]
        %v485 = vld [vmem:[#allocation2 + $0x30] sm:$0xff]
        %v486 = vld [vmem:[#allocation2 + $0x38] sm:$0xff]
        %v487 = vld [vmem:[#allocation2 + $0x40] sm:$0xff]
        %v488 = vld [vmem:[#allocation2 + $0x48] sm:$0xff]
        %v489 = vld [vmem:[#allocation2 + $0x50] sm:$0xff]
        %v490 = vld [vmem:[#allocation2 + $0x58] sm:$0xff]
        %v491 = vld [vmem:[#allocation2 + $0x60] sm:$0xff]
        %v492 = vld [vmem:[#allocation2 + $0x68] sm:$0xff]
        %v493 = vld [vmem:[#allocation2 + $0x70] sm:$0xff]
        %v494 = vld [vmem:[#allocation2 + $0x78] sm:$0xff]
        %v495 = vld [vmem:[#allocation2 + $0x80] sm:$0xff]
        %v496 = vld [vmem:[#allocation2 + $0x88] sm:$0xff]
        %v497 = vld [vmem:[#allocation2 + $0x90] sm:$0xff]
        %v498 = vld [vmem:[#allocation2 + $0x98] sm:$0xff]
        %v499 = vld [vmem:[#allocation2 + $0xa0] sm:$0xff]
        %v500 = vld [vmem:[#allocation2 + $0xa8] sm:$0xff]
        %v501 = vld [vmem:[#allocation2 + $0xb0] sm:$0xff]
        %v502 = vld [vmem:[#allocation2 + $0xb8] sm:$0xff]
        %v503 = vld [vmem:[#allocation2 + $0xc0] sm:$0xff]
        %v504 = vld [vmem:[#allocation2 + $0xc8] sm:$0xff]
        %v505 = vld [vmem:[#allocation2 + $0xd0] sm:$0xff]
        %v506 = vld [vmem:[#allocation2 + $0xd8] sm:$0xff]
        %v507 = vld [vmem:[#allocation2 + $0xe0] sm:$0xff]
        %v508 = vld [vmem:[#allocation2 + $0xe8] sm:$0xff]
        %v509 = vld [vmem:[#allocation2 + $0xf0] sm:$0xff]
        %v510 = vld [vmem:[#allocation2 + $0xf8] sm:$0xff]
        %v511 = vld [vmem:[#allocation2 + $0x100] sm:$0xff]
        %v512 = vld [vmem:[#allocation2 + $0x108] sm:$0xff]
        %v513 = vld [vmem:[#allocation2 + $0x110] sm:$0xff]
        %v514 = vld [vmem:[#allocation2 + $0x118] sm:$0xff]
        %v515 = vld [vmem:[#allocation2 + $0x120] sm:$0xff]
        %v516 = vld [vmem:[#allocation2 + $0x128] sm:$0xff]
        %v517 = vld [vmem:[#allocation2 + $0x130] sm:$0xff]
        %v518 = vld [vmem:[#allocation2 + $0x138] sm:$0xff]
        %v519 = vld [vmem:[#allocation2 + $0x140] sm:$0xff]
        %v520 = vld [vmem:[#allocation2 + $0x148] sm:$0xff]
        %v521 = vld [vmem:[#allocation2 + $0x150] sm:$0xff]
        %v522 = vld [vmem:[#allocation2 + $0x158] sm:$0xff]
        %v523 = vld [vmem:[#allocation2 + $0x160] sm:$0xff]
        %v524 = vld [vmem:[#allocation2 + $0x168] sm:$0xff]
        %v525 = vld [vmem:[#allocation2 + $0x170] sm:$0xff]
        %v526 = vld [vmem:[#allocation2 + $0x178] sm:$0xff]
        %v527 = vld [vmem:[#allocation2 + $0x180] sm:$0xff]
        %v528 = vld [vmem:[#allocation2 + $0x188] sm:$0xff]
        %v529 = vld [vmem:[#allocation2 + $0x190] sm:$0x1]
        %v530 = vlaneseq
        %v531 = vshrl.u32 %v530, 7
        %v532 = vsub.s32 0, %v531
        %v533 = vrot.slane %v529, %v532
        %vm534 = vcmask 130048
        %v536 = vsel %vm534, %v474, 0
        %v539 = vsel %vm534, %v478, 0
        %541 = vmatprep.subr.mxu0 0.0
        %542 = vmatpush1.msra.mxu0 %v494
        %543 = vmatprep.subr.mxu0 0.0
        %544 = vmatpush1.msra.mxu0 %v493
        %545 = vmatprep.subr.mxu0 0.0
        %546 = vmatpush1.msra.mxu0 %v492
        %547 = vmatprep.subr.mxu0 0.0
        %548 = vmatpush1.msra.mxu0 %v491
        %549 = vmatprep.subr.mxu0 0.0
        %550 = vmatpush1.msra.mxu0 %v490
        %551 = vmatprep.subr.mxu0 0.0
        %552 = vmatpush1.msra.mxu0 %v489
        %553 = vmatprep.subr.mxu0 0.0
        %554 = vmatpush1.msra.mxu0 %v488
        %555 = vmatprep.subr.mxu0 0.0
        %556 = vmatpush1.msra.mxu0 %v487
        %557 = vmatprep.subr.mxu0 0.0
        %558 = vmatpush1.msra.mxu0 %v486
        %559 = vmatprep.subr.mxu0 0.0
        %560 = vmatpush1.msra.mxu0 %v485
        %561 = vmatprep.subr.mxu0 0.0
        %562 = vmatpush1.msra.mxu0 %v484
        %563 = vmatprep.subr.mxu0 0.0
        %564 = vmatpush1.msra.mxu0 %v483
        %565 = vmatprep.subr.mxu0 0.0
        %566 = vmatpush1.msra.mxu0 %v482
        %567 = vmatprep.subr.mxu0 0.0
        %568 = vmatpush1.msra.mxu0 %v481
        %569 = vmatprep.subr.mxu0 0.0
        %570 = vmatpush1.msra.mxu0 %v480
        %571 = vmatprep.subr.mxu0 0.0
        %572 = vmatpush1.msra.mxu0 %v479
        %573 = vmatprep.subr.mxu0 0.0
        %574 = vmatpush2.msra.mxu0 %v510
        %575 = vmatprep.subr.mxu0 0.0
        %576 = vmatpush2.msra.mxu0 %v509
        %577 = vmatprep.subr.mxu0 0.0
        %578 = vmatpush2.msra.mxu0 %v508
        %579 = vmatprep.subr.mxu0 0.0
        %580 = vmatpush2.msra.mxu0 %v507
        %581 = vmatprep.subr.mxu0 0.0
        %582 = vmatpush2.msra.mxu0 %v506
        %583 = vmatprep.subr.mxu0 0.0
        %584 = vmatpush2.msra.mxu0 %v505
        %585 = vmatprep.subr.mxu0 0.0
        %586 = vmatpush2.msra.mxu0 %v504
        %587 = vmatprep.subr.mxu0 0.0
        %588 = vmatpush2.msra.mxu0 %v503
        %589 = vmatprep.subr.mxu0 0.0
        %590 = vmatpush2.msra.mxu0 %v502
        %591 = vmatprep.subr.mxu0 0.0
        %592 = vmatpush2.msra.mxu0 %v501
        %593 = vmatprep.subr.mxu0 0.0
        %594 = vmatpush2.msra.mxu0 %v500
        %595 = vmatprep.subr.mxu0 0.0
        %596 = vmatpush2.msra.mxu0 %v499
        %597 = vmatprep.subr.mxu0 0.0
        %598 = vmatpush2.msra.mxu0 %v498
        %599 = vmatprep.subr.mxu0 0.0
        %600 = vmatpush2.msra.mxu0 %v497
        %601 = vmatprep.subr.mxu0 0.0
        %602 = vmatpush2.msra.mxu0 %v496
        %603 = vmatprep.subr.mxu0 0.0
        %604 = vmatpush2.msra.mxu0 %v495
        %605 = vmatprep.mubr.f32.mxu0 %v472
        %606 = vmatmul.mubr.f32.gmra.mxu0 %v471
        %v607 = vpop.f32.mrf.mxu0
        %v608 = vadd.f32 %v533, %v607
        %v609 = vpop.f32.mrf.mxu0
        %610 = vmatprep.mubr.f32.mxu0 %v476
        %611 = vmatmul.mubr.f32.gmra.mxu0 %v475
        %v612 = vpop.f32.mrf.mxu0
        %v613 = vadd.f32 %v533, %v612
        %v614 = vpop.f32.mrf.mxu0
        %615 = vdwg.mxu0
        %616 = vmatprep.subr.mxu0 0.0
        %617 = vmatpush1.msra.mxu0 %v526
        %618 = vmatprep.subr.mxu0 0.0
        %619 = vmatpush1.msra.mxu0 %v525
        %620 = vmatprep.subr.mxu0 0.0
        %621 = vmatpush1.msra.mxu0 %v524
        %622 = vmatprep.subr.mxu0 0.0
        %623 = vmatpush1.msra.mxu0 %v523
        %624 = vmatprep.subr.mxu0 0.0
        %625 = vmatpush1.msra.mxu0 %v522
        %626 = vmatprep.subr.mxu0 0.0
        %627 = vmatpush1.msra.mxu0 %v521
        %628 = vmatprep.subr.mxu0 0.0
        %629 = vmatpush1.msra.mxu0 %v520
        %630 = vmatprep.subr.mxu0 0.0
        %631 = vmatpush1.msra.mxu0 %v519
        %632 = vmatprep.subr.mxu0 0.0
        %633 = vmatpush1.msra.mxu0 %v518
        %634 = vmatprep.subr.mxu0 0.0
        %635 = vmatpush1.msra.mxu0 %v517
        %636 = vmatprep.subr.mxu0 0.0
        %637 = vmatpush1.msra.mxu0 %v516
        %638 = vmatprep.subr.mxu0 0.0
        %639 = vmatpush1.msra.mxu0 %v515
        %640 = vmatprep.subr.mxu0 0.0
        %641 = vmatpush1.msra.mxu0 %v514
        %642 = vmatprep.subr.mxu0 0.0
        %643 = vmatpush1.msra.mxu0 %v513
        %644 = vmatprep.subr.mxu0 0.0
        %645 = vmatpush1.msra.mxu0 %v512
        %646 = vmatprep.subr.mxu0 0.0
        %647 = vmatpush1.msra.mxu0 %v511
        %648 = vmatprep.subr.mxu0 0.0
        %649 = vmatpush2.msra.mxu0 0.0
        %650 = vmatprep.subr.mxu0 0.0
        %651 = vmatpush2.msra.mxu0 0.0
        %652 = vmatprep.subr.mxu0 0.0
        %653 = vmatpush2.msra.mxu0 0.0
        %654 = vmatprep.subr.mxu0 0.0
        %655 = vmatpush2.msra.mxu0 0.0
        %656 = vmatprep.subr.mxu0 0.0
        %657 = vmatpush2.msra.mxu0 0.0
        %658 = vmatprep.subr.mxu0 0.0
        %659 = vmatpush2.msra.mxu0 0.0
        %660 = vmatprep.subr.mxu0 0.0
        %661 = vmatpush2.msra.mxu0 0.0
        %662 = vmatprep.subr.mxu0 0.0
        %663 = vmatpush2.msra.mxu0 0.0
        %664 = vmatprep.subr.mxu0 0.0
        %665 = vmatpush2.msra.mxu0 0.0
        %666 = vmatprep.subr.mxu0 0.0
        %667 = vmatpush2.msra.mxu0 0.0
        %668 = vmatprep.subr.mxu0 0.0
        %669 = vmatpush2.msra.mxu0 0.0
        %670 = vmatprep.subr.mxu0 0.0
        %671 = vmatpush2.msra.mxu0 0.0
        %672 = vmatprep.subr.mxu0 0.0
        %673 = vmatpush2.msra.mxu0 0.0
        %674 = vmatprep.subr.mxu0 0.0
        %675 = vmatpush2.msra.mxu0 0.0
        %676 = vmatprep.subr.mxu0 0.0
        %677 = vmatpush2.msra.mxu0 %v528
        %678 = vmatprep.subr.mxu0 0.0
        %679 = vmatpush2.msra.mxu0 %v527
        %680 = vmatprep.mubr.f32.mxu0 %v536
        %681 = vmatmul.mubr.f32.gmra.mxu0 %v473
        %v682 = vpop.f32.mrf.mxu0
        %v683 = vadd.f32 %v608, %v682
        %v684 = vpop.f32.mrf.mxu0
        %685 = vmatprep.mubr.f32.mxu0 %v539
        %686 = vmatmul.mubr.f32.gmra.mxu0 %v477
        %v687 = vpop.f32.mrf.mxu0
        %v688 = vadd.f32 %v613, %v687
        %v689 = vpop.f32.mrf.mxu0
        %690 = vdwg.mxu0
        %v691 = vld [vmem:[#allocation2 + $0x198] sm:$0xff]
        %v692 = vld [vmem:[#allocation2 + $0x1a0] sm:$0xff]
        %v693 = vld [vmem:[#allocation2 + $0x1a8] sm:$0xff]
        %v694 = vld [vmem:[#allocation2 + $0x1b0] sm:$0xff]
        %v695 = vld [vmem:[#allocation2 + $0x1b8] sm:$0xff]
        %v696 = vld [vmem:[#allocation2 + $0x1c0] sm:$0xff]
        %v697 = vld [vmem:[#allocation2 + $0x1c8] sm:$0xff]
        %v698 = vld [vmem:[#allocation2 + $0x1d0] sm:$0xff]
        %v699 = vld [vmem:[#allocation2 + $0x1d8] sm:$0xff]
        %v700 = vld [vmem:[#allocation2 + $0x1e0] sm:$0xff]
        %v701 = vld [vmem:[#allocation2 + $0x1e8] sm:$0xff]
        %v702 = vld [vmem:[#allocation2 + $0x1f0] sm:$0xff]
        %v703 = vld [vmem:[#allocation2 + $0x1f8] sm:$0xff]
        %v704 = vld [vmem:[#allocation2 + $0x200] sm:$0xff]
        %v705 = vld [vmem:[#allocation2 + $0x208] sm:$0xff]
        %v706 = vld [vmem:[#allocation2 + $0x210] sm:$0xff]
        %v707 = vld [vmem:[#allocation2 + $0x218] sm:$0xff]
        %v708 = vld [vmem:[#allocation2 + $0x220] sm:$0xff]
        %v709 = vld [vmem:[#allocation2 + $0x228] sm:$0xff]
        %v710 = vld [vmem:[#allocation2 + $0x230] sm:$0xff]
        %v711 = vld [vmem:[#allocation2 + $0x238] sm:$0xff]
        %v712 = vld [vmem:[#allocation2 + $0x240] sm:$0xff]
        %v713 = vld [vmem:[#allocation2 + $0x248] sm:$0xff]
        %v714 = vld [vmem:[#allocation2 + $0x250] sm:$0xff]
        %v715 = vld [vmem:[#allocation2 + $0x258] sm:$0xff]
        %v716 = vld [vmem:[#allocation2 + $0x260] sm:$0xff]
        %v717 = vld [vmem:[#allocation2 + $0x268] sm:$0xff]
        %v718 = vld [vmem:[#allocation2 + $0x270] sm:$0xff]
        %v719 = vld [vmem:[#allocation2 + $0x278] sm:$0xff]
        %v720 = vld [vmem:[#allocation2 + $0x280] sm:$0xff]
        %v721 = vld [vmem:[#allocation2 + $0x288] sm:$0xff]
        %v722 = vld [vmem:[#allocation2 + $0x290] sm:$0xff]
        %v723 = vld [vmem:[#allocation2 + $0x298] sm:$0xff]
        %v724 = vld [vmem:[#allocation2 + $0x2a0] sm:$0xff]
        %v725 = vld [vmem:[#allocation2 + $0x2a8] sm:$0xff]
        %v726 = vld [vmem:[#allocation2 + $0x2b0] sm:$0xff]
        %v727 = vld [vmem:[#allocation2 + $0x2b8] sm:$0xff]
        %v728 = vld [vmem:[#allocation2 + $0x2c0] sm:$0xff]
        %v729 = vld [vmem:[#allocation2 + $0x2c8] sm:$0xff]
        %v730 = vld [vmem:[#allocation2 + $0x2d0] sm:$0xff]
        %v731 = vld [vmem:[#allocation2 + $0x2d8] sm:$0xff]
        %v732 = vld [vmem:[#allocation2 + $0x2e0] sm:$0xff]
        %v733 = vld [vmem:[#allocation2 + $0x2e8] sm:$0xff]
        %v734 = vld [vmem:[#allocation2 + $0x2f0] sm:$0xff]
        %v735 = vld [vmem:[#allocation2 + $0x2f8] sm:$0xff]
        %v736 = vld [vmem:[#allocation2 + $0x300] sm:$0xff]
        %v737 = vld [vmem:[#allocation2 + $0x308] sm:$0xff]
        %v738 = vld [vmem:[#allocation2 + $0x310] sm:$0xff]
        %v739 = vld [vmem:[#allocation2 + $0x318] sm:$0xff]
        %v740 = vld [vmem:[#allocation2 + $0x320] sm:$0xff]
        %v741 = vld [vmem:[#allocation2 + $0x328] sm:$0x1]
        %v742 = vlaneseq
        %v743 = vshrl.u32 %v742, 7
        %v744 = vsub.s32 0, %v743
        %v745 = vrot.slane %v741, %v744
        %746 = vmatprep.subr.mxu0 0.0
        %747 = vmatpush1.msra.mxu0 %v706
        %748 = vmatprep.subr.mxu0 0.0
        %749 = vmatpush1.msra.mxu0 %v705
        %750 = vmatprep.subr.mxu0 0.0
        %751 = vmatpush1.msra.mxu0 %v704
        %752 = vmatprep.subr.mxu0 0.0
        %753 = vmatpush1.msra.mxu0 %v703
        %754 = vmatprep.subr.mxu0 0.0
        %755 = vmatpush1.msra.mxu0 %v702
        %756 = vmatprep.subr.mxu0 0.0
        %757 = vmatpush1.msra.mxu0 %v701
        %758 = vmatprep.subr.mxu0 0.0
        %759 = vmatpush1.msra.mxu0 %v700
        %760 = vmatprep.subr.mxu0 0.0
        %761 = vmatpush1.msra.mxu0 %v699
        %762 = vmatprep.subr.mxu0 0.0
        %763 = vmatpush1.msra.mxu0 %v698
        %764 = vmatprep.subr.mxu0 0.0
        %765 = vmatpush1.msra.mxu0 %v697
        %766 = vmatprep.subr.mxu0 0.0
        %767 = vmatpush1.msra.mxu0 %v696
        %768 = vmatprep.subr.mxu0 0.0
        %769 = vmatpush1.msra.mxu0 %v695
        %770 = vmatprep.subr.mxu0 0.0
        %771 = vmatpush1.msra.mxu0 %v694
        %772 = vmatprep.subr.mxu0 0.0
        %773 = vmatpush1.msra.mxu0 %v693
        %774 = vmatprep.subr.mxu0 0.0
        %775 = vmatpush1.msra.mxu0 %v692
        %776 = vmatprep.subr.mxu0 0.0
        %777 = vmatpush1.msra.mxu0 %v691
        %778 = vmatprep.subr.mxu0 0.0
        %779 = vmatpush2.msra.mxu0 %v722
        %780 = vmatprep.subr.mxu0 0.0
        %781 = vmatpush2.msra.mxu0 %v721
        %782 = vmatprep.subr.mxu0 0.0
        %783 = vmatpush2.msra.mxu0 %v720
        %784 = vmatprep.subr.mxu0 0.0
        %785 = vmatpush2.msra.mxu0 %v719
        %786 = vmatprep.subr.mxu0 0.0
        %787 = vmatpush2.msra.mxu0 %v718
        %788 = vmatprep.subr.mxu0 0.0
        %789 = vmatpush2.msra.mxu0 %v717
        %790 = vmatprep.subr.mxu0 0.0
        %791 = vmatpush2.msra.mxu0 %v716
        %792 = vmatprep.subr.mxu0 0.0
        %793 = vmatpush2.msra.mxu0 %v715
        %794 = vmatprep.subr.mxu0 0.0
        %795 = vmatpush2.msra.mxu0 %v714
        %796 = vmatprep.subr.mxu0 0.0
        %797 = vmatpush2.msra.mxu0 %v713
        %798 = vmatprep.subr.mxu0 0.0
        %799 = vmatpush2.msra.mxu0 %v712
        %800 = vmatprep.subr.mxu0 0.0
        %801 = vmatpush2.msra.mxu0 %v711
        %802 = vmatprep.subr.mxu0 0.0
        %803 = vmatpush2.msra.mxu0 %v710
        %804 = vmatprep.subr.mxu0 0.0
        %805 = vmatpush2.msra.mxu0 %v709
        %806 = vmatprep.subr.mxu0 0.0
        %807 = vmatpush2.msra.mxu0 %v708
        %808 = vmatprep.subr.mxu0 0.0
        %809 = vmatpush2.msra.mxu0 %v707
        %810 = vmatprep.mubr.f32.mxu0 %v472
        %811 = vmatmul.mubr.f32.gmra.mxu0 %v471
        %v812 = vpop.f32.mrf.mxu0
        %v813 = vadd.f32 %v745, %v812
        %v814 = vpop.f32.mrf.mxu0
        %815 = vmatprep.mubr.f32.mxu0 %v476
        %816 = vmatmul.mubr.f32.gmra.mxu0 %v475
        %v817 = vpop.f32.mrf.mxu0
        %v818 = vadd.f32 %v745, %v817
        %v819 = vpop.f32.mrf.mxu0
        %820 = vdwg.mxu0
        %821 = vmatprep.subr.mxu0 0.0
        %822 = vmatpush1.msra.mxu0 %v738
        %823 = vmatprep.subr.mxu0 0.0
        %824 = vmatpush1.msra.mxu0 %v737
        %825 = vmatprep.subr.mxu0 0.0
        %826 = vmatpush1.msra.mxu0 %v736
        %827 = vmatprep.subr.mxu0 0.0
        %828 = vmatpush1.msra.mxu0 %v735
        %829 = vmatprep.subr.mxu0 0.0
        %830 = vmatpush1.msra.mxu0 %v734
        %831 = vmatprep.subr.mxu0 0.0
        %832 = vmatpush1.msra.mxu0 %v733
        %833 = vmatprep.subr.mxu0 0.0
        %834 = vmatpush1.msra.mxu0 %v732
        %835 = vmatprep.subr.mxu0 0.0
        %836 = vmatpush1.msra.mxu0 %v731
        %837 = vmatprep.subr.mxu0 0.0
        %838 = vmatpush1.msra.mxu0 %v730
        %839 = vmatprep.subr.mxu0 0.0
        %840 = vmatpush1.msra.mxu0 %v729
        %841 = vmatprep.subr.mxu0 0.0
        %842 = vmatpush1.msra.mxu0 %v728
        %843 = vmatprep.subr.mxu0 0.0
        %844 = vmatpush1.msra.mxu0 %v727
        %845 = vmatprep.subr.mxu0 0.0
        %846 = vmatpush1.msra.mxu0 %v726
        %847 = vmatprep.subr.mxu0 0.0
        %848 = vmatpush1.msra.mxu0 %v725
        %849 = vmatprep.subr.mxu0 0.0
        %850 = vmatpush1.msra.mxu0 %v724
        %851 = vmatprep.subr.mxu0 0.0
        %852 = vmatpush1.msra.mxu0 %v723
        %853 = vmatprep.subr.mxu0 0.0
        %854 = vmatpush2.msra.mxu0 0.0
        %855 = vmatprep.subr.mxu0 0.0
        %856 = vmatpush2.msra.mxu0 0.0
        %857 = vmatprep.subr.mxu0 0.0
        %858 = vmatpush2.msra.mxu0 0.0
        %859 = vmatprep.subr.mxu0 0.0
        %860 = vmatpush2.msra.mxu0 0.0
        %861 = vmatprep.subr.mxu0 0.0
        %862 = vmatpush2.msra.mxu0 0.0
        %863 = vmatprep.subr.mxu0 0.0
        %864 = vmatpush2.msra.mxu0 0.0
        %865 = vmatprep.subr.mxu0 0.0
        %866 = vmatpush2.msra.mxu0 0.0
        %867 = vmatprep.subr.mxu0 0.0
        %868 = vmatpush2.msra.mxu0 0.0
        %869 = vmatprep.subr.mxu0 0.0
        %870 = vmatpush2.msra.mxu0 0.0
        %871 = vmatprep.subr.mxu0 0.0
        %872 = vmatpush2.msra.mxu0 0.0
        %873 = vmatprep.subr.mxu0 0.0
        %874 = vmatpush2.msra.mxu0 0.0
        %875 = vmatprep.subr.mxu0 0.0
        %876 = vmatpush2.msra.mxu0 0.0
        %877 = vmatprep.subr.mxu0 0.0
        %878 = vmatpush2.msra.mxu0 0.0
        %879 = vmatprep.subr.mxu0 0.0
        %880 = vmatpush2.msra.mxu0 0.0
        %881 = vmatprep.subr.mxu0 0.0
        %882 = vmatpush2.msra.mxu0 %v740
        %883 = vmatprep.subr.mxu0 0.0
        %884 = vmatpush2.msra.mxu0 %v739
        %885 = vmatprep.mubr.f32.mxu0 %v536
        %886 = vmatmul.mubr.f32.gmra.mxu0 %v473
        %v887 = vpop.f32.mrf.mxu0
        %v888 = vadd.f32 %v813, %v887
        %v889 = vpop.f32.mrf.mxu0
        %890 = vmatprep.mubr.f32.mxu0 %v539
        %891 = vmatmul.mubr.f32.gmra.mxu0 %v477
        %v892 = vpop.f32.mrf.mxu0
        %v893 = vadd.f32 %v818, %v892
        %v894 = vpop.f32.mrf.mxu0
        %895 = vdwg.mxu0
        %896 = vxpose.xlu0.b32.start [1/16] %v888, 128
        %897 = vxpose.xlu0.b32.cont [2/16] %v893, 128
        %898 = vxpose.xlu0.b32.cont [3/16] 0.0, 128
        %899 = vxpose.xlu0.b32.cont [4/16] 0.0, 128
        %900 = vxpose.xlu0.b32.cont [5/16] 0.0, 128
        %901 = vxpose.xlu0.b32.cont [6/16] 0.0, 128
        %902 = vxpose.xlu0.b32.cont [7/16] 0.0, 128
        %903 = vxpose.xlu0.b32.cont [8/16] 0.0, 128
        %904 = vxpose.xlu0.b32.cont [9/16] 0.0, 128
        %905 = vxpose.xlu0.b32.cont [10/16] 0.0, 128
        %906 = vxpose.xlu0.b32.cont [11/16] 0.0, 128
        %907 = vxpose.xlu0.b32.cont [12/16] 0.0, 128
        %908 = vxpose.xlu0.b32.cont [13/16] 0.0, 128
        %909 = vxpose.xlu0.b32.cont [14/16] 0.0, 128
        %910 = vxpose.xlu0.b32.cont [15/16] 0.0, 128
        %911 = vxpose.xlu0.b32.end [16/16] 0.0, 128
        %v912 = vpop.trf.xlu0
        %v913 = vpop.trf.xlu0
        %v914 = vpop.trf.xlu0
        %v915 = vpop.trf.xlu0
        %v916 = vpop.trf.xlu0
        %v917 = vpop.trf.xlu0
        %v918 = vpop.trf.xlu0
        %v919 = vpop.trf.xlu0
        %v920 = vpop.trf.xlu0
        %v921 = vpop.trf.xlu0
        %v922 = vpop.trf.xlu0
        %v923 = vpop.trf.xlu0
        %v924 = vpop.trf.xlu0
        %v925 = vpop.trf.xlu0
        %v926 = vpop.trf.xlu0
        %v927 = vpop.trf.xlu0
        %v929 = vsel %vm534, %v912, 0
        %v932 = vsel %vm534, %v913, 0
        %934 = vmatprep.subr.mxu0 0.0
        %935 = vmatpush1.msra.mxu0 0.0
        %936 = vmatprep.subr.mxu0 0.0
        %937 = vmatpush1.msra.mxu0 0.0
        %938 = vmatprep.subr.mxu0 0.0
        %939 = vmatpush1.msra.mxu0 0.0
        %940 = vmatprep.subr.mxu0 0.0
        %941 = vmatpush1.msra.mxu0 0.0
        %942 = vmatprep.subr.mxu0 0.0
        %943 = vmatpush1.msra.mxu0 0.0
        %944 = vmatprep.subr.mxu0 0.0
        %945 = vmatpush1.msra.mxu0 0.0
        %946 = vmatprep.subr.mxu0 0.0
        %947 = vmatpush1.msra.mxu0 0.0
        %948 = vmatprep.subr.mxu0 0.0
        %949 = vmatpush1.msra.mxu0 0.0
        %950 = vmatprep.subr.mxu0 0.0
        %951 = vmatpush1.msra.mxu0 0.0
        %952 = vmatprep.subr.mxu0 0.0
        %953 = vmatpush1.msra.mxu0 0.0
        %954 = vmatprep.subr.mxu0 0.0
        %955 = vmatpush1.msra.mxu0 0.0
        %956 = vmatprep.subr.mxu0 0.0
        %957 = vmatpush1.msra.mxu0 0.0
        %958 = vmatprep.subr.mxu0 0.0
        %959 = vmatpush1.msra.mxu0 0.0
        %960 = vmatprep.subr.mxu0 0.0
        %961 = vmatpush1.msra.mxu0 0.0
        %962 = vmatprep.subr.mxu0 0.0
        %963 = vmatpush1.msra.mxu0 %v688
        %964 = vmatprep.subr.mxu0 0.0
        %965 = vmatpush1.msra.mxu0 %v683
        %966 = vmatprep.subr.mxu0 0.0
        %967 = vmatpush2.msra.mxu0 0.0
        %968 = vmatprep.subr.mxu0 0.0
        %969 = vmatpush2.msra.mxu0 0.0
        %970 = vmatprep.subr.mxu0 0.0
        %971 = vmatpush2.msra.mxu0 0.0
        %972 = vmatprep.subr.mxu0 0.0
        %973 = vmatpush2.msra.mxu0 0.0
        %974 = vmatprep.subr.mxu0 0.0
        %975 = vmatpush2.msra.mxu0 0.0
        %976 = vmatprep.subr.mxu0 0.0
        %977 = vmatpush2.msra.mxu0 0.0
        %978 = vmatprep.subr.mxu0 0.0
        %979 = vmatpush2.msra.mxu0 0.0
        %980 = vmatprep.subr.mxu0 0.0
        %981 = vmatpush2.msra.mxu0 0.0
        %982 = vmatprep.subr.mxu0 0.0
        %983 = vmatpush2.msra.mxu0 0.0
        %984 = vmatprep.subr.mxu0 0.0
        %985 = vmatpush2.msra.mxu0 0.0
        %986 = vmatprep.subr.mxu0 0.0
        %987 = vmatpush2.msra.mxu0 0.0
        %988 = vmatprep.subr.mxu0 0.0
        %989 = vmatpush2.msra.mxu0 0.0
        %990 = vmatprep.subr.mxu0 0.0
        %991 = vmatpush2.msra.mxu0 0.0
        %992 = vmatprep.subr.mxu0 0.0
        %993 = vmatpush2.msra.mxu0 0.0
        %994 = vmatprep.subr.mxu0 0.0
        %995 = vmatpush2.msra.mxu0 0.0
        %996 = vmatprep.subr.mxu0 0.0
        %997 = vmatpush2.msra.mxu0 0.0
        %998 = vmatprep.mubr.f32.mxu0 0.0
        %999 = vmatmul.mubr.f32.gmra.mxu0 %v929
        %v1000 = vpop.f32.mrf.mxu0
        %v1001 = vadd.f32 0.0, %v1000
        %v1002 = vpop.f32.mrf.mxu0
        %1003 = vmatprep.mubr.f32.mxu0 0.0
        %1004 = vmatmul.mubr.f32.gmra.mxu0 %v932
        %v1005 = vpop.f32.mrf.mxu0
        %v1006 = vadd.f32 0.0, %v1005
        %v1007 = vpop.f32.mrf.mxu0
        %1008 = vdwg.mxu0
        %v1009 = vmul.f32 %v1001, 0.0625
        %v1010 = vmul.f32 %v1006, 0.0625
        %v1011 = vsel %vm534, %v1009, -inf
        %1012 = vmax.xlane.f32.xlu0 %v1011
        %v1013 = vpop.xlane.xlu0 %1012
        %v1014 = vsel %vm534, %v1010, -inf
        %1015 = vmax.xlane.f32.xlu0 %v1014
        %v1016 = vpop.xlane.xlu0 %1015
        %v1017 = vsub.f32 %v1009, %v1013
        %v1018 = vsub.f32 %v1010, %v1016
        %v1019 = vmul.f32 %v1017, 1.442695
        %v1020 = vpow.pop %v1019
        %v1021 = vmul.f32 %v1018, 1.442695
        %v1022 = vpow.pop %v1021
        %v1023 = vsel %vm534, %v1020, 0.0
        %1024 = vadd.xlane.f32.xlu0 %v1023
        %v1025 = vpop.xlane.xlu0 %1024
        %v1026 = vsel %vm534, %v1022, 0.0
        %1027 = vadd.xlane.f32.xlu0 %v1026
        %v1028 = vpop.xlane.xlu0 %1027
        %v1029 = vrcp.pop %v1025
        %v1030 = vmul.f32 %v1020, %v1029
        %v1031 = vrcp.pop %v1028
        %v1032 = vmul.f32 %v1022, %v1031
        %v1034 = vsel %vm534, %v683, 0
        %v1037 = vsel %vm534, %v688, 0
        %v1040 = vsel %vm534, %v1030, 0
        %v1043 = vsel %vm534, %v1032, 0
        %1045 = vmatprep.subr.mxu0 0.0
        %1046 = vmatpush1.xpose.msra.mxu0 0.0
        %1047 = vmatprep.subr.mxu0 0.0
        %1048 = vmatpush1.xpose.msra.mxu0 0.0
        %1049 = vmatprep.subr.mxu0 0.0
        %1050 = vmatpush1.xpose.msra.mxu0 0.0
        %1051 = vmatprep.subr.mxu0 0.0
        %1052 = vmatpush1.xpose.msra.mxu0 0.0
        %1053 = vmatprep.subr.mxu0 0.0
        %1054 = vmatpush1.xpose.msra.mxu0 0.0
        %1055 = vmatprep.subr.mxu0 0.0
        %1056 = vmatpush1.xpose.msra.mxu0 0.0
        %1057 = vmatprep.subr.mxu0 0.0
        %1058 = vmatpush1.xpose.msra.mxu0 0.0
        %1059 = vmatprep.subr.mxu0 0.0
        %1060 = vmatpush1.xpose.msra.mxu0 0.0
        %1061 = vmatprep.subr.mxu0 0.0
        %1062 = vmatpush1.xpose.msra.mxu0 0.0
        %1063 = vmatprep.subr.mxu0 0.0
        %1064 = vmatpush1.xpose.msra.mxu0 0.0
        %1065 = vmatprep.subr.mxu0 0.0
        %1066 = vmatpush1.xpose.msra.mxu0 0.0
        %1067 = vmatprep.subr.mxu0 0.0
        %1068 = vmatpush1.xpose.msra.mxu0 0.0
        %1069 = vmatprep.subr.mxu0 0.0
        %1070 = vmatpush1.xpose.msra.mxu0 0.0
        %1071 = vmatprep.subr.mxu0 0.0
        %1072 = vmatpush1.xpose.msra.mxu0 0.0
        %1073 = vmatprep.subr.mxu0 0.0
        %1074 = vmatpush1.xpose.msra.mxu0 %v1043
        %1075 = vmatprep.subr.mxu0 0.0
        %1076 = vmatpush1.xpose.msra.mxu0 %v1040
        %1077 = vmatprep.subr.mxu0 0.0
        %1078 = vmatpush2.xpose.msra.mxu0 0.0
        %1079 = vmatprep.subr.mxu0 0.0
        %1080 = vmatpush2.xpose.msra.mxu0 0.0
        %1081 = vmatprep.subr.mxu0 0.0
        %1082 = vmatpush2.xpose.msra.mxu0 0.0
        %1083 = vmatprep.subr.mxu0 0.0
        %1084 = vmatpush2.xpose.msra.mxu0 0.0
        %1085 = vmatprep.subr.mxu0 0.0
        %1086 = vmatpush2.xpose.msra.mxu0 0.0
        %1087 = vmatprep.subr.mxu0 0.0
        %1088 = vmatpush2.xpose.msra.mxu0 0.0
        %1089 = vmatprep.subr.mxu0 0.0
        %1090 = vmatpush2.xpose.msra.mxu0 0.0
        %1091 = vmatprep.subr.mxu0 0.0
        %1092 = vmatpush2.xpose.msra.mxu0 0.0
        %1093 = vmatprep.subr.mxu0 0.0
        %1094 = vmatpush2.xpose.msra.mxu0 0.0
        %1095 = vmatprep.subr.mxu0 0.0
        %1096 = vmatpush2.xpose.msra.mxu0 0.0
        %1097 = vmatprep.subr.mxu0 0.0
        %1098 = vmatpush2.xpose.msra.mxu0 0.0
        %1099 = vmatprep.subr.mxu0 0.0
        %1100 = vmatpush2.xpose.msra.mxu0 0.0
        %1101 = vmatprep.subr.mxu0 0.0
        %1102 = vmatpush2.xpose.msra.mxu0 0.0
        %1103 = vmatprep.subr.mxu0 0.0
        %1104 = vmatpush2.xpose.msra.mxu0 0.0
        %1105 = vmatprep.subr.mxu0 0.0
        %1106 = vmatpush2.xpose.msra.mxu0 0.0
        %1107 = vmatprep.subr.mxu0 0.0
        %1108 = vmatpush2.xpose.msra.mxu0 0.0
        %1109 = vmatprep.mubr.f32.mxu0 0.0
        %1110 = vmatmul.mubr.f32.gmra.mxu0 %v1034
        %v1111 = vpop.f32.mrf.mxu0
        %v1112 = vadd.f32 %v683, %v1111
        %v1113 = vpop.f32.mrf.mxu0
        %1114 = vmatprep.mubr.f32.mxu0 0.0
        %1115 = vmatmul.mubr.f32.gmra.mxu0 %v1037
        %v1116 = vpop.f32.mrf.mxu0
        %v1117 = vadd.f32 %v688, %v1116
        %v1118 = vpop.f32.mrf.mxu0
        %1119 = vdwg.mxu0
        %v1120 = vld [vmem:[#allocation2 + $0x330] sm:$0xff]
        %v1121 = vld [vmem:[#allocation2 + $0x338] sm:$0xff]
        %v1122 = vld [vmem:[#allocation2 + $0x340] sm:$0x1]
        %v1123 = vlaneseq
        %v1124 = vshrl.u32 %v1123, 7
        %v1125 = vsub.s32 0, %v1124
        %v1126 = vrot.slane %v1122, %v1125
        %v1128 = vsel %vm534, %v1112, 0
        %v1131 = vsel %vm534, %v1117, 0
        %1133 = vmatprep.subr.mxu0 0.0
        %1134 = vmatpush1.msra.mxu0 0.0
        %1135 = vmatprep.subr.mxu0 0.0
        %1136 = vmatpush1.msra.mxu0 0.0
        %1137 = vmatprep.subr.mxu0 0.0
        %1138 = vmatpush1.msra.mxu0 0.0
        %1139 = vmatprep.subr.mxu0 0.0
        %1140 = vmatpush1.msra.mxu0 0.0
        %1141 = vmatprep.subr.mxu0 0.0
        %1142 = vmatpush1.msra.mxu0 0.0
        %1143 = vmatprep.subr.mxu0 0.0
        %1144 = vmatpush1.msra.mxu0 0.0
        %1145 = vmatprep.subr.mxu0 0.0
        %1146 = vmatpush1.msra.mxu0 0.0
        %1147 = vmatprep.subr.mxu0 0.0
        %1148 = vmatpush1.msra.mxu0 0.0
        %1149 = vmatprep.subr.mxu0 0.0
        %1150 = vmatpush1.msra.mxu0 0.0
        %1151 = vmatprep.subr.mxu0 0.0
        %1152 = vmatpush1.msra.mxu0 0.0
        %1153 = vmatprep.subr.mxu0 0.0
        %1154 = vmatpush1.msra.mxu0 0.0
        %1155 = vmatprep.subr.mxu0 0.0
        %1156 = vmatpush1.msra.mxu0 0.0
        %1157 = vmatprep.subr.mxu0 0.0
        %1158 = vmatpush1.msra.mxu0 0.0
        %1159 = vmatprep.subr.mxu0 0.0
        %1160 = vmatpush1.msra.mxu0 0.0
        %1161 = vmatprep.subr.mxu0 0.0
        %1162 = vmatpush1.msra.mxu0 %v1121
        %1163 = vmatprep.subr.mxu0 0.0
        %1164 = vmatpush1.msra.mxu0 %v1120
        %1165 = vmatprep.subr.mxu0 0.0
        %1166 = vmatpush2.msra.mxu0 0.0
        %1167 = vmatprep.subr.mxu0 0.0
        %1168 = vmatpush2.msra.mxu0 0.0
        %1169 = vmatprep.subr.mxu0 0.0
        %1170 = vmatpush2.msra.mxu0 0.0
        %1171 = vmatprep.subr.mxu0 0.0
        %1172 = vmatpush2.msra.mxu0 0.0
        %1173 = vmatprep.subr.mxu0 0.0
        %1174 = vmatpush2.msra.mxu0 0.0
        %1175 = vmatprep.subr.mxu0 0.0
        %1176 = vmatpush2.msra.mxu0 0.0
        %1177 = vmatprep.subr.mxu0 0.0
        %1178 = vmatpush2.msra.mxu0 0.0
        %1179 = vmatprep.subr.mxu0 0.0
        %1180 = vmatpush2.msra.mxu0 0.0
        %1181 = vmatprep.subr.mxu0 0.0
        %1182 = vmatpush2.msra.mxu0 0.0
        %1183 = vmatprep.subr.mxu0 0.0
        %1184 = vmatpush2.msra.mxu0 0.0
        %1185 = vmatprep.subr.mxu0 0.0
        %1186 = vmatpush2.msra.mxu0 0.0
        %1187 = vmatprep.subr.mxu0 0.0
        %1188 = vmatpush2.msra.mxu0 0.0
        %1189 = vmatprep.subr.mxu0 0.0
        %1190 = vmatpush2.msra.mxu0 0.0
        %1191 = vmatprep.subr.mxu0 0.0
        %1192 = vmatpush2.msra.mxu0 0.0
        %1193 = vmatprep.subr.mxu0 0.0
        %1194 = vmatpush2.msra.mxu0 0.0
        %1195 = vmatprep.subr.mxu0 0.0
        %1196 = vmatpush2.msra.mxu0 0.0
        %1197 = vmatprep.mubr.f32.mxu0 0.0
        %1198 = vmatmul.mubr.f32.gmra.mxu0 %v1128
        %v1199 = vpop.f32.mrf.mxu0
        %v1200 = vadd.f32 %v1126, %v1199
        %v1201 = vpop.f32.mrf.mxu0
        %1202 = vmatprep.mubr.f32.mxu0 0.0
        %1203 = vmatmul.mubr.f32.gmra.mxu0 %v1131
        %v1204 = vpop.f32.mrf.mxu0
        %v1205 = vadd.f32 %v1126, %v1204
        %v1206 = vpop.f32.mrf.mxu0
        %1207 = vdwg.mxu0
        %v1208 = vmul.f32 %v1200, 0.5
        %v1209 = vmul.f32 %v1205, 0.5
        %v1210 = vmul.f32 %v1200, 0.70710677
        %v1211 = vmul.f32 %v1205, 0.70710677
        %vm1212 = vcmp.ge.f32.partialorder %v1210, 0.0
        %vm1213 = vcmp.ge.f32.partialorder %v1211, 0.0
        %v1214 = vsel %vm1212, 1.0, -1.0
        %v1215 = vsel %vm1213, 1.0, -1.0
        %v1216 = vand.u32 2147483647, %v1210
        %v1217 = vand.u32 2147483647, %v1211
        %v1218 = vmul.f32 %v1216, 0.3275911
        %v1219 = vmul.f32 %v1217, 0.3275911
        %v1220 = vadd.f32 %v1218, 1.0
        %v1221 = vadd.f32 %v1219, 1.0
        %v1222 = vrcp.pop %v1220
        %v1223 = vmul.f32 1.0, %v1222
        %v1224 = vrcp.pop %v1221
        %v1225 = vmul.f32 1.0, %v1224
        %v1226 = vmul.f32 %v1223, 1.0614054
        %v1227 = vmul.f32 %v1225, 1.0614054
        %v1228 = vadd.f32 %v1226, -1.4531521
        %v1229 = vadd.f32 %v1227, -1.4531521
        %v1230 = vmul.f32 %v1228, %v1223
        %v1231 = vmul.f32 %v1229, %v1225
        %v1232 = vadd.f32 %v1230, 1.4214138
        %v1233 = vadd.f32 %v1231, 1.4214138
        %v1234 = vmul.f32 %v1232, %v1223
        %v1235 = vmul.f32 %v1233, %v1225
        %v1236 = vadd.f32 %v1234, -0.28449672
        %v1237 = vadd.f32 %v1235, -0.28449672
        %v1238 = vmul.f32 %v1236, %v1223
        %v1239 = vmul.f32 %v1237, %v1225
        %v1240 = vadd.f32 %v1238, 0.2548296
        %v1241 = vadd.f32 %v1239, 0.2548296
        %v1242 = vmul.f32 %v1240, %v1223
        %v1243 = vmul.f32 %v1241, %v1225
        %v1244 = vsub.f32 0.0, %v1216
        %v1245 = vsub.f32 0.0, %v1217
        %v1246 = vmul.f32 %v1244, %v1216
        %v1247 = vmul.f32 %v1245, %v1217
        %v1248 = vmul.f32 %v1246, 1.442695
        %v1249 = vpow.pop %v1248
        %v1250 = vmul.f32 %v1247, 1.442695
        %v1251 = vpow.pop %v1250
        %v1252 = vmul.f32 %v1242, %v1249
        %v1253 = vmul.f32 %v1243, %v1251
        %v1254 = vsub.f32 1.0, %v1252
        %v1255 = vsub.f32 1.0, %v1253
        %v1256 = vmul.f32 %v1214, %v1254
        %v1257 = vmul.f32 %v1215, %v1255
        %v1258 = vadd.f32 %v1256, 1.0
        %v1259 = vadd.f32 %v1257, 1.0
        %v1260 = vmul.f32 %v1208, %v1258
        %v1261 = vmul.f32 %v1209, %v1259
        %v1262 = vld [vmem:[#allocation2 + $0x348] sm:$0xff]
        %v1263 = vld [vmem:[#allocation2 + $0x350] sm:$0xff]
        %v1264 = vld [vmem:[#allocation2 + $0x358] sm:$0x1]
        %v1265 = vlaneseq
        %v1266 = vshrl.u32 %v1265, 7
        %v1267 = vsub.s32 0, %v1266
        %v1268 = vrot.slane %v1264, %v1267
        %v1270 = vsel %vm534, %v1260, 0
        %v1273 = vsel %vm534, %v1261, 0
        %1275 = vmatprep.subr.mxu0 0.0
        %1276 = vmatpush1.msra.mxu0 0.0
        %1277 = vmatprep.subr.mxu0 0.0
        %1278 = vmatpush1.msra.mxu0 0.0
        %1279 = vmatprep.subr.mxu0 0.0
        %1280 = vmatpush1.msra.mxu0 0.0
        %1281 = vmatprep.subr.mxu0 0.0
        %1282 = vmatpush1.msra.mxu0 0.0
        %1283 = vmatprep.subr.mxu0 0.0
        %1284 = vmatpush1.msra.mxu0 0.0
        %1285 = vmatprep.subr.mxu0 0.0
        %1286 = vmatpush1.msra.mxu0 0.0
        %1287 = vmatprep.subr.mxu0 0.0
        %1288 = vmatpush1.msra.mxu0 0.0
        %1289 = vmatprep.subr.mxu0 0.0
        %1290 = vmatpush1.msra.mxu0 0.0
        %1291 = vmatprep.subr.mxu0 0.0
        %1292 = vmatpush1.msra.mxu0 0.0
        %1293 = vmatprep.subr.mxu0 0.0
        %1294 = vmatpush1.msra.mxu0 0.0
        %1295 = vmatprep.subr.mxu0 0.0
        %1296 = vmatpush1.msra.mxu0 0.0
        %1297 = vmatprep.subr.mxu0 0.0
        %1298 = vmatpush1.msra.mxu0 0.0
        %1299 = vmatprep.subr.mxu0 0.0
        %1300 = vmatpush1.msra.mxu0 0.0
        %1301 = vmatprep.subr.mxu0 0.0
        %1302 = vmatpush1.msra.mxu0 0.0
        %1303 = vmatprep.subr.mxu0 0.0
        %1304 = vmatpush1.msra.mxu0 %v1263
        %1305 = vmatprep.subr.mxu0 0.0
        %1306 = vmatpush1.msra.mxu0 %v1262
        %1307 = vmatprep.subr.mxu0 0.0
        %1308 = vmatpush2.msra.mxu0 0.0
        %1309 = vmatprep.subr.mxu0 0.0
        %1310 = vmatpush2.msra.mxu0 0.0
        %1311 = vmatprep.subr.mxu0 0.0
        %1312 = vmatpush2.msra.mxu0 0.0
        %1313 = vmatprep.subr.mxu0 0.0
        %1314 = vmatpush2.msra.mxu0 0.0
        %1315 = vmatprep.subr.mxu0 0.0
        %1316 = vmatpush2.msra.mxu0 0.0
        %1317 = vmatprep.subr.mxu0 0.0
        %1318 = vmatpush2.msra.mxu0 0.0
        %1319 = vmatprep.subr.mxu0 0.0
        %1320 = vmatpush2.msra.mxu0 0.0
        %1321 = vmatprep.subr.mxu0 0.0
        %1322 = vmatpush2.msra.mxu0 0.0
        %1323 = vmatprep.subr.mxu0 0.0
        %1324 = vmatpush2.msra.mxu0 0.0
        %1325 = vmatprep.subr.mxu0 0.0
        %1326 = vmatpush2.msra.mxu0 0.0
        %1327 = vmatprep.subr.mxu0 0.0
        %1328 = vmatpush2.msra.mxu0 0.0
        %1329 = vmatprep.subr.mxu0 0.0
        %1330 = vmatpush2.msra.mxu0 0.0
        %1331 = vmatprep.subr.mxu0 0.0
        %1332 = vmatpush2.msra.mxu0 0.0
        %1333 = vmatprep.subr.mxu0 0.0
        %1334 = vmatpush2.msra.mxu0 0.0
        %1335 = vmatprep.subr.mxu0 0.0
        %1336 = vmatpush2.msra.mxu0 0.0
        %1337 = vmatprep.subr.mxu0 0.0
        %1338 = vmatpush2.msra.mxu0 0.0
        %1339 = vmatprep.mubr.f32.mxu0 0.0
        %1340 = vmatmul.mubr.f32.gmra.mxu0 %v1270
        %v1341 = vpop.f32.mrf.mxu0
        %v1342 = vadd.f32 %v1268, %v1341
        %v1343 = vpop.f32.mrf.mxu0
        %1344 = vmatprep.mubr.f32.mxu0 0.0
        %1345 = vmatmul.mubr.f32.gmra.mxu0 %v1273
        %v1346 = vpop.f32.mrf.mxu0
        %v1347 = vadd.f32 %v1268, %v1346
        %v1348 = vpop.f32.mrf.mxu0
        %1349 = vdwg.mxu0
        %v1350 = vadd.f32 %v1342, %v683
        %v1351 = vadd.f32 %v1347, %v688
        %v1352 = vmul.f32 %v1350, %v464
        %v1353 = vmul.f32 %v1351, %v469
        %vm1356 = vcmask 1040384
        %v1357 = vrot.slane %v1352, 7
        %v1358 = vrot.slane %v1353, 7
        %v1359 = vsel %vm1356, %v1357, %v1358
        %v1362 = vsel %vm1356, 0.0, %v1357
        %vm1363 = vcmask 1046528
        %v1364 = vrot.slane %v1352, 1
        %v1365 = vrot.slane %v1353, 1
        %v1366 = vsel %vm1363, %v1364, %v1365
        %v1368 = vsel %vm1363, %v1365, 0.0
        %1369 = vrot.lane.b32.xlu0 %v1352, 16
        %v1370 = vpop.permute.xlu0 %1369
        %1371 = vrot.lane.b32.xlu0 %v1353, 16
        %v1372 = vpop.permute.xlu0 %1371
        %1376 = vrot.lane.b32.xlu0 %v1366, 32
        %v1377 = vpop.permute.xlu0 %1376
        %1378 = vrot.lane.b32.xlu0 %v1368, 32
        %v1379 = vpop.permute.xlu0 %1378
        %v1382 = vsel %vm534, %v1362, %v1370
        %v1383 = vsel %vm534, %v1359, %v1372
        %vm1384 = vcmask 261120
        %v1385 = vsel %vm1384, %v1382, %v1377
        %v1386 = vsel %vm1384, %v1383, %v1379
        %v1387 = vld [vmem:[#allocation2 + $0x360] sm:$0xff]
        %v1388 = vld [vmem:[#allocation2 + $0x368] sm:$0xff]
        %v1389 = vld [vmem:[#allocation2 + $0x370] sm:$0xff]
        %v1390 = vld [vmem:[#allocation2 + $0x378] sm:$0xff]
        %v1391 = vld [vmem:[#allocation2 + $0x380] sm:$0xff]
        %v1392 = vld [vmem:[#allocation2 + $0x388] sm:$0xff]
        %v1393 = vld [vmem:[#allocation2 + $0x390] sm:$0x1]
        %v1394 = vlaneseq
        %v1395 = vshrl.u32 %v1394, 7
        %v1396 = vsub.s32 0, %v1395
        %v1397 = vrot.slane %v1393, %v1396
        %vm1398 = vcmask 392192
        %v1400 = vsel %vm1398, %v1385, 0
        %v1403 = vsel %vm1398, %v1386, 0
        %1405 = vmatprep.subr.mxu0 0.0
        %1406 = vmatpush1.msra.mxu0 0.0
        %1407 = vmatprep.subr.mxu0 0.0
        %1408 = vmatpush1.msra.mxu0 0.0
        %1409 = vmatprep.subr.mxu0 0.0
        %1410 = vmatpush1.msra.mxu0 0.0
        %1411 = vmatprep.subr.mxu0 0.0
        %1412 = vmatpush1.msra.mxu0 0.0
        %1413 = vmatprep.subr.mxu0 0.0
        %1414 = vmatpush1.msra.mxu0 0.0
        %1415 = vmatprep.subr.mxu0 0.0
        %1416 = vmatpush1.msra.mxu0 0.0
        %1417 = vmatprep.subr.mxu0 0.0
        %1418 = vmatpush1.msra.mxu0 0.0
        %1419 = vmatprep.subr.mxu0 0.0
        %1420 = vmatpush1.msra.mxu0 0.0
        %1421 = vmatprep.subr.mxu0 0.0
        %1422 = vmatpush1.msra.mxu0 0.0
        %1423 = vmatprep.subr.mxu0 0.0
        %1424 = vmatpush1.msra.mxu0 0.0
        %1425 = vmatprep.subr.mxu0 0.0
        %1426 = vmatpush1.msra.mxu0 %v1392
        %1427 = vmatprep.subr.mxu0 0.0
        %1428 = vmatpush1.msra.mxu0 %v1391
        %1429 = vmatprep.subr.mxu0 0.0
        %1430 = vmatpush1.msra.mxu0 %v1390
        %1431 = vmatprep.subr.mxu0 0.0
        %1432 = vmatpush1.msra.mxu0 %v1389
        %1433 = vmatprep.subr.mxu0 0.0
        %1434 = vmatpush1.msra.mxu0 %v1388
        %1435 = vmatprep.subr.mxu0 0.0
        %1436 = vmatpush1.msra.mxu0 %v1387
        %1437 = vmatprep.subr.mxu0 0.0
        %1438 = vmatpush2.msra.mxu0 0.0
        %1439 = vmatprep.subr.mxu0 0.0
        %1440 = vmatpush2.msra.mxu0 0.0
        %1441 = vmatprep.subr.mxu0 0.0
        %1442 = vmatpush2.msra.mxu0 0.0
        %1443 = vmatprep.subr.mxu0 0.0
        %1444 = vmatpush2.msra.mxu0 0.0
        %1445 = vmatprep.subr.mxu0 0.0
        %1446 = vmatpush2.msra.mxu0 0.0
        %1447 = vmatprep.subr.mxu0 0.0
        %1448 = vmatpush2.msra.mxu0 0.0
        %1449 = vmatprep.subr.mxu0 0.0
        %1450 = vmatpush2.msra.mxu0 0.0
        %1451 = vmatprep.subr.mxu0 0.0
        %1452 = vmatpush2.msra.mxu0 0.0
        %1453 = vmatprep.subr.mxu0 0.0
        %1454 = vmatpush2.msra.mxu0 0.0
        %1455 = vmatprep.subr.mxu0 0.0
        %1456 = vmatpush2.msra.mxu0 0.0
        %1457 = vmatprep.subr.mxu0 0.0
        %1458 = vmatpush2.msra.mxu0 0.0
        %1459 = vmatprep.subr.mxu0 0.0
        %1460 = vmatpush2.msra.mxu0 0.0
        %1461 = vmatprep.subr.mxu0 0.0
        %1462 = vmatpush2.msra.mxu0 0.0
        %1463 = vmatprep.subr.mxu0 0.0
        %1464 = vmatpush2.msra.mxu0 0.0
        %1465 = vmatprep.subr.mxu0 0.0
        %1466 = vmatpush2.msra.mxu0 0.0
        %1467 = vmatprep.subr.mxu0 0.0
        %1468 = vmatpush2.msra.mxu0 0.0
        %1469 = vmatprep.mubr.f32.mxu0 0.0
        %1470 = vmatmul.mubr.f32.gmra.mxu0 %v1400
        %v1471 = vpop.f32.mrf.mxu0
        %v1472 = vadd.f32 %v1397, %v1471
        %v1473 = vpop.f32.mrf.mxu0
        %1474 = vmatprep.mubr.f32.mxu0 0.0
        %1475 = vmatmul.mubr.f32.gmra.mxu0 %v1403
        %v1476 = vpop.f32.mrf.mxu0
        %v1477 = vadd.f32 %v1397, %v1476
        %v1478 = vpop.f32.mrf.mxu0
        %1479 = vdwg.mxu0
        %v1480 = vmax.f32 %v1472, 0.0
        %v1481 = vmax.f32 %v1477, 0.0
        %v1482 = vsel %vm534, %v1480, 0.0
        %v1483 = vsel %vm534, %v1481, 0.0
        %v1484 = vadd.f32 %v1482, %v1483
        %v1485 = vrot.slane %v1484, 4
        %v1486 = vadd.f32 %v1484, %v1485
        %v1487 = vrot.slane %v1486, 2
        %v1488 = vadd.f32 %v1486, %v1487
        %v1489 = vrot.slane %v1488, 1
        %v1490 = vadd.f32 %v1488, %v1489
        %v1491 = vrcp.pop 16.0
        %v1492 = vmul.f32 %v1490, %v1491
        %v1493 = vsub.f32 %v1480, %v1492
        %v1494 = vsub.f32 %v1481, %v1492
        %v1495 = vmul.f32 %v1493, %v1493
        %v1496 = vmul.f32 %v1494, %v1494
        %v1497 = vsel %vm534, %v1495, 0.0
        %v1498 = vsel %vm534, %v1496, 0.0
        %v1499 = vadd.f32 %v1497, %v1498
        %v1500 = vrot.slane %v1499, 4
        %v1501 = vadd.f32 %v1499, %v1500
        %v1502 = vrot.slane %v1501, 2
        %v1503 = vadd.f32 %v1501, %v1502
        %v1504 = vrot.slane %v1503, 1
        %v1505 = vadd.f32 %v1503, %v1504
        %v1506 = vmul.f32 %v1505, %v1491
        %v1507 = vadd.f32 %v1506, 1e-05
        %v1508 = vrsqrt.pop %v1507
        %v1509 = vmul.f32 %v1493, %v1508
        %v1510 = vmul.f32 %v1494, %v1508
        %v1511 = vld [vmem:[#allocation2 + $0x398] sm:$0xff]
        %v1512 = vld [vmem:[#allocation2 + $0x3a0] sm:$0xff]
        %v1513 = vld [vmem:[#allocation2 + $0x3a8] sm:$0x1]
        %v1514 = vlaneseq
        %v1515 = vshrl.u32 %v1514, 7
        %v1516 = vsub.s32 0, %v1515
        %v1517 = vrot.slane %v1513, %v1516
        %v1519 = vsel %vm534, %v1509, 0
        %v1522 = vsel %vm534, %v1510, 0
        %1524 = vmatprep.subr.mxu0 0.0
        %1525 = vmatpush1.msra.mxu0 0.0
        %1526 = vmatprep.subr.mxu0 0.0
        %1527 = vmatpush1.msra.mxu0 0.0
        %1528 = vmatprep.subr.mxu0 0.0
        %1529 = vmatpush1.msra.mxu0 0.0
        %1530 = vmatprep.subr.mxu0 0.0
        %1531 = vmatpush1.msra.mxu0 0.0
        %1532 = vmatprep.subr.mxu0 0.0
        %1533 = vmatpush1.msra.mxu0 0.0
        %1534 = vmatprep.subr.mxu0 0.0
        %1535 = vmatpush1.msra.mxu0 0.0
        %1536 = vmatprep.subr.mxu0 0.0
        %1537 = vmatpush1.msra.mxu0 0.0
        %1538 = vmatprep.subr.mxu0 0.0
        %1539 = vmatpush1.msra.mxu0 0.0
        %1540 = vmatprep.subr.mxu0 0.0
        %1541 = vmatpush1.msra.mxu0 0.0
        %1542 = vmatprep.subr.mxu0 0.0
        %1543 = vmatpush1.msra.mxu0 0.0
        %1544 = vmatprep.subr.mxu0 0.0
        %1545 = vmatpush1.msra.mxu0 0.0
        %1546 = vmatprep.subr.mxu0 0.0
        %1547 = vmatpush1.msra.mxu0 0.0
        %1548 = vmatprep.subr.mxu0 0.0
        %1549 = vmatpush1.msra.mxu0 0.0
        %1550 = vmatprep.subr.mxu0 0.0
        %1551 = vmatpush1.msra.mxu0 0.0
        %1552 = vmatprep.subr.mxu0 0.0
        %1553 = vmatpush1.msra.mxu0 %v1512
        %1554 = vmatprep.subr.mxu0 0.0
        %1555 = vmatpush1.msra.mxu0 %v1511
        %1556 = vmatprep.subr.mxu0 0.0
        %1557 = vmatpush2.msra.mxu0 0.0
        %1558 = vmatprep.subr.mxu0 0.0
        %1559 = vmatpush2.msra.mxu0 0.0
        %1560 = vmatprep.subr.mxu0 0.0
        %1561 = vmatpush2.msra.mxu0 0.0
        %1562 = vmatprep.subr.mxu0 0.0
        %1563 = vmatpush2.msra.mxu0 0.0
        %1564 = vmatprep.subr.mxu0 0.0
        %1565 = vmatpush2.msra.mxu0 0.0
        %1566 = vmatprep.subr.mxu0 0.0
        %1567 = vmatpush2.msra.mxu0 0.0
        %1568 = vmatprep.subr.mxu0 0.0
        %1569 = vmatpush2.msra.mxu0 0.0
        %1570 = vmatprep.subr.mxu0 0.0
        %1571 = vmatpush2.msra.mxu0 0.0
        %1572 = vmatprep.subr.mxu0 0.0
        %1573 = vmatpush2.msra.mxu0 0.0
        %1574 = vmatprep.subr.mxu0 0.0
        %1575 = vmatpush2.msra.mxu0 0.0
        %1576 = vmatprep.subr.mxu0 0.0
        %1577 = vmatpush2.msra.mxu0 0.0
        %1578 = vmatprep.subr.mxu0 0.0
        %1579 = vmatpush2.msra.mxu0 0.0
        %1580 = vmatprep.subr.mxu0 0.0
        %1581 = vmatpush2.msra.mxu0 0.0
        %1582 = vmatprep.subr.mxu0 0.0
        %1583 = vmatpush2.msra.mxu0 0.0
        %1584 = vmatprep.subr.mxu0 0.0
        %1585 = vmatpush2.msra.mxu0 0.0
        %1586 = vmatprep.subr.mxu0 0.0
        %1587 = vmatpush2.msra.mxu0 0.0
        %1588 = vmatprep.mubr.f32.mxu0 0.0
        %1589 = vmatmul.mubr.f32.gmra.mxu0 %v1519
        %v1590 = vpop.f32.mrf.mxu0
        %v1591 = vadd.f32 %v1517, %v1590
        %v1592 = vpop.f32.mrf.mxu0
        %1593 = vmatprep.mubr.f32.mxu0 0.0
        %1594 = vmatmul.mubr.f32.gmra.mxu0 %v1522
        %v1595 = vpop.f32.mrf.mxu0
        %v1596 = vadd.f32 %v1517, %v1595
        %v1597 = vpop.f32.mrf.mxu0
        %1598 = vdwg.mxu0
        %v1599 = vxor.u32 %v1591, 2147483648
        %v1600 = vxor.u32 %v1596, 2147483648
        %v1601 = vmul.f32 %v1599, 1.442695
        %v1602 = vpow.pop %v1601
        %v1603 = vmul.f32 %v1600, 1.442695
        %v1604 = vpow.pop %v1603
        %v1605 = vadd.f32 %v1602, 1.0
        %v1606 = vadd.f32 %v1604, 1.0
        %v1607 = vrcp.pop %v1605
        %v1608 = vmul.f32 1.0, %v1607
        %v1609 = vrcp.pop %v1606
        %v1610 = vmul.f32 1.0, %v1609
        %1613 = vrot.lane.b32.xlu0 %v1591, 96
        %v1614 = vpop.permute.xlu0 %1613
        %1615 = vrot.lane.b32.xlu0 %v1596, 96
        %v1616 = vpop.permute.xlu0 %1615
        %v1619 = vsel %vm534, %v1614, 1.0
        %v1620 = vsel %vm534, %v1616, 1.0
        %1623 = vrot.lane.b32.xlu0 %v1608, 112
        %v1624 = vpop.permute.xlu0 %1623
        %1625 = vrot.lane.b32.xlu0 %v1610, 112
        %v1626 = vpop.permute.xlu0 %1625
        %1629 = vxpose.xlu0.b32.start [1/16] %v1624, 128
        %1630 = vxpose.xlu0.b32.cont [2/16] %v1626, 128
        %1631 = vxpose.xlu0.b32.cont [3/16] 0.0, 128
        %1632 = vxpose.xlu0.b32.cont [4/16] 0.0, 128
        %1633 = vxpose.xlu0.b32.cont [5/16] 0.0, 128
        %1634 = vxpose.xlu0.b32.cont [6/16] 0.0, 128
        %1635 = vxpose.xlu0.b32.cont [7/16] 0.0, 128
        %1636 = vxpose.xlu0.b32.cont [8/16] 0.0, 128
        %1637 = vxpose.xlu0.b32.cont [9/16] 0.0, 128
        %1638 = vxpose.xlu0.b32.cont [10/16] 0.0, 128
        %1639 = vxpose.xlu0.b32.cont [11/16] 0.0, 128
        %1640 = vxpose.xlu0.b32.cont [12/16] 0.0, 128
        %1641 = vxpose.xlu0.b32.cont [13/16] 0.0, 128
        %1642 = vxpose.xlu0.b32.cont [14/16] 0.0, 128
        %1643 = vxpose.xlu0.b32.cont [15/16] 0.0, 128
        %1644 = vxpose.xlu0.b32.end [16/16] 0.0, 128
        %v1645 = vpop.trf.xlu0
        %v1646 = vpop.trf.xlu0
        %v1647 = vpop.trf.xlu0
        %v1648 = vpop.trf.xlu0
        %v1649 = vpop.trf.xlu0
        %v1650 = vpop.trf.xlu0
        %v1651 = vpop.trf.xlu0
        %v1652 = vpop.trf.xlu0
        %v1653 = vpop.trf.xlu0
        %v1654 = vpop.trf.xlu0
        %v1655 = vpop.trf.xlu0
        %v1656 = vpop.trf.xlu0
        %v1657 = vpop.trf.xlu0
        %v1658 = vpop.trf.xlu0
        %v1659 = vpop.trf.xlu0
        %v1660 = vpop.trf.xlu0
        %v1662 = vsel %vm534, %v1645, 0
        %v1665 = vsel %vm534, %v1646, 0
        %1667 = vmatprep.subr.mxu0 0.0
        %1668 = vmatpush1.msra.mxu0 0.0
        %1669 = vmatprep.subr.mxu0 0.0
        %1670 = vmatpush1.msra.mxu0 0.0
        %1671 = vmatprep.subr.mxu0 0.0
        %1672 = vmatpush1.msra.mxu0 0.0
        %1673 = vmatprep.subr.mxu0 0.0
        %1674 = vmatpush1.msra.mxu0 0.0
        %1675 = vmatprep.subr.mxu0 0.0
        %1676 = vmatpush1.msra.mxu0 0.0
        %1677 = vmatprep.subr.mxu0 0.0
        %1678 = vmatpush1.msra.mxu0 0.0
        %1679 = vmatprep.subr.mxu0 0.0
        %1680 = vmatpush1.msra.mxu0 0.0
        %1681 = vmatprep.subr.mxu0 0.0
        %1682 = vmatpush1.msra.mxu0 0.0
        %1683 = vmatprep.subr.mxu0 0.0
        %1684 = vmatpush1.msra.mxu0 0.0
        %1685 = vmatprep.subr.mxu0 0.0
        %1686 = vmatpush1.msra.mxu0 0.0
        %1687 = vmatprep.subr.mxu0 0.0
        %1688 = vmatpush1.msra.mxu0 0.0
        %1689 = vmatprep.subr.mxu0 0.0
        %1690 = vmatpush1.msra.mxu0 0.0
        %1691 = vmatprep.subr.mxu0 0.0
        %1692 = vmatpush1.msra.mxu0 0.0
        %1693 = vmatprep.subr.mxu0 0.0
        %1694 = vmatpush1.msra.mxu0 0.0
        %1695 = vmatprep.subr.mxu0 0.0
        %1696 = vmatpush1.msra.mxu0 %v1620
        %1697 = vmatprep.subr.mxu0 0.0
        %1698 = vmatpush1.msra.mxu0 %v1619
        %1699 = vmatprep.subr.mxu0 0.0
        %1700 = vmatpush2.msra.mxu0 0.0
        %1701 = vmatprep.subr.mxu0 0.0
        %1702 = vmatpush2.msra.mxu0 0.0
        %1703 = vmatprep.subr.mxu0 0.0
        %1704 = vmatpush2.msra.mxu0 0.0
        %1705 = vmatprep.subr.mxu0 0.0
        %1706 = vmatpush2.msra.mxu0 0.0
        %1707 = vmatprep.subr.mxu0 0.0
        %1708 = vmatpush2.msra.mxu0 0.0
        %1709 = vmatprep.subr.mxu0 0.0
        %1710 = vmatpush2.msra.mxu0 0.0
        %1711 = vmatprep.subr.mxu0 0.0
        %1712 = vmatpush2.msra.mxu0 0.0
        %1713 = vmatprep.subr.mxu0 0.0
        %1714 = vmatpush2.msra.mxu0 0.0
        %1715 = vmatprep.subr.mxu0 0.0
        %1716 = vmatpush2.msra.mxu0 0.0
        %1717 = vmatprep.subr.mxu0 0.0
        %1718 = vmatpush2.msra.mxu0 0.0
        %1719 = vmatprep.subr.mxu0 0.0
        %1720 = vmatpush2.msra.mxu0 0.0
        %1721 = vmatprep.subr.mxu0 0.0
        %1722 = vmatpush2.msra.mxu0 0.0
        %1723 = vmatprep.subr.mxu0 0.0
        %1724 = vmatpush2.msra.mxu0 0.0
        %1725 = vmatprep.subr.mxu0 0.0
        %1726 = vmatpush2.msra.mxu0 0.0
        %1727 = vmatprep.subr.mxu0 0.0
        %1728 = vmatpush2.msra.mxu0 0.0
        %1729 = vmatprep.subr.mxu0 0.0
        %1730 = vmatpush2.msra.mxu0 0.0
        %1731 = vmatprep.mubr.f32.mxu0 0.0
        %1732 = vmatmul.mubr.f32.gmra.mxu0 %v1662
        %v1733 = vpop.f32.mrf.mxu0
        %v1734 = vadd.f32 0.0, %v1733
        %v1735 = vpop.f32.mrf.mxu0
        %1736 = vmatprep.mubr.f32.mxu0 0.0
        %1737 = vmatmul.mubr.f32.gmra.mxu0 %v1665
        %v1738 = vpop.f32.mrf.mxu0
        %v1739 = vadd.f32 0.0, %v1738
        %v1740 = vpop.f32.mrf.mxu0
        %1741 = vdwg.mxu0
        %v1742 = vmul.f32 %v1734, %v237
        %v1743 = vmul.f32 %v1739, %v238
        %v1744 = vadd.f32 %v1734, 1e-06
        %v1745 = vadd.f32 %v1739, 1e-06
        %1747 = vset.pattern.permute.xlu0 16
        %1748 = vperm.xlu0 %1747, %v1744
        %v1749 = vpop.permute.xlu0 %1748
        %1752 = vset.pattern.permute.xlu0 16
        %1753 = vperm.xlu0 %1752, %v1745
        %v1754 = vpop.permute.xlu0 %1753
        %v1756 = vmul.f32 %v237, %v1749
        %v1757 = vmul.f32 %v238, %v1754
        %1760 = vrot.lane.b32.xlu0 %v1756, 16
        %v1761 = vpop.permute.xlu0 %1760
        %1762 = vrot.lane.b32.xlu0 %v1757, 16
        %v1763 = vpop.permute.xlu0 %1762
        %v1766 = vsel %vm534, %v1742, %v1761
        %v1767 = vsel %vm534, %v1743, %v1763
        %v1768 = vsel %vm534, %v1608, 0
        %v1770 = vsel %vm534, %v1610, 0
        %1772 = vmatprep.subr.mxu0 0.0
        %1773 = vmatpush1.msra.mxu0 0.0
        %1774 = vmatprep.subr.mxu0 0.0
        %1775 = vmatpush1.msra.mxu0 0.0
        %1776 = vmatprep.subr.mxu0 0.0
        %1777 = vmatpush1.msra.mxu0 0.0
        %1778 = vmatprep.subr.mxu0 0.0
        %1779 = vmatpush1.msra.mxu0 0.0
        %1780 = vmatprep.subr.mxu0 0.0
        %1781 = vmatpush1.msra.mxu0 0.0
        %1782 = vmatprep.subr.mxu0 0.0
        %1783 = vmatpush1.msra.mxu0 0.0
        %1784 = vmatprep.subr.mxu0 0.0
        %1785 = vmatpush1.msra.mxu0 0.0
        %1786 = vmatprep.subr.mxu0 0.0
        %1787 = vmatpush1.msra.mxu0 0.0
        %1788 = vmatprep.subr.mxu0 0.0
        %1789 = vmatpush1.msra.mxu0 0.0
        %1790 = vmatprep.subr.mxu0 0.0
        %1791 = vmatpush1.msra.mxu0 0.0
        %1792 = vmatprep.subr.mxu0 0.0
        %1793 = vmatpush1.msra.mxu0 0.0
        %1794 = vmatprep.subr.mxu0 0.0
        %1795 = vmatpush1.msra.mxu0 0.0
        %1796 = vmatprep.subr.mxu0 0.0
        %1797 = vmatpush1.msra.mxu0 0.0
        %1798 = vmatprep.subr.mxu0 0.0
        %1799 = vmatpush1.msra.mxu0 0.0
        %1800 = vmatprep.subr.mxu0 0.0
        %1801 = vmatpush1.msra.mxu0 %v1767
        %1802 = vmatprep.subr.mxu0 0.0
        %1803 = vmatpush1.msra.mxu0 %v1766
        %1804 = vmatprep.subr.mxu0 0.0
        %1805 = vmatpush2.msra.mxu0 0.0
        %1806 = vmatprep.subr.mxu0 0.0
        %1807 = vmatpush2.msra.mxu0 0.0
        %1808 = vmatprep.subr.mxu0 0.0
        %1809 = vmatpush2.msra.mxu0 0.0
        %1810 = vmatprep.subr.mxu0 0.0
        %1811 = vmatpush2.msra.mxu0 0.0
        %1812 = vmatprep.subr.mxu0 0.0
        %1813 = vmatpush2.msra.mxu0 0.0
        %1814 = vmatprep.subr.mxu0 0.0
        %1815 = vmatpush2.msra.mxu0 0.0
        %1816 = vmatprep.subr.mxu0 0.0
        %1817 = vmatpush2.msra.mxu0 0.0
        %1818 = vmatprep.subr.mxu0 0.0
        %1819 = vmatpush2.msra.mxu0 0.0
        %1820 = vmatprep.subr.mxu0 0.0
        %1821 = vmatpush2.msra.mxu0 0.0
        %1822 = vmatprep.subr.mxu0 0.0
        %1823 = vmatpush2.msra.mxu0 0.0
        %1824 = vmatprep.subr.mxu0 0.0
        %1825 = vmatpush2.msra.mxu0 0.0
        %1826 = vmatprep.subr.mxu0 0.0
        %1827 = vmatpush2.msra.mxu0 0.0
        %1828 = vmatprep.subr.mxu0 0.0
        %1829 = vmatpush2.msra.mxu0 0.0
        %1830 = vmatprep.subr.mxu0 0.0
        %1831 = vmatpush2.msra.mxu0 0.0
        %1832 = vmatprep.subr.mxu0 0.0
        %1833 = vmatpush2.msra.mxu0 0.0
        %1834 = vmatprep.subr.mxu0 0.0
        %1835 = vmatpush2.msra.mxu0 0.0
        %1836 = vmatprep.mubr.f32.mxu0 0.0
        %1837 = vmatmul.mubr.f32.gmra.mxu0 %v1768
        %v1838 = vpop.f32.mrf.mxu0
        %v1839 = vadd.f32 0.0, %v1838
        %v1840 = vpop.f32.mrf.mxu0
        %1841 = vmatprep.mubr.f32.mxu0 0.0
        %1842 = vmatmul.mubr.f32.gmra.mxu0 %v1770
        %v1843 = vpop.f32.mrf.mxu0
        %v1844 = vadd.f32 0.0, %v1843
        %v1845 = vpop.f32.mrf.mxu0
        %1846 = vdwg.mxu0
        %1849 = vrot.lane.b32.xlu0 %v1839, 112
        %v1850 = vpop.permute.xlu0 %1849
        %1851 = vrot.lane.b32.xlu0 %v1844, 112
        %v1852 = vpop.permute.xlu0 %1851
        %v1855 = vrcp.pop %v1850
        %v1856 = vmul.f32 %v1839, %v1855
        %v1857 = vrcp.pop %v1852
        %v1858 = vmul.f32 %v1844, %v1857
        %v1859 = vld [vmem:[#allocation2 + $0x3b0] sm:$0xff]
        %v1860 = vld [vmem:[#allocation2 + $0x3b8] sm:$0xff]
        %v1861 = vld [vmem:[#allocation2 + $0x3c0] sm:$0x1]
        %v1862 = vlaneseq
        %v1863 = vshrl.u32 %v1862, 7
        %v1864 = vsub.s32 0, %v1863
        %v1865 = vrot.slane %v1861, %v1864
        %v1867 = vsel %vm534, %v1856, 0
        %v1870 = vsel %vm534, %v1858, 0
        %1872 = vmatprep.subr.mxu0 0.0
        %1873 = vmatpush1.msra.mxu0 0.0
        %1874 = vmatprep.subr.mxu0 0.0
        %1875 = vmatpush1.msra.mxu0 0.0
        %1876 = vmatprep.subr.mxu0 0.0
        %1877 = vmatpush1.msra.mxu0 0.0
        %1878 = vmatprep.subr.mxu0 0.0
        %1879 = vmatpush1.msra.mxu0 0.0
        %1880 = vmatprep.subr.mxu0 0.0
        %1881 = vmatpush1.msra.mxu0 0.0
        %1882 = vmatprep.subr.mxu0 0.0
        %1883 = vmatpush1.msra.mxu0 0.0
        %1884 = vmatprep.subr.mxu0 0.0
        %1885 = vmatpush1.msra.mxu0 0.0
        %1886 = vmatprep.subr.mxu0 0.0
        %1887 = vmatpush1.msra.mxu0 0.0
        %1888 = vmatprep.subr.mxu0 0.0
        %1889 = vmatpush1.msra.mxu0 0.0
        %1890 = vmatprep.subr.mxu0 0.0
        %1891 = vmatpush1.msra.mxu0 0.0
        %1892 = vmatprep.subr.mxu0 0.0
        %1893 = vmatpush1.msra.mxu0 0.0
        %1894 = vmatprep.subr.mxu0 0.0
        %1895 = vmatpush1.msra.mxu0 0.0
        %1896 = vmatprep.subr.mxu0 0.0
        %1897 = vmatpush1.msra.mxu0 0.0
        %1898 = vmatprep.subr.mxu0 0.0
        %1899 = vmatpush1.msra.mxu0 0.0
        %1900 = vmatprep.subr.mxu0 0.0
        %1901 = vmatpush1.msra.mxu0 %v1860
        %1902 = vmatprep.subr.mxu0 0.0
        %1903 = vmatpush1.msra.mxu0 %v1859
        %1904 = vmatprep.subr.mxu0 0.0
        %1905 = vmatpush2.msra.mxu0 0.0
        %1906 = vmatprep.subr.mxu0 0.0
        %1907 = vmatpush2.msra.mxu0 0.0
        %1908 = vmatprep.subr.mxu0 0.0
        %1909 = vmatpush2.msra.mxu0 0.0
        %1910 = vmatprep.subr.mxu0 0.0
        %1911 = vmatpush2.msra.mxu0 0.0
        %1912 = vmatprep.subr.mxu0 0.0
        %1913 = vmatpush2.msra.mxu0 0.0
        %1914 = vmatprep.subr.mxu0 0.0
        %1915 = vmatpush2.msra.mxu0 0.0
        %1916 = vmatprep.subr.mxu0 0.0
        %1917 = vmatpush2.msra.mxu0 0.0
        %1918 = vmatprep.subr.mxu0 0.0
        %1919 = vmatpush2.msra.mxu0 0.0
        %1920 = vmatprep.subr.mxu0 0.0
        %1921 = vmatpush2.msra.mxu0 0.0
        %1922 = vmatprep.subr.mxu0 0.0
        %1923 = vmatpush2.msra.mxu0 0.0
        %1924 = vmatprep.subr.mxu0 0.0
        %1925 = vmatpush2.msra.mxu0 0.0
        %1926 = vmatprep.subr.mxu0 0.0
        %1927 = vmatpush2.msra.mxu0 0.0
        %1928 = vmatprep.subr.mxu0 0.0
        %1929 = vmatpush2.msra.mxu0 0.0
        %1930 = vmatprep.subr.mxu0 0.0
        %1931 = vmatpush2.msra.mxu0 0.0
        %1932 = vmatprep.subr.mxu0 0.0
        %1933 = vmatpush2.msra.mxu0 0.0
        %1934 = vmatprep.subr.mxu0 0.0
        %1935 = vmatpush2.msra.mxu0 0.0
        %1936 = vmatprep.mubr.f32.mxu0 0.0
        %1937 = vmatmul.mubr.f32.gmra.mxu0 %v1867
        %v1938 = vpop.f32.mrf.mxu0
        %v1939 = vadd.f32 %v1865, %v1938
        %v1940 = vpop.f32.mrf.mxu0
        %1941 = vmatprep.mubr.f32.mxu0 0.0
        %1942 = vmatmul.mubr.f32.gmra.mxu0 %v1870
        %v1943 = vpop.f32.mrf.mxu0
        %v1944 = vadd.f32 %v1865, %v1943
        %v1945 = vpop.f32.mrf.mxu0
        %1946 = vdwg.mxu0
        %v1947 = vmul.f32 %v1939, %v464
        %v1948 = vmul.f32 %v1944, %v469
        %v1949 = vadd.f32 %v1947, %v1480
        %v1950 = vadd.f32 %v1948, %v1481
        %v1951 = vld [vmem:[#allocation2 + $0x3c8] sm:$0xff]
        %v1952 = vld [vmem:[#allocation2 + $0x3d0] sm:$0xff]
        %v1953 = vld [vmem:[#allocation2 + $0x3d8] sm:$0x1]
        %v1954 = vlaneseq
        %v1955 = vshrl.u32 %v1954, 7
        %v1956 = vsub.s32 0, %v1955
        %v1957 = vrot.slane %v1953, %v1956
        %v1959 = vsel %vm534, %v1949, 0
        %v1962 = vsel %vm534, %v1950, 0
        %1964 = vmatprep.subr.mxu0 0.0
        %1965 = vmatpush1.msra.mxu0 0.0
        %1966 = vmatprep.subr.mxu0 0.0
        %1967 = vmatpush1.msra.mxu0 0.0
        %1968 = vmatprep.subr.mxu0 0.0
        %1969 = vmatpush1.msra.mxu0 0.0
        %1970 = vmatprep.subr.mxu0 0.0
        %1971 = vmatpush1.msra.mxu0 0.0
        %1972 = vmatprep.subr.mxu0 0.0
        %1973 = vmatpush1.msra.mxu0 0.0
        %1974 = vmatprep.subr.mxu0 0.0
        %1975 = vmatpush1.msra.mxu0 0.0
        %1976 = vmatprep.subr.mxu0 0.0
        %1977 = vmatpush1.msra.mxu0 0.0
        %1978 = vmatprep.subr.mxu0 0.0
        %1979 = vmatpush1.msra.mxu0 0.0
        %1980 = vmatprep.subr.mxu0 0.0
        %1981 = vmatpush1.msra.mxu0 0.0
        %1982 = vmatprep.subr.mxu0 0.0
        %1983 = vmatpush1.msra.mxu0 0.0
        %1984 = vmatprep.subr.mxu0 0.0
        %1985 = vmatpush1.msra.mxu0 0.0
        %1986 = vmatprep.subr.mxu0 0.0
        %1987 = vmatpush1.msra.mxu0 0.0
        %1988 = vmatprep.subr.mxu0 0.0
        %1989 = vmatpush1.msra.mxu0 0.0
        %1990 = vmatprep.subr.mxu0 0.0
        %1991 = vmatpush1.msra.mxu0 0.0
        %1992 = vmatprep.subr.mxu0 0.0
        %1993 = vmatpush1.msra.mxu0 %v1952
        %1994 = vmatprep.subr.mxu0 0.0
        %1995 = vmatpush1.msra.mxu0 %v1951
        %1996 = vmatprep.subr.mxu0 0.0
        %1997 = vmatpush2.msra.mxu0 0.0
        %1998 = vmatprep.subr.mxu0 0.0
        %1999 = vmatpush2.msra.mxu0 0.0
        %2000 = vmatprep.subr.mxu0 0.0
        %2001 = vmatpush2.msra.mxu0 0.0
        %2002 = vmatprep.subr.mxu0 0.0
        %2003 = vmatpush2.msra.mxu0 0.0
        %2004 = vmatprep.subr.mxu0 0.0
        %2005 = vmatpush2.msra.mxu0 0.0
        %2006 = vmatprep.subr.mxu0 0.0
        %2007 = vmatpush2.msra.mxu0 0.0
        %2008 = vmatprep.subr.mxu0 0.0
        %2009 = vmatpush2.msra.mxu0 0.0
        %2010 = vmatprep.subr.mxu0 0.0
        %2011 = vmatpush2.msra.mxu0 0.0
        %2012 = vmatprep.subr.mxu0 0.0
        %2013 = vmatpush2.msra.mxu0 0.0
        %2014 = vmatprep.subr.mxu0 0.0
        %2015 = vmatpush2.msra.mxu0 0.0
        %2016 = vmatprep.subr.mxu0 0.0
        %2017 = vmatpush2.msra.mxu0 0.0
        %2018 = vmatprep.subr.mxu0 0.0
        %2019 = vmatpush2.msra.mxu0 0.0
        %2020 = vmatprep.subr.mxu0 0.0
        %2021 = vmatpush2.msra.mxu0 0.0
        %2022 = vmatprep.subr.mxu0 0.0
        %2023 = vmatpush2.msra.mxu0 0.0
        %2024 = vmatprep.subr.mxu0 0.0
        %2025 = vmatpush2.msra.mxu0 0.0
        %2026 = vmatprep.subr.mxu0 0.0
        %2027 = vmatpush2.msra.mxu0 0.0
        %2028 = vmatprep.mubr.f32.mxu0 0.0
        %2029 = vmatmul.mubr.f32.gmra.mxu0 %v1959
        %v2030 = vpop.f32.mrf.mxu0
        %v2031 = vadd.f32 %v1957, %v2030
        %v2032 = vpop.f32.mrf.mxu0
        %2033 = vmatprep.mubr.f32.mxu0 0.0
        %2034 = vmatmul.mubr.f32.gmra.mxu0 %v1962
        %v2035 = vpop.f32.mrf.mxu0
        %v2036 = vadd.f32 %v1957, %v2035
        %v2037 = vpop.f32.mrf.mxu0
        %2038 = vdwg.mxu0
        %v2039 = vadd.f32 %v1352, %v2031
        %v2040 = vadd.f32 %v1353, %v2036
        %v2041 = vmul.f32 %v2039, %v464
        %v2042 = vmul.f32 %v2040, %v469
        %vm2045 = vcmask 1041408
        %v2046 = vrot.slane %v2041, 6
        %v2047 = vrot.slane %v2042, 6
        %v2048 = vsel %vm2045, %v2046, %v2047
        %v2051 = vsel %vm2045, 0.0, %v2046
        %vm2052 = vcmask 1045504
        %v2053 = vrot.slane %v2041, 2
        %v2054 = vrot.slane %v2042, 2
        %v2055 = vsel %vm2052, %v2053, %v2054
        %v2057 = vsel %vm2052, %v2054, 0.0
        %2058 = vrot.lane.b32.xlu0 %v2041, 16
        %v2059 = vpop.permute.xlu0 %2058
        %2060 = vrot.lane.b32.xlu0 %v2042, 16
        %v2061 = vpop.permute.xlu0 %2060
        %2065 = vrot.lane.b32.xlu0 %v2055, 32
        %v2066 = vpop.permute.xlu0 %2065
        %2067 = vrot.lane.b32.xlu0 %v2057, 32
        %v2068 = vpop.permute.xlu0 %2067
        %v2071 = vsel %vm534, %v2051, %v2059
        %v2072 = vsel %vm534, %v2048, %v2061
        %v2073 = vsel %vm1384, %v2071, %v2066
        %v2074 = vsel %vm1384, %v2072, %v2068
        %v2075 = vld [vmem:[#allocation2 + $0x3e0] sm:$0xff]
        %v2076 = vld [vmem:[#allocation2 + $0x3e8] sm:$0xff]
        %v2077 = vld [vmem:[#allocation2 + $0x3f0] sm:$0xff]
        %v2078 = vld [vmem:[#allocation2 + $0x3f8] sm:$0xff]
        %v2079 = vld [vmem:[#allocation2 + $0x400] sm:$0xff]
        %v2080 = vld [vmem:[#allocation2 + $0x408] sm:$0xff]
        %v2081 = vld [vmem:[#allocation2 + $0x410] sm:$0x1]
        %v2082 = vlaneseq
        %v2083 = vshrl.u32 %v2082, 7
        %v2084 = vsub.s32 0, %v2083
        %v2085 = vrot.slane %v2081, %v2084
        %v2087 = vsel %vm1398, %v2073, 0
        %v2090 = vsel %vm1398, %v2074, 0
        %2092 = vmatprep.subr.mxu0 0.0
        %2093 = vmatpush1.msra.mxu0 0.0
        %2094 = vmatprep.subr.mxu0 0.0
        %2095 = vmatpush1.msra.mxu0 0.0
        %2096 = vmatprep.subr.mxu0 0.0
        %2097 = vmatpush1.msra.mxu0 0.0
        %2098 = vmatprep.subr.mxu0 0.0
        %2099 = vmatpush1.msra.mxu0 0.0
        %2100 = vmatprep.subr.mxu0 0.0
        %2101 = vmatpush1.msra.mxu0 0.0
        %2102 = vmatprep.subr.mxu0 0.0
        %2103 = vmatpush1.msra.mxu0 0.0
        %2104 = vmatprep.subr.mxu0 0.0
        %2105 = vmatpush1.msra.mxu0 0.0
        %2106 = vmatprep.subr.mxu0 0.0
        %2107 = vmatpush1.msra.mxu0 0.0
        %2108 = vmatprep.subr.mxu0 0.0
        %2109 = vmatpush1.msra.mxu0 0.0
        %2110 = vmatprep.subr.mxu0 0.0
        %2111 = vmatpush1.msra.mxu0 0.0
        %2112 = vmatprep.subr.mxu0 0.0
        %2113 = vmatpush1.msra.mxu0 %v2080
        %2114 = vmatprep.subr.mxu0 0.0
        %2115 = vmatpush1.msra.mxu0 %v2079
        %2116 = vmatprep.subr.mxu0 0.0
        %2117 = vmatpush1.msra.mxu0 %v2078
        %2118 = vmatprep.subr.mxu0 0.0
        %2119 = vmatpush1.msra.mxu0 %v2077
        %2120 = vmatprep.subr.mxu0 0.0
        %2121 = vmatpush1.msra.mxu0 %v2076
        %2122 = vmatprep.subr.mxu0 0.0
        %2123 = vmatpush1.msra.mxu0 %v2075
        %2124 = vmatprep.subr.mxu0 0.0
        %2125 = vmatpush2.msra.mxu0 0.0
        %2126 = vmatprep.subr.mxu0 0.0
        %2127 = vmatpush2.msra.mxu0 0.0
        %2128 = vmatprep.subr.mxu0 0.0
        %2129 = vmatpush2.msra.mxu0 0.0
        %2130 = vmatprep.subr.mxu0 0.0
        %2131 = vmatpush2.msra.mxu0 0.0
        %2132 = vmatprep.subr.mxu0 0.0
        %2133 = vmatpush2.msra.mxu0 0.0
        %2134 = vmatprep.subr.mxu0 0.0
        %2135 = vmatpush2.msra.mxu0 0.0
        %2136 = vmatprep.subr.mxu0 0.0
        %2137 = vmatpush2.msra.mxu0 0.0
        %2138 = vmatprep.subr.mxu0 0.0
        %2139 = vmatpush2.msra.mxu0 0.0
        %2140 = vmatprep.subr.mxu0 0.0
        %2141 = vmatpush2.msra.mxu0 0.0
        %2142 = vmatprep.subr.mxu0 0.0
        %2143 = vmatpush2.msra.mxu0 0.0
        %2144 = vmatprep.subr.mxu0 0.0
        %2145 = vmatpush2.msra.mxu0 0.0
        %2146 = vmatprep.subr.mxu0 0.0
        %2147 = vmatpush2.msra.mxu0 0.0
        %2148 = vmatprep.subr.mxu0 0.0
        %2149 = vmatpush2.msra.mxu0 0.0
        %2150 = vmatprep.subr.mxu0 0.0
        %2151 = vmatpush2.msra.mxu0 0.0
        %2152 = vmatprep.subr.mxu0 0.0
        %2153 = vmatpush2.msra.mxu0 0.0
        %2154 = vmatprep.subr.mxu0 0.0
        %2155 = vmatpush2.msra.mxu0 0.0
        %2156 = vmatprep.mubr.f32.mxu0 0.0
        %2157 = vmatmul.mubr.f32.gmra.mxu0 %v2087
        %v2158 = vpop.f32.mrf.mxu0
        %v2159 = vadd.f32 %v2085, %v2158
        %v2160 = vpop.f32.mrf.mxu0
        %2161 = vmatprep.mubr.f32.mxu0 0.0
        %2162 = vmatmul.mubr.f32.gmra.mxu0 %v2090
        %v2163 = vpop.f32.mrf.mxu0
        %v2164 = vadd.f32 %v2085, %v2163
        %v2165 = vpop.f32.mrf.mxu0
        %2166 = vdwg.mxu0
        %v2167 = vmax.f32 %v2159, 0.0
        %v2168 = vmax.f32 %v2164, 0.0
        %v2169 = vsel %vm534, %v2167, 0.0
        %v2170 = vsel %vm534, %v2168, 0.0
        %v2171 = vadd.f32 %v2169, %v2170
        %v2172 = vrot.slane %v2171, 4
        %v2173 = vadd.f32 %v2171, %v2172
        %v2174 = vrot.slane %v2173, 2
        %v2175 = vadd.f32 %v2173, %v2174
        %v2176 = vrot.slane %v2175, 1
        %v2177 = vadd.f32 %v2175, %v2176
        %v2178 = vmul.f32 %v2177, %v1491
        %v2179 = vsub.f32 %v2167, %v2178
        %v2180 = vsub.f32 %v2168, %v2178
        %v2181 = vmul.f32 %v2179, %v2179
        %v2182 = vmul.f32 %v2180, %v2180
        %v2183 = vsel %vm534, %v2181, 0.0
        %v2184 = vsel %vm534, %v2182, 0.0
        %v2185 = vadd.f32 %v2183, %v2184
        %v2186 = vrot.slane %v2185, 4
        %v2187 = vadd.f32 %v2185, %v2186
        %v2188 = vrot.slane %v2187, 2
        %v2189 = vadd.f32 %v2187, %v2188
        %v2190 = vrot.slane %v2189, 1
        %v2191 = vadd.f32 %v2189, %v2190
        %v2192 = vmul.f32 %v2191, %v1491
        %v2193 = vadd.f32 %v2192, 1e-05
        %v2194 = vrsqrt.pop %v2193
        %v2195 = vmul.f32 %v2179, %v2194
        %v2196 = vmul.f32 %v2180, %v2194
        %v2197 = vld [vmem:[#allocation2 + $0x418] sm:$0xff]
        %v2198 = vld [vmem:[#allocation2 + $0x420] sm:$0xff]
        %v2199 = vld [vmem:[#allocation2 + $0x428] sm:$0x1]
        %v2200 = vlaneseq
        %v2201 = vshrl.u32 %v2200, 7
        %v2202 = vsub.s32 0, %v2201
        %v2203 = vrot.slane %v2199, %v2202
        %v2205 = vsel %vm534, %v2195, 0
        %v2208 = vsel %vm534, %v2196, 0
        %2210 = vmatprep.subr.mxu0 0.0
        %2211 = vmatpush1.msra.mxu0 0.0
        %2212 = vmatprep.subr.mxu0 0.0
        %2213 = vmatpush1.msra.mxu0 0.0
        %2214 = vmatprep.subr.mxu0 0.0
        %2215 = vmatpush1.msra.mxu0 0.0
        %2216 = vmatprep.subr.mxu0 0.0
        %2217 = vmatpush1.msra.mxu0 0.0
        %2218 = vmatprep.subr.mxu0 0.0
        %2219 = vmatpush1.msra.mxu0 0.0
        %2220 = vmatprep.subr.mxu0 0.0
        %2221 = vmatpush1.msra.mxu0 0.0
        %2222 = vmatprep.subr.mxu0 0.0
        %2223 = vmatpush1.msra.mxu0 0.0
        %2224 = vmatprep.subr.mxu0 0.0
        %2225 = vmatpush1.msra.mxu0 0.0
        %2226 = vmatprep.subr.mxu0 0.0
        %2227 = vmatpush1.msra.mxu0 0.0
        %2228 = vmatprep.subr.mxu0 0.0
        %2229 = vmatpush1.msra.mxu0 0.0
        %2230 = vmatprep.subr.mxu0 0.0
        %2231 = vmatpush1.msra.mxu0 0.0
        %2232 = vmatprep.subr.mxu0 0.0
        %2233 = vmatpush1.msra.mxu0 0.0
        %2234 = vmatprep.subr.mxu0 0.0
        %2235 = vmatpush1.msra.mxu0 0.0
        %2236 = vmatprep.subr.mxu0 0.0
        %2237 = vmatpush1.msra.mxu0 0.0
        %2238 = vmatprep.subr.mxu0 0.0
        %2239 = vmatpush1.msra.mxu0 %v2198
        %2240 = vmatprep.subr.mxu0 0.0
        %2241 = vmatpush1.msra.mxu0 %v2197
        %2242 = vmatprep.subr.mxu0 0.0
        %2243 = vmatpush2.msra.mxu0 0.0
        %2244 = vmatprep.subr.mxu0 0.0
        %2245 = vmatpush2.msra.mxu0 0.0
        %2246 = vmatprep.subr.mxu0 0.0
        %2247 = vmatpush2.msra.mxu0 0.0
        %2248 = vmatprep.subr.mxu0 0.0
        %2249 = vmatpush2.msra.mxu0 0.0
        %2250 = vmatprep.subr.mxu0 0.0
        %2251 = vmatpush2.msra.mxu0 0.0
        %2252 = vmatprep.subr.mxu0 0.0
        %2253 = vmatpush2.msra.mxu0 0.0
        %2254 = vmatprep.subr.mxu0 0.0
        %2255 = vmatpush2.msra.mxu0 0.0
        %2256 = vmatprep.subr.mxu0 0.0
        %2257 = vmatpush2.msra.mxu0 0.0
        %2258 = vmatprep.subr.mxu0 0.0
        %2259 = vmatpush2.msra.mxu0 0.0
        %2260 = vmatprep.subr.mxu0 0.0
        %2261 = vmatpush2.msra.mxu0 0.0
        %2262 = vmatprep.subr.mxu0 0.0
        %2263 = vmatpush2.msra.mxu0 0.0
        %2264 = vmatprep.subr.mxu0 0.0
        %2265 = vmatpush2.msra.mxu0 0.0
        %2266 = vmatprep.subr.mxu0 0.0
        %2267 = vmatpush2.msra.mxu0 0.0
        %2268 = vmatprep.subr.mxu0 0.0
        %2269 = vmatpush2.msra.mxu0 0.0
        %2270 = vmatprep.subr.mxu0 0.0
        %2271 = vmatpush2.msra.mxu0 0.0
        %2272 = vmatprep.subr.mxu0 0.0
        %2273 = vmatpush2.msra.mxu0 0.0
        %2274 = vmatprep.mubr.f32.mxu0 0.0
        %2275 = vmatmul.mubr.f32.gmra.mxu0 %v2205
        %v2276 = vpop.f32.mrf.mxu0
        %v2277 = vadd.f32 %v2203, %v2276
        %v2278 = vpop.f32.mrf.mxu0
        %2279 = vmatprep.mubr.f32.mxu0 0.0
        %2280 = vmatmul.mubr.f32.gmra.mxu0 %v2208
        %v2281 = vpop.f32.mrf.mxu0
        %v2282 = vadd.f32 %v2203, %v2281
        %v2283 = vpop.f32.mrf.mxu0
        %2284 = vdwg.mxu0
        %v2285 = vxor.u32 %v2277, 2147483648
        %v2286 = vxor.u32 %v2282, 2147483648
        %v2287 = vmul.f32 %v2285, 1.442695
        %v2288 = vpow.pop %v2287
        %v2289 = vmul.f32 %v2286, 1.442695
        %v2290 = vpow.pop %v2289
        %v2291 = vadd.f32 %v2288, 1.0
        %v2292 = vadd.f32 %v2290, 1.0
        %v2293 = vrcp.pop %v2291
        %v2294 = vmul.f32 1.0, %v2293
        %v2295 = vrcp.pop %v2292
        %v2296 = vmul.f32 1.0, %v2295
        %2299 = vrot.lane.b32.xlu0 %v2277, 96
        %v2300 = vpop.permute.xlu0 %2299
        %2301 = vrot.lane.b32.xlu0 %v2282, 96
        %v2302 = vpop.permute.xlu0 %2301
        %v2305 = vsel %vm534, %v2300, 1.0
        %v2306 = vsel %vm534, %v2302, 1.0
        %2309 = vrot.lane.b32.xlu0 %v2294, 112
        %v2310 = vpop.permute.xlu0 %2309
        %2311 = vrot.lane.b32.xlu0 %v2296, 112
        %v2312 = vpop.permute.xlu0 %2311
        %2315 = vxpose.xlu0.b32.start [1/16] %v2310, 128
        %2316 = vxpose.xlu0.b32.cont [2/16] %v2312, 128
        %2317 = vxpose.xlu0.b32.cont [3/16] 0.0, 128
        %2318 = vxpose.xlu0.b32.cont [4/16] 0.0, 128
        %2319 = vxpose.xlu0.b32.cont [5/16] 0.0, 128
        %2320 = vxpose.xlu0.b32.cont [6/16] 0.0, 128
        %2321 = vxpose.xlu0.b32.cont [7/16] 0.0, 128
        %2322 = vxpose.xlu0.b32.cont [8/16] 0.0, 128
        %2323 = vxpose.xlu0.b32.cont [9/16] 0.0, 128
        %2324 = vxpose.xlu0.b32.cont [10/16] 0.0, 128
        %2325 = vxpose.xlu0.b32.cont [11/16] 0.0, 128
        %2326 = vxpose.xlu0.b32.cont [12/16] 0.0, 128
        %2327 = vxpose.xlu0.b32.cont [13/16] 0.0, 128
        %2328 = vxpose.xlu0.b32.cont [14/16] 0.0, 128
        %2329 = vxpose.xlu0.b32.cont [15/16] 0.0, 128
        %2330 = vxpose.xlu0.b32.end [16/16] 0.0, 128
        %v2331 = vpop.trf.xlu0
        %v2332 = vpop.trf.xlu0
        %v2333 = vpop.trf.xlu0
        %v2334 = vpop.trf.xlu0
        %v2335 = vpop.trf.xlu0
        %v2336 = vpop.trf.xlu0
        %v2337 = vpop.trf.xlu0
        %v2338 = vpop.trf.xlu0
        %v2339 = vpop.trf.xlu0
        %v2340 = vpop.trf.xlu0
        %v2341 = vpop.trf.xlu0
        %v2342 = vpop.trf.xlu0
        %v2343 = vpop.trf.xlu0
        %v2344 = vpop.trf.xlu0
        %v2345 = vpop.trf.xlu0
        %v2346 = vpop.trf.xlu0
        %v2348 = vsel %vm534, %v2331, 0
        %v2351 = vsel %vm534, %v2332, 0
        %2353 = vmatprep.subr.mxu0 0.0
        %2354 = vmatpush1.msra.mxu0 0.0
        %2355 = vmatprep.subr.mxu0 0.0
        %2356 = vmatpush1.msra.mxu0 0.0
        %2357 = vmatprep.subr.mxu0 0.0
        %2358 = vmatpush1.msra.mxu0 0.0
        %2359 = vmatprep.subr.mxu0 0.0
        %2360 = vmatpush1.msra.mxu0 0.0
        %2361 = vmatprep.subr.mxu0 0.0
        %2362 = vmatpush1.msra.mxu0 0.0
        %2363 = vmatprep.subr.mxu0 0.0
        %2364 = vmatpush1.msra.mxu0 0.0
        %2365 = vmatprep.subr.mxu0 0.0
        %2366 = vmatpush1.msra.mxu0 0.0
        %2367 = vmatprep.subr.mxu0 0.0
        %2368 = vmatpush1.msra.mxu0 0.0
        %2369 = vmatprep.subr.mxu0 0.0
        %2370 = vmatpush1.msra.mxu0 0.0
        %2371 = vmatprep.subr.mxu0 0.0
        %2372 = vmatpush1.msra.mxu0 0.0
        %2373 = vmatprep.subr.mxu0 0.0
        %2374 = vmatpush1.msra.mxu0 0.0
        %2375 = vmatprep.subr.mxu0 0.0
        %2376 = vmatpush1.msra.mxu0 0.0
        %2377 = vmatprep.subr.mxu0 0.0
        %2378 = vmatpush1.msra.mxu0 0.0
        %2379 = vmatprep.subr.mxu0 0.0
        %2380 = vmatpush1.msra.mxu0 0.0
        %2381 = vmatprep.subr.mxu0 0.0
        %2382 = vmatpush1.msra.mxu0 %v2306
        %2383 = vmatprep.subr.mxu0 0.0
        %2384 = vmatpush1.msra.mxu0 %v2305
        %2385 = vmatprep.subr.mxu0 0.0
        %2386 = vmatpush2.msra.mxu0 0.0
        %2387 = vmatprep.subr.mxu0 0.0
        %2388 = vmatpush2.msra.mxu0 0.0
        %2389 = vmatprep.subr.mxu0 0.0
        %2390 = vmatpush2.msra.mxu0 0.0
        %2391 = vmatprep.subr.mxu0 0.0
        %2392 = vmatpush2.msra.mxu0 0.0
        %2393 = vmatprep.subr.mxu0 0.0
        %2394 = vmatpush2.msra.mxu0 0.0
        %2395 = vmatprep.subr.mxu0 0.0
        %2396 = vmatpush2.msra.mxu0 0.0
        %2397 = vmatprep.subr.mxu0 0.0
        %2398 = vmatpush2.msra.mxu0 0.0
        %2399 = vmatprep.subr.mxu0 0.0
        %2400 = vmatpush2.msra.mxu0 0.0
        %2401 = vmatprep.subr.mxu0 0.0
        %2402 = vmatpush2.msra.mxu0 0.0
        %2403 = vmatprep.subr.mxu0 0.0
        %2404 = vmatpush2.msra.mxu0 0.0
        %2405 = vmatprep.subr.mxu0 0.0
        %2406 = vmatpush2.msra.mxu0 0.0
        %2407 = vmatprep.subr.mxu0 0.0
        %2408 = vmatpush2.msra.mxu0 0.0
        %2409 = vmatprep.subr.mxu0 0.0
        %2410 = vmatpush2.msra.mxu0 0.0
        %2411 = vmatprep.subr.mxu0 0.0
        %2412 = vmatpush2.msra.mxu0 0.0
        %2413 = vmatprep.subr.mxu0 0.0
        %2414 = vmatpush2.msra.mxu0 0.0
        %2415 = vmatprep.subr.mxu0 0.0
        %2416 = vmatpush2.msra.mxu0 0.0
        %2417 = vmatprep.mubr.f32.mxu0 0.0
        %2418 = vmatmul.mubr.f32.gmra.mxu0 %v2348
        %v2419 = vpop.f32.mrf.mxu0
        %v2420 = vadd.f32 0.0, %v2419
        %v2421 = vpop.f32.mrf.mxu0
        %2422 = vmatprep.mubr.f32.mxu0 0.0
        %2423 = vmatmul.mubr.f32.gmra.mxu0 %v2351
        %v2424 = vpop.f32.mrf.mxu0
        %v2425 = vadd.f32 0.0, %v2424
        %v2426 = vpop.f32.mrf.mxu0
        %2427 = vdwg.mxu0
        %v2428 = vmul.f32 %v2420, %v237
        %v2429 = vmul.f32 %v2425, %v238
        %v2430 = vadd.f32 %v2420, 1e-06
        %v2431 = vadd.f32 %v2425, 1e-06
        %2433 = vset.pattern.permute.xlu0 16
        %2434 = vperm.xlu0 %2433, %v2430
        %v2435 = vpop.permute.xlu0 %2434
        %2438 = vset.pattern.permute.xlu0 16
        %2439 = vperm.xlu0 %2438, %v2431
        %v2440 = vpop.permute.xlu0 %2439
        %v2442 = vmul.f32 %v237, %v2435
        %v2443 = vmul.f32 %v238, %v2440
        %2446 = vrot.lane.b32.xlu0 %v2442, 16
        %v2447 = vpop.permute.xlu0 %2446
        %2448 = vrot.lane.b32.xlu0 %v2443, 16
        %v2449 = vpop.permute.xlu0 %2448
        %v2452 = vsel %vm534, %v2428, %v2447
        %v2453 = vsel %vm534, %v2429, %v2449
        %v2454 = vsel %vm534, %v2294, 0
        %v2456 = vsel %vm534, %v2296, 0
        %2458 = vmatprep.subr.mxu0 0.0
        %2459 = vmatpush1.msra.mxu0 0.0
        %2460 = vmatprep.subr.mxu0 0.0
        %2461 = vmatpush1.msra.mxu0 0.0
        %2462 = vmatprep.subr.mxu0 0.0
        %2463 = vmatpush1.msra.mxu0 0.0
        %2464 = vmatprep.subr.mxu0 0.0
        %2465 = vmatpush1.msra.mxu0 0.0
        %2466 = vmatprep.subr.mxu0 0.0
        %2467 = vmatpush1.msra.mxu0 0.0
        %2468 = vmatprep.subr.mxu0 0.0
        %2469 = vmatpush1.msra.mxu0 0.0
        %2470 = vmatprep.subr.mxu0 0.0
        %2471 = vmatpush1.msra.mxu0 0.0
        %2472 = vmatprep.subr.mxu0 0.0
        %2473 = vmatpush1.msra.mxu0 0.0
        %2474 = vmatprep.subr.mxu0 0.0
        %2475 = vmatpush1.msra.mxu0 0.0
        %2476 = vmatprep.subr.mxu0 0.0
        %2477 = vmatpush1.msra.mxu0 0.0
        %2478 = vmatprep.subr.mxu0 0.0
        %2479 = vmatpush1.msra.mxu0 0.0
        %2480 = vmatprep.subr.mxu0 0.0
        %2481 = vmatpush1.msra.mxu0 0.0
        %2482 = vmatprep.subr.mxu0 0.0
        %2483 = vmatpush1.msra.mxu0 0.0
        %2484 = vmatprep.subr.mxu0 0.0
        %2485 = vmatpush1.msra.mxu0 0.0
        %2486 = vmatprep.subr.mxu0 0.0
        %2487 = vmatpush1.msra.mxu0 %v2453
        %2488 = vmatprep.subr.mxu0 0.0
        %2489 = vmatpush1.msra.mxu0 %v2452
        %2490 = vmatprep.subr.mxu0 0.0
        %2491 = vmatpush2.msra.mxu0 0.0
        %2492 = vmatprep.subr.mxu0 0.0
        %2493 = vmatpush2.msra.mxu0 0.0
        %2494 = vmatprep.subr.mxu0 0.0
        %2495 = vmatpush2.msra.mxu0 0.0
        %2496 = vmatprep.subr.mxu0 0.0
        %2497 = vmatpush2.msra.mxu0 0.0
        %2498 = vmatprep.subr.mxu0 0.0
        %2499 = vmatpush2.msra.mxu0 0.0
        %2500 = vmatprep.subr.mxu0 0.0
        %2501 = vmatpush2.msra.mxu0 0.0
        %2502 = vmatprep.subr.mxu0 0.0
        %2503 = vmatpush2.msra.mxu0 0.0
        %2504 = vmatprep.subr.mxu0 0.0
        %2505 = vmatpush2.msra.mxu0 0.0
        %2506 = vmatprep.subr.mxu0 0.0
        %2507 = vmatpush2.msra.mxu0 0.0
        %2508 = vmatprep.subr.mxu0 0.0
        %2509 = vmatpush2.msra.mxu0 0.0
        %2510 = vmatprep.subr.mxu0 0.0
        %2511 = vmatpush2.msra.mxu0 0.0
        %2512 = vmatprep.subr.mxu0 0.0
        %2513 = vmatpush2.msra.mxu0 0.0
        %2514 = vmatprep.subr.mxu0 0.0
        %2515 = vmatpush2.msra.mxu0 0.0
        %2516 = vmatprep.subr.mxu0 0.0
        %2517 = vmatpush2.msra.mxu0 0.0
        %2518 = vmatprep.subr.mxu0 0.0
        %2519 = vmatpush2.msra.mxu0 0.0
        %2520 = vmatprep.subr.mxu0 0.0
        %2521 = vmatpush2.msra.mxu0 0.0
        %2522 = vmatprep.mubr.f32.mxu0 0.0
        %2523 = vmatmul.mubr.f32.gmra.mxu0 %v2454
        %v2524 = vpop.f32.mrf.mxu0
        %v2525 = vadd.f32 0.0, %v2524
        %v2526 = vpop.f32.mrf.mxu0
        %2527 = vmatprep.mubr.f32.mxu0 0.0
        %2528 = vmatmul.mubr.f32.gmra.mxu0 %v2456
        %v2529 = vpop.f32.mrf.mxu0
        %v2530 = vadd.f32 0.0, %v2529
        %v2531 = vpop.f32.mrf.mxu0
        %2532 = vdwg.mxu0
        %2535 = vrot.lane.b32.xlu0 %v2525, 112
        %v2536 = vpop.permute.xlu0 %2535
        %2537 = vrot.lane.b32.xlu0 %v2530, 112
        %v2538 = vpop.permute.xlu0 %2537
        %v2541 = vrcp.pop %v2536
        %v2542 = vmul.f32 %v2525, %v2541
        %v2543 = vrcp.pop %v2538
        %v2544 = vmul.f32 %v2530, %v2543
        %v2545 = vld [vmem:[#allocation2 + $0x430] sm:$0xff]
        %v2546 = vld [vmem:[#allocation2 + $0x438] sm:$0xff]
        %v2547 = vld [vmem:[#allocation2 + $0x440] sm:$0x1]
        %v2548 = vlaneseq
        %v2549 = vshrl.u32 %v2548, 7
        %v2550 = vsub.s32 0, %v2549
        %v2551 = vrot.slane %v2547, %v2550
        %v2553 = vsel %vm534, %v2542, 0
        %v2556 = vsel %vm534, %v2544, 0
        %2558 = vmatprep.subr.mxu0 0.0
        %2559 = vmatpush1.msra.mxu0 0.0
        %2560 = vmatprep.subr.mxu0 0.0
        %2561 = vmatpush1.msra.mxu0 0.0
        %2562 = vmatprep.subr.mxu0 0.0
        %2563 = vmatpush1.msra.mxu0 0.0
        %2564 = vmatprep.subr.mxu0 0.0
        %2565 = vmatpush1.msra.mxu0 0.0
        %2566 = vmatprep.subr.mxu0 0.0
        %2567 = vmatpush1.msra.mxu0 0.0
        %2568 = vmatprep.subr.mxu0 0.0
        %2569 = vmatpush1.msra.mxu0 0.0
        %2570 = vmatprep.subr.mxu0 0.0
        %2571 = vmatpush1.msra.mxu0 0.0
        %2572 = vmatprep.subr.mxu0 0.0
        %2573 = vmatpush1.msra.mxu0 0.0
        %2574 = vmatprep.subr.mxu0 0.0
        %2575 = vmatpush1.msra.mxu0 0.0
        %2576 = vmatprep.subr.mxu0 0.0
        %2577 = vmatpush1.msra.mxu0 0.0
        %2578 = vmatprep.subr.mxu0 0.0
        %2579 = vmatpush1.msra.mxu0 0.0
        %2580 = vmatprep.subr.mxu0 0.0
        %2581 = vmatpush1.msra.mxu0 0.0
        %2582 = vmatprep.subr.mxu0 0.0
        %2583 = vmatpush1.msra.mxu0 0.0
        %2584 = vmatprep.subr.mxu0 0.0
        %2585 = vmatpush1.msra.mxu0 0.0
        %2586 = vmatprep.subr.mxu0 0.0
        %2587 = vmatpush1.msra.mxu0 %v2546
        %2588 = vmatprep.subr.mxu0 0.0
        %2589 = vmatpush1.msra.mxu0 %v2545
        %2590 = vmatprep.subr.mxu0 0.0
        %2591 = vmatpush2.msra.mxu0 0.0
        %2592 = vmatprep.subr.mxu0 0.0
        %2593 = vmatpush2.msra.mxu0 0.0
        %2594 = vmatprep.subr.mxu0 0.0
        %2595 = vmatpush2.msra.mxu0 0.0
        %2596 = vmatprep.subr.mxu0 0.0
        %2597 = vmatpush2.msra.mxu0 0.0
        %2598 = vmatprep.subr.mxu0 0.0
        %2599 = vmatpush2.msra.mxu0 0.0
        %2600 = vmatprep.subr.mxu0 0.0
        %2601 = vmatpush2.msra.mxu0 0.0
        %2602 = vmatprep.subr.mxu0 0.0
        %2603 = vmatpush2.msra.mxu0 0.0
        %2604 = vmatprep.subr.mxu0 0.0
        %2605 = vmatpush2.msra.mxu0 0.0
        %2606 = vmatprep.subr.mxu0 0.0
        %2607 = vmatpush2.msra.mxu0 0.0
        %2608 = vmatprep.subr.mxu0 0.0
        %2609 = vmatpush2.msra.mxu0 0.0
        %2610 = vmatprep.subr.mxu0 0.0
        %2611 = vmatpush2.msra.mxu0 0.0
        %2612 = vmatprep.subr.mxu0 0.0
        %2613 = vmatpush2.msra.mxu0 0.0
        %2614 = vmatprep.subr.mxu0 0.0
        %2615 = vmatpush2.msra.mxu0 0.0
        %2616 = vmatprep.subr.mxu0 0.0
        %2617 = vmatpush2.msra.mxu0 0.0
        %2618 = vmatprep.subr.mxu0 0.0
        %2619 = vmatpush2.msra.mxu0 0.0
        %2620 = vmatprep.subr.mxu0 0.0
        %2621 = vmatpush2.msra.mxu0 0.0
        %2622 = vmatprep.mubr.f32.mxu0 0.0
        %2623 = vmatmul.mubr.f32.gmra.mxu0 %v2553
        %v2624 = vpop.f32.mrf.mxu0
        %v2625 = vadd.f32 %v2551, %v2624
        %v2626 = vpop.f32.mrf.mxu0
        %2627 = vmatprep.mubr.f32.mxu0 0.0
        %2628 = vmatmul.mubr.f32.gmra.mxu0 %v2556
        %v2629 = vpop.f32.mrf.mxu0
        %v2630 = vadd.f32 %v2551, %v2629
        %v2631 = vpop.f32.mrf.mxu0
        %2632 = vdwg.mxu0
        %v2633 = vmul.f32 %v2625, %v464
        %v2634 = vmul.f32 %v2630, %v469
        %v2635 = vadd.f32 %v2633, %v2167
        %v2636 = vadd.f32 %v2634, %v2168
        %v2637 = vld [vmem:[#allocation2 + $0x448] sm:$0xff]
        %v2638 = vld [vmem:[#allocation2 + $0x450] sm:$0xff]
        %v2639 = vld [vmem:[#allocation2 + $0x458] sm:$0x1]
        %v2640 = vlaneseq
        %v2641 = vshrl.u32 %v2640, 7
        %v2642 = vsub.s32 0, %v2641
        %v2643 = vrot.slane %v2639, %v2642
        %v2645 = vsel %vm534, %v2635, 0
        %v2648 = vsel %vm534, %v2636, 0
        %2650 = vmatprep.subr.mxu0 0.0
        %2651 = vmatpush1.msra.mxu0 0.0
        %2652 = vmatprep.subr.mxu0 0.0
        %2653 = vmatpush1.msra.mxu0 0.0
        %2654 = vmatprep.subr.mxu0 0.0
        %2655 = vmatpush1.msra.mxu0 0.0
        %2656 = vmatprep.subr.mxu0 0.0
        %2657 = vmatpush1.msra.mxu0 0.0
        %2658 = vmatprep.subr.mxu0 0.0
        %2659 = vmatpush1.msra.mxu0 0.0
        %2660 = vmatprep.subr.mxu0 0.0
        %2661 = vmatpush1.msra.mxu0 0.0
        %2662 = vmatprep.subr.mxu0 0.0
        %2663 = vmatpush1.msra.mxu0 0.0
        %2664 = vmatprep.subr.mxu0 0.0
        %2665 = vmatpush1.msra.mxu0 0.0
        %2666 = vmatprep.subr.mxu0 0.0
        %2667 = vmatpush1.msra.mxu0 0.0
        %2668 = vmatprep.subr.mxu0 0.0
        %2669 = vmatpush1.msra.mxu0 0.0
        %2670 = vmatprep.subr.mxu0 0.0
        %2671 = vmatpush1.msra.mxu0 0.0
        %2672 = vmatprep.subr.mxu0 0.0
        %2673 = vmatpush1.msra.mxu0 0.0
        %2674 = vmatprep.subr.mxu0 0.0
        %2675 = vmatpush1.msra.mxu0 0.0
        %2676 = vmatprep.subr.mxu0 0.0
        %2677 = vmatpush1.msra.mxu0 0.0
        %2678 = vmatprep.subr.mxu0 0.0
        %2679 = vmatpush1.msra.mxu0 %v2638
        %2680 = vmatprep.subr.mxu0 0.0
        %2681 = vmatpush1.msra.mxu0 %v2637
        %2682 = vmatprep.subr.mxu0 0.0
        %2683 = vmatpush2.msra.mxu0 0.0
        %2684 = vmatprep.subr.mxu0 0.0
        %2685 = vmatpush2.msra.mxu0 0.0
        %2686 = vmatprep.subr.mxu0 0.0
        %2687 = vmatpush2.msra.mxu0 0.0
        %2688 = vmatprep.subr.mxu0 0.0
        %2689 = vmatpush2.msra.mxu0 0.0
        %2690 = vmatprep.subr.mxu0 0.0
        %2691 = vmatpush2.msra.mxu0 0.0
        %2692 = vmatprep.subr.mxu0 0.0
        %2693 = vmatpush2.msra.mxu0 0.0
        %2694 = vmatprep.subr.mxu0 0.0
        %2695 = vmatpush2.msra.mxu0 0.0
        %2696 = vmatprep.subr.mxu0 0.0
        %2697 = vmatpush2.msra.mxu0 0.0
        %2698 = vmatprep.subr.mxu0 0.0
        %2699 = vmatpush2.msra.mxu0 0.0
        %2700 = vmatprep.subr.mxu0 0.0
        %2701 = vmatpush2.msra.mxu0 0.0
        %2702 = vmatprep.subr.mxu0 0.0
        %2703 = vmatpush2.msra.mxu0 0.0
        %2704 = vmatprep.subr.mxu0 0.0
        %2705 = vmatpush2.msra.mxu0 0.0
        %2706 = vmatprep.subr.mxu0 0.0
        %2707 = vmatpush2.msra.mxu0 0.0
        %2708 = vmatprep.subr.mxu0 0.0
        %2709 = vmatpush2.msra.mxu0 0.0
        %2710 = vmatprep.subr.mxu0 0.0
        %2711 = vmatpush2.msra.mxu0 0.0
        %2712 = vmatprep.subr.mxu0 0.0
        %2713 = vmatpush2.msra.mxu0 0.0
        %2714 = vmatprep.mubr.f32.mxu0 0.0
        %2715 = vmatmul.mubr.f32.gmra.mxu0 %v2645
        %v2716 = vpop.f32.mrf.mxu0
        %v2717 = vadd.f32 %v2643, %v2716
        %v2718 = vpop.f32.mrf.mxu0
        %2719 = vmatprep.mubr.f32.mxu0 0.0
        %2720 = vmatmul.mubr.f32.gmra.mxu0 %v2648
        %v2721 = vpop.f32.mrf.mxu0
        %v2722 = vadd.f32 %v2643, %v2721
        %v2723 = vpop.f32.mrf.mxu0
        %2724 = vdwg.mxu0
        %v2725 = vadd.f32 %v2041, %v2717
        %v2726 = vadd.f32 %v2042, %v2722
        %v2727 = vmul.f32 %v2725, %v464
        %v2728 = vmul.f32 %v2726, %v469
        %v2729 = vld [vmem:[#allocation2 + $0x460] sm:$0xff]
        %v2730 = vld [vmem:[#allocation2 + $0x468] sm:$0xff]
        %v2731 = vld [vmem:[#allocation2 + $0x470] sm:$0x1]
        %v2732 = vlaneseq
        %v2733 = vshrl.u32 %v2732, 7
        %v2734 = vsub.s32 0, %v2733
        %v2735 = vrot.slane %v2731, %v2734
        %v2737 = vsel %vm534, %v2727, 0
        %v2740 = vsel %vm534, %v2728, 0
        %2742 = vmatprep.subr.mxu0 0.0
        %2743 = vmatpush1.msra.mxu0 0.0
        %2744 = vmatprep.subr.mxu0 0.0
        %2745 = vmatpush1.msra.mxu0 0.0
        %2746 = vmatprep.subr.mxu0 0.0
        %2747 = vmatpush1.msra.mxu0 0.0
        %2748 = vmatprep.subr.mxu0 0.0
        %2749 = vmatpush1.msra.mxu0 0.0
        %2750 = vmatprep.subr.mxu0 0.0
        %2751 = vmatpush1.msra.mxu0 0.0
        %2752 = vmatprep.subr.mxu0 0.0
        %2753 = vmatpush1.msra.mxu0 0.0
        %2754 = vmatprep.subr.mxu0 0.0
        %2755 = vmatpush1.msra.mxu0 0.0
        %2756 = vmatprep.subr.mxu0 0.0
        %2757 = vmatpush1.msra.mxu0 0.0
        %2758 = vmatprep.subr.mxu0 0.0
        %2759 = vmatpush1.msra.mxu0 0.0
        %2760 = vmatprep.subr.mxu0 0.0
        %2761 = vmatpush1.msra.mxu0 0.0
        %2762 = vmatprep.subr.mxu0 0.0
        %2763 = vmatpush1.msra.mxu0 0.0
        %2764 = vmatprep.subr.mxu0 0.0
        %2765 = vmatpush1.msra.mxu0 0.0
        %2766 = vmatprep.subr.mxu0 0.0
        %2767 = vmatpush1.msra.mxu0 0.0
        %2768 = vmatprep.subr.mxu0 0.0
        %2769 = vmatpush1.msra.mxu0 0.0
        %2770 = vmatprep.subr.mxu0 0.0
        %2771 = vmatpush1.msra.mxu0 %v2730
        %2772 = vmatprep.subr.mxu0 0.0
        %2773 = vmatpush1.msra.mxu0 %v2729
        %2774 = vmatprep.subr.mxu0 0.0
        %2775 = vmatpush2.msra.mxu0 0.0
        %2776 = vmatprep.subr.mxu0 0.0
        %2777 = vmatpush2.msra.mxu0 0.0
        %2778 = vmatprep.subr.mxu0 0.0
        %2779 = vmatpush2.msra.mxu0 0.0
        %2780 = vmatprep.subr.mxu0 0.0
        %2781 = vmatpush2.msra.mxu0 0.0
        %2782 = vmatprep.subr.mxu0 0.0
        %2783 = vmatpush2.msra.mxu0 0.0
        %2784 = vmatprep.subr.mxu0 0.0
        %2785 = vmatpush2.msra.mxu0 0.0
        %2786 = vmatprep.subr.mxu0 0.0
        %2787 = vmatpush2.msra.mxu0 0.0
        %2788 = vmatprep.subr.mxu0 0.0
        %2789 = vmatpush2.msra.mxu0 0.0
        %2790 = vmatprep.subr.mxu0 0.0
        %2791 = vmatpush2.msra.mxu0 0.0
        %2792 = vmatprep.subr.mxu0 0.0
        %2793 = vmatpush2.msra.mxu0 0.0
        %2794 = vmatprep.subr.mxu0 0.0
        %2795 = vmatpush2.msra.mxu0 0.0
        %2796 = vmatprep.subr.mxu0 0.0
        %2797 = vmatpush2.msra.mxu0 0.0
        %2798 = vmatprep.subr.mxu0 0.0
        %2799 = vmatpush2.msra.mxu0 0.0
        %2800 = vmatprep.subr.mxu0 0.0
        %2801 = vmatpush2.msra.mxu0 0.0
        %2802 = vmatprep.subr.mxu0 0.0
        %2803 = vmatpush2.msra.mxu0 0.0
        %2804 = vmatprep.subr.mxu0 0.0
        %2805 = vmatpush2.msra.mxu0 0.0
        %2806 = vmatprep.mubr.f32.mxu0 0.0
        %2807 = vmatmul.mubr.f32.gmra.mxu0 %v2737
        %v2808 = vpop.f32.mrf.mxu0
        %v2809 = vadd.f32 %v2735, %v2808
        %v2810 = vpop.f32.mrf.mxu0
        %2811 = vmatprep.mubr.f32.mxu0 0.0
        %2812 = vmatmul.mubr.f32.gmra.mxu0 %v2740
        %v2813 = vpop.f32.mrf.mxu0
        %v2814 = vadd.f32 %v2735, %v2813
        %v2815 = vpop.f32.mrf.mxu0
        %2816 = vdwg.mxu0
        %v2817 = vmul.f32 %v2809, %v464
        %v2818 = vmul.f32 %v2814, %v469
        %v2819 = vld [vmem:[#allocation2 + $0x478] sm:$0xff]
        %v2820 = vld [vmem:[#allocation2 + $0x480] sm:$0xff]
        %v2821 = vld [vmem:[#allocation2 + $0x488] sm:$0x1]
        %v2822 = vlaneseq
        %v2823 = vshrl.u32 %v2822, 7
        %v2824 = vsub.s32 0, %v2823
        %v2825 = vrot.slane %v2821, %v2824
        %v2827 = vsel %vm534, %v2817, 0
        %v2830 = vsel %vm534, %v2818, 0
        %2832 = vmatprep.subr.mxu0 0.0
        %2833 = vmatpush1.msra.mxu0 0.0
        %2834 = vmatprep.subr.mxu0 0.0
        %2835 = vmatpush1.msra.mxu0 0.0
        %2836 = vmatprep.subr.mxu0 0.0
        %2837 = vmatpush1.msra.mxu0 0.0
        %2838 = vmatprep.subr.mxu0 0.0
        %2839 = vmatpush1.msra.mxu0 0.0
        %2840 = vmatprep.subr.mxu0 0.0
        %2841 = vmatpush1.msra.mxu0 0.0
        %2842 = vmatprep.subr.mxu0 0.0
        %2843 = vmatpush1.msra.mxu0 0.0
        %2844 = vmatprep.subr.mxu0 0.0
        %2845 = vmatpush1.msra.mxu0 0.0
        %2846 = vmatprep.subr.mxu0 0.0
        %2847 = vmatpush1.msra.mxu0 0.0
        %2848 = vmatprep.subr.mxu0 0.0
        %2849 = vmatpush1.msra.mxu0 0.0
        %2850 = vmatprep.subr.mxu0 0.0
        %2851 = vmatpush1.msra.mxu0 0.0
        %2852 = vmatprep.subr.mxu0 0.0
        %2853 = vmatpush1.msra.mxu0 0.0
        %2854 = vmatprep.subr.mxu0 0.0
        %2855 = vmatpush1.msra.mxu0 0.0
        %2856 = vmatprep.subr.mxu0 0.0
        %2857 = vmatpush1.msra.mxu0 0.0
        %2858 = vmatprep.subr.mxu0 0.0
        %2859 = vmatpush1.msra.mxu0 0.0
        %2860 = vmatprep.subr.mxu0 0.0
        %2861 = vmatpush1.msra.mxu0 %v2820
        %2862 = vmatprep.subr.mxu0 0.0
        %2863 = vmatpush1.msra.mxu0 %v2819
        %2864 = vmatprep.subr.mxu0 0.0
        %2865 = vmatpush2.msra.mxu0 0.0
        %2866 = vmatprep.subr.mxu0 0.0
        %2867 = vmatpush2.msra.mxu0 0.0
        %2868 = vmatprep.subr.mxu0 0.0
        %2869 = vmatpush2.msra.mxu0 0.0
        %2870 = vmatprep.subr.mxu0 0.0
        %2871 = vmatpush2.msra.mxu0 0.0
        %2872 = vmatprep.subr.mxu0 0.0
        %2873 = vmatpush2.msra.mxu0 0.0
        %2874 = vmatprep.subr.mxu0 0.0
        %2875 = vmatpush2.msra.mxu0 0.0
        %2876 = vmatprep.subr.mxu0 0.0
        %2877 = vmatpush2.msra.mxu0 0.0
        %2878 = vmatprep.subr.mxu0 0.0
        %2879 = vmatpush2.msra.mxu0 0.0
        %2880 = vmatprep.subr.mxu0 0.0
        %2881 = vmatpush2.msra.mxu0 0.0
        %2882 = vmatprep.subr.mxu0 0.0
        %2883 = vmatpush2.msra.mxu0 0.0
        %2884 = vmatprep.subr.mxu0 0.0
        %2885 = vmatpush2.msra.mxu0 0.0
        %2886 = vmatprep.subr.mxu0 0.0
        %2887 = vmatpush2.msra.mxu0 0.0
        %2888 = vmatprep.subr.mxu0 0.0
        %2889 = vmatpush2.msra.mxu0 0.0
        %2890 = vmatprep.subr.mxu0 0.0
        %2891 = vmatpush2.msra.mxu0 0.0
        %2892 = vmatprep.subr.mxu0 0.0
        %2893 = vmatpush2.msra.mxu0 0.0
        %2894 = vmatprep.subr.mxu0 0.0
        %2895 = vmatpush2.msra.mxu0 0.0
        %2896 = vmatprep.mubr.f32.mxu0 0.0
        %2897 = vmatmul.mubr.f32.gmra.mxu0 %v2827
        %v2898 = vpop.f32.mrf.mxu0
        %v2899 = vadd.f32 %v2825, %v2898
        %v2900 = vpop.f32.mrf.mxu0
        %2901 = vmatprep.mubr.f32.mxu0 0.0
        %2902 = vmatmul.mubr.f32.gmra.mxu0 %v2830
        %v2903 = vpop.f32.mrf.mxu0
        %v2904 = vadd.f32 %v2825, %v2903
        %v2905 = vpop.f32.mrf.mxu0
        %2906 = vdwg.mxu0
        %v2907 = vmul.f32 %v2817, %v464
        %v2908 = vmul.f32 %v2818, %v469
        %vm2909 = vcmask 39936
        %v2910 = vsel %vm2909, %v2899, -inf
        %2911 = vmax.xlane.f32.xlu0 %v2910
        %v2912 = vpop.xlane.xlu0 %2911
        %v2913 = vsel %vm2909, %v2904, -inf
        %2914 = vmax.xlane.f32.xlu0 %v2913
        %v2915 = vpop.xlane.xlu0 %2914
        %v2916 = vsub.f32 %v2899, %v2912
        %v2917 = vsub.f32 %v2904, %v2915
        %v2918 = vmul.f32 %v2916, 1.442695
        %v2919 = vpow.pop %v2918
        %v2920 = vmul.f32 %v2917, 1.442695
        %v2921 = vpow.pop %v2920
        %v2922 = vsel %vm2909, %v2919, 0.0
        %2923 = vadd.xlane.f32.xlu0 %v2922
        %v2924 = vpop.xlane.xlu0 %2923
        %v2925 = vsel %vm2909, %v2921, 0.0
        %2926 = vadd.xlane.f32.xlu0 %v2925
        %v2927 = vpop.xlane.xlu0 %2926
        %v2928 = vrcp.pop %v2924
        %v2929 = vmul.f32 %v2919, %v2928
        %v2930 = vrcp.pop %v2927
        %v2931 = vmul.f32 %v2921, %v2930
        %v2932 = vmul.f32 %v2929, %v464
        %v2933 = vmul.f32 %v2931, %v469
        %v2934 = vld [vmem:[#allocation2 + $0x490] sm:$0x1f]
        %v2935 = vld [vmem:[#allocation2 + $0x498] sm:$0x1]
        %v2936 = vlaneseq
        %v2937 = vshrl.u32 %v2936, 7
        %v2938 = vsub.s32 0, %v2937
        %v2939 = vrot.slane %v2935, %v2938
        %v2941 = vsel %vm2909, %v2932, 0
        %v2944 = vsel %vm2909, %v2933, 0
        %vm2946 = vcmask 1044480
        %v2948 = vsel %vm2946, %v2934, 0
        %2950 = vmatprep.subr.mxu0 0.0
        %2951 = vmatpush1.msra.mxu0 0.0
        %2952 = vmatprep.subr.mxu0 0.0
        %2953 = vmatpush1.msra.mxu0 0.0
        %2954 = vmatprep.subr.mxu0 0.0
        %2955 = vmatpush1.msra.mxu0 0.0
        %2956 = vmatprep.subr.mxu0 0.0
        %2957 = vmatpush1.msra.mxu0 0.0
        %2958 = vmatprep.subr.mxu0 0.0
        %2959 = vmatpush1.msra.mxu0 0.0
        %2960 = vmatprep.subr.mxu0 0.0
        %2961 = vmatpush1.msra.mxu0 0.0
        %2962 = vmatprep.subr.mxu0 0.0
        %2963 = vmatpush1.msra.mxu0 0.0
        %2964 = vmatprep.subr.mxu0 0.0
        %2965 = vmatpush1.msra.mxu0 0.0
        %2966 = vmatprep.subr.mxu0 0.0
        %2967 = vmatpush1.msra.mxu0 0.0
        %2968 = vmatprep.subr.mxu0 0.0
        %2969 = vmatpush1.msra.mxu0 0.0
        %2970 = vmatprep.subr.mxu0 0.0
        %2971 = vmatpush1.msra.mxu0 0.0
        %2972 = vmatprep.subr.mxu0 0.0
        %2973 = vmatpush1.msra.mxu0 0.0
        %2974 = vmatprep.subr.mxu0 0.0
        %2975 = vmatpush1.msra.mxu0 0.0
        %2976 = vmatprep.subr.mxu0 0.0
        %2977 = vmatpush1.msra.mxu0 0.0
        %2978 = vmatprep.subr.mxu0 0.0
        %2979 = vmatpush1.msra.mxu0 0.0
        %2980 = vmatprep.subr.mxu0 0.0
        %2981 = vmatpush1.msra.mxu0 %v2948
        %2982 = vmatprep.subr.mxu0 0.0
        %2983 = vmatpush2.msra.mxu0 0.0
        %2984 = vmatprep.subr.mxu0 0.0
        %2985 = vmatpush2.msra.mxu0 0.0
        %2986 = vmatprep.subr.mxu0 0.0
        %2987 = vmatpush2.msra.mxu0 0.0
        %2988 = vmatprep.subr.mxu0 0.0
        %2989 = vmatpush2.msra.mxu0 0.0
        %2990 = vmatprep.subr.mxu0 0.0
        %2991 = vmatpush2.msra.mxu0 0.0
        %2992 = vmatprep.subr.mxu0 0.0
        %2993 = vmatpush2.msra.mxu0 0.0
        %2994 = vmatprep.subr.mxu0 0.0
        %2995 = vmatpush2.msra.mxu0 0.0
        %2996 = vmatprep.subr.mxu0 0.0
        %2997 = vmatpush2.msra.mxu0 0.0
        %2998 = vmatprep.subr.mxu0 0.0
        %2999 = vmatpush2.msra.mxu0 0.0
        %3000 = vmatprep.subr.mxu0 0.0
        %3001 = vmatpush2.msra.mxu0 0.0
        %3002 = vmatprep.subr.mxu0 0.0
        %3003 = vmatpush2.msra.mxu0 0.0
        %3004 = vmatprep.subr.mxu0 0.0
        %3005 = vmatpush2.msra.mxu0 0.0
        %3006 = vmatprep.subr.mxu0 0.0
        %3007 = vmatpush2.msra.mxu0 0.0
        %3008 = vmatprep.subr.mxu0 0.0
        %3009 = vmatpush2.msra.mxu0 0.0
        %3010 = vmatprep.subr.mxu0 0.0
        %3011 = vmatpush2.msra.mxu0 0.0
        %3012 = vmatprep.subr.mxu0 0.0
        %3013 = vmatpush2.msra.mxu0 0.0
        %3014 = vmatprep.mubr.f32.mxu0 0.0
        %3015 = vmatmul.mubr.f32.gmra.mxu0 %v2941
        %v3016 = vpop.f32.mrf.mxu0
        %v3017 = vadd.f32 %v2939, %v3016
        %v3018 = vpop.f32.mrf.mxu0
        %3019 = vmatprep.mubr.f32.mxu0 0.0
        %3020 = vmatmul.mubr.f32.gmra.mxu0 %v2944
        %v3021 = vpop.f32.mrf.mxu0
        %v3022 = vadd.f32 %v2939, %v3021
        %v3023 = vpop.f32.mrf.mxu0
        %3024 = vdwg.mxu0
        %v3027 = vrot.slane %v3017, 7
        %v3028 = vrot.slane %v3022, 7
        %v3029 = vsel %vm1356, %v3027, %v3028
        %v3032 = vsel %vm1356, 0.0, %v3027
        %v3033 = vrot.slane %v3017, 1
        %v3034 = vrot.slane %v3022, 1
        %v3035 = vsel %vm1363, %v3033, %v3034
        %v3037 = vsel %vm1363, %v3034, 0.0
        %3038 = vrot.lane.b32.xlu0 %v3017, 16
        %v3039 = vpop.permute.xlu0 %3038
        %3040 = vrot.lane.b32.xlu0 %v3022, 16
        %v3041 = vpop.permute.xlu0 %3040
        %3045 = vrot.lane.b32.xlu0 %v3035, 32
        %v3046 = vpop.permute.xlu0 %3045
        %3047 = vrot.lane.b32.xlu0 %v3037, 32
        %v3048 = vpop.permute.xlu0 %3047
        %v3051 = vsel %vm534, %v3032, %v3039
        %v3052 = vsel %vm534, %v3029, %v3041
        %v3053 = vsel %vm1384, %v3051, %v3046
        %v3054 = vsel %vm1384, %v3052, %v3048
        %v3055 = vld [vmem:[#allocation2 + $0x4a0] sm:$0xff]
        %v3056 = vld [vmem:[#allocation2 + $0x4a8] sm:$0xff]
        %v3057 = vld [vmem:[#allocation2 + $0x4b0] sm:$0xff]
        %v3058 = vld [vmem:[#allocation2 + $0x4b8] sm:$0xff]
        %v3059 = vld [vmem:[#allocation2 + $0x4c0] sm:$0xff]
        %v3060 = vld [vmem:[#allocation2 + $0x4c8] sm:$0xff]
        %v3061 = vld [vmem:[#allocation2 + $0x4d0] sm:$0x1]
        %v3062 = vlaneseq
        %v3063 = vshrl.u32 %v3062, 7
        %v3064 = vsub.s32 0, %v3063
        %v3065 = vrot.slane %v3061, %v3064
        %v3067 = vsel %vm1398, %v3053, 0
        %v3070 = vsel %vm1398, %v3054, 0
        %3072 = vmatprep.subr.mxu0 0.0
        %3073 = vmatpush1.msra.mxu0 0.0
        %3074 = vmatprep.subr.mxu0 0.0
        %3075 = vmatpush1.msra.mxu0 0.0
        %3076 = vmatprep.subr.mxu0 0.0
        %3077 = vmatpush1.msra.mxu0 0.0
        %3078 = vmatprep.subr.mxu0 0.0
        %3079 = vmatpush1.msra.mxu0 0.0
        %3080 = vmatprep.subr.mxu0 0.0
        %3081 = vmatpush1.msra.mxu0 0.0
        %3082 = vmatprep.subr.mxu0 0.0
        %3083 = vmatpush1.msra.mxu0 0.0
        %3084 = vmatprep.subr.mxu0 0.0
        %3085 = vmatpush1.msra.mxu0 0.0
        %3086 = vmatprep.subr.mxu0 0.0
        %3087 = vmatpush1.msra.mxu0 0.0
        %3088 = vmatprep.subr.mxu0 0.0
        %3089 = vmatpush1.msra.mxu0 0.0
        %3090 = vmatprep.subr.mxu0 0.0
        %3091 = vmatpush1.msra.mxu0 0.0
        %3092 = vmatprep.subr.mxu0 0.0
        %3093 = vmatpush1.msra.mxu0 %v3060
        %3094 = vmatprep.subr.mxu0 0.0
        %3095 = vmatpush1.msra.mxu0 %v3059
        %3096 = vmatprep.subr.mxu0 0.0
        %3097 = vmatpush1.msra.mxu0 %v3058
        %3098 = vmatprep.subr.mxu0 0.0
        %3099 = vmatpush1.msra.mxu0 %v3057
        %3100 = vmatprep.subr.mxu0 0.0
        %3101 = vmatpush1.msra.mxu0 %v3056
        %3102 = vmatprep.subr.mxu0 0.0
        %3103 = vmatpush1.msra.mxu0 %v3055
        %3104 = vmatprep.subr.mxu0 0.0
        %3105 = vmatpush2.msra.mxu0 0.0
        %3106 = vmatprep.subr.mxu0 0.0
        %3107 = vmatpush2.msra.mxu0 0.0
        %3108 = vmatprep.subr.mxu0 0.0
        %3109 = vmatpush2.msra.mxu0 0.0
        %3110 = vmatprep.subr.mxu0 0.0
        %3111 = vmatpush2.msra.mxu0 0.0
        %3112 = vmatprep.subr.mxu0 0.0
        %3113 = vmatpush2.msra.mxu0 0.0
        %3114 = vmatprep.subr.mxu0 0.0
        %3115 = vmatpush2.msra.mxu0 0.0
        %3116 = vmatprep.subr.mxu0 0.0
        %3117 = vmatpush2.msra.mxu0 0.0
        %3118 = vmatprep.subr.mxu0 0.0
        %3119 = vmatpush2.msra.mxu0 0.0
        %3120 = vmatprep.subr.mxu0 0.0
        %3121 = vmatpush2.msra.mxu0 0.0
        %3122 = vmatprep.subr.mxu0 0.0
        %3123 = vmatpush2.msra.mxu0 0.0
        %3124 = vmatprep.subr.mxu0 0.0
        %3125 = vmatpush2.msra.mxu0 0.0
        %3126 = vmatprep.subr.mxu0 0.0
        %3127 = vmatpush2.msra.mxu0 0.0
        %3128 = vmatprep.subr.mxu0 0.0
        %3129 = vmatpush2.msra.mxu0 0.0
        %3130 = vmatprep.subr.mxu0 0.0
        %3131 = vmatpush2.msra.mxu0 0.0
        %3132 = vmatprep.subr.mxu0 0.0
        %3133 = vmatpush2.msra.mxu0 0.0
        %3134 = vmatprep.subr.mxu0 0.0
        %3135 = vmatpush2.msra.mxu0 0.0
        %3136 = vmatprep.mubr.f32.mxu0 0.0
        %3137 = vmatmul.mubr.f32.gmra.mxu0 %v3067
        %v3138 = vpop.f32.mrf.mxu0
        %v3139 = vadd.f32 %v3065, %v3138
        %v3140 = vpop.f32.mrf.mxu0
        %3141 = vmatprep.mubr.f32.mxu0 0.0
        %3142 = vmatmul.mubr.f32.gmra.mxu0 %v3070
        %v3143 = vpop.f32.mrf.mxu0
        %v3144 = vadd.f32 %v3065, %v3143
        %v3145 = vpop.f32.mrf.mxu0
        %3146 = vdwg.mxu0
        %v3147 = vmax.f32 %v3139, 0.0
        %v3148 = vmax.f32 %v3144, 0.0
        %v3149 = vsel %vm534, %v3147, 0.0
        %v3150 = vsel %vm534, %v3148, 0.0
        %v3151 = vadd.f32 %v3149, %v3150
        %v3152 = vrot.slane %v3151, 4
        %v3153 = vadd.f32 %v3151, %v3152
        %v3154 = vrot.slane %v3153, 2
        %v3155 = vadd.f32 %v3153, %v3154
        %v3156 = vrot.slane %v3155, 1
        %v3157 = vadd.f32 %v3155, %v3156
        %v3158 = vmul.f32 %v3157, %v1491
        %v3159 = vsub.f32 %v3147, %v3158
        %v3160 = vsub.f32 %v3148, %v3158
        %v3161 = vmul.f32 %v3159, %v3159
        %v3162 = vmul.f32 %v3160, %v3160
        %v3163 = vsel %vm534, %v3161, 0.0
        %v3164 = vsel %vm534, %v3162, 0.0
        %v3165 = vadd.f32 %v3163, %v3164
        %v3166 = vrot.slane %v3165, 4
        %v3167 = vadd.f32 %v3165, %v3166
        %v3168 = vrot.slane %v3167, 2
        %v3169 = vadd.f32 %v3167, %v3168
        %v3170 = vrot.slane %v3169, 1
        %v3171 = vadd.f32 %v3169, %v3170
        %v3172 = vmul.f32 %v3171, %v1491
        %v3173 = vadd.f32 %v3172, 1e-05
        %v3174 = vrsqrt.pop %v3173
        %v3175 = vmul.f32 %v3159, %v3174
        %v3176 = vmul.f32 %v3160, %v3174
        %v3177 = vld [vmem:[#allocation2 + $0x4d8] sm:$0xff]
        %v3178 = vld [vmem:[#allocation2 + $0x4e0] sm:$0xff]
        %v3179 = vld [vmem:[#allocation2 + $0x4e8] sm:$0x1]
        %v3180 = vlaneseq
        %v3181 = vshrl.u32 %v3180, 7
        %v3182 = vsub.s32 0, %v3181
        %v3183 = vrot.slane %v3179, %v3182
        %v3185 = vsel %vm534, %v3175, 0
        %v3188 = vsel %vm534, %v3176, 0
        %3190 = vmatprep.subr.mxu0 0.0
        %3191 = vmatpush1.msra.mxu0 0.0
        %3192 = vmatprep.subr.mxu0 0.0
        %3193 = vmatpush1.msra.mxu0 0.0
        %3194 = vmatprep.subr.mxu0 0.0
        %3195 = vmatpush1.msra.mxu0 0.0
        %3196 = vmatprep.subr.mxu0 0.0
        %3197 = vmatpush1.msra.mxu0 0.0
        %3198 = vmatprep.subr.mxu0 0.0
        %3199 = vmatpush1.msra.mxu0 0.0
        %3200 = vmatprep.subr.mxu0 0.0
        %3201 = vmatpush1.msra.mxu0 0.0
        %3202 = vmatprep.subr.mxu0 0.0
        %3203 = vmatpush1.msra.mxu0 0.0
        %3204 = vmatprep.subr.mxu0 0.0
        %3205 = vmatpush1.msra.mxu0 0.0
        %3206 = vmatprep.subr.mxu0 0.0
        %3207 = vmatpush1.msra.mxu0 0.0
        %3208 = vmatprep.subr.mxu0 0.0
        %3209 = vmatpush1.msra.mxu0 0.0
        %3210 = vmatprep.subr.mxu0 0.0
        %3211 = vmatpush1.msra.mxu0 0.0
        %3212 = vmatprep.subr.mxu0 0.0
        %3213 = vmatpush1.msra.mxu0 0.0
        %3214 = vmatprep.subr.mxu0 0.0
        %3215 = vmatpush1.msra.mxu0 0.0
        %3216 = vmatprep.subr.mxu0 0.0
        %3217 = vmatpush1.msra.mxu0 0.0
        %3218 = vmatprep.subr.mxu0 0.0
        %3219 = vmatpush1.msra.mxu0 %v3178
        %3220 = vmatprep.subr.mxu0 0.0
        %3221 = vmatpush1.msra.mxu0 %v3177
        %3222 = vmatprep.subr.mxu0 0.0
        %3223 = vmatpush2.msra.mxu0 0.0
        %3224 = vmatprep.subr.mxu0 0.0
        %3225 = vmatpush2.msra.mxu0 0.0
        %3226 = vmatprep.subr.mxu0 0.0
        %3227 = vmatpush2.msra.mxu0 0.0
        %3228 = vmatprep.subr.mxu0 0.0
        %3229 = vmatpush2.msra.mxu0 0.0
        %3230 = vmatprep.subr.mxu0 0.0
        %3231 = vmatpush2.msra.mxu0 0.0
        %3232 = vmatprep.subr.mxu0 0.0
        %3233 = vmatpush2.msra.mxu0 0.0
        %3234 = vmatprep.subr.mxu0 0.0
        %3235 = vmatpush2.msra.mxu0 0.0
        %3236 = vmatprep.subr.mxu0 0.0
        %3237 = vmatpush2.msra.mxu0 0.0
        %3238 = vmatprep.subr.mxu0 0.0
        %3239 = vmatpush2.msra.mxu0 0.0
        %3240 = vmatprep.subr.mxu0 0.0
        %3241 = vmatpush2.msra.mxu0 0.0
        %3242 = vmatprep.subr.mxu0 0.0
        %3243 = vmatpush2.msra.mxu0 0.0
        %3244 = vmatprep.subr.mxu0 0.0
        %3245 = vmatpush2.msra.mxu0 0.0
        %3246 = vmatprep.subr.mxu0 0.0
        %3247 = vmatpush2.msra.mxu0 0.0
        %3248 = vmatprep.subr.mxu0 0.0
        %3249 = vmatpush2.msra.mxu0 0.0
        %3250 = vmatprep.subr.mxu0 0.0
        %3251 = vmatpush2.msra.mxu0 0.0
        %3252 = vmatprep.subr.mxu0 0.0
        %3253 = vmatpush2.msra.mxu0 0.0
        %3254 = vmatprep.mubr.f32.mxu0 0.0
        %3255 = vmatmul.mubr.f32.gmra.mxu0 %v3185
        %v3256 = vpop.f32.mrf.mxu0
        %v3257 = vadd.f32 %v3183, %v3256
        %v3258 = vpop.f32.mrf.mxu0
        %3259 = vmatprep.mubr.f32.mxu0 0.0
        %3260 = vmatmul.mubr.f32.gmra.mxu0 %v3188
        %v3261 = vpop.f32.mrf.mxu0
        %v3262 = vadd.f32 %v3183, %v3261
        %v3263 = vpop.f32.mrf.mxu0
        %3264 = vdwg.mxu0
        %v3265 = vxor.u32 %v3257, 2147483648
        %v3266 = vxor.u32 %v3262, 2147483648
        %v3267 = vmul.f32 %v3265, 1.442695
        %v3268 = vpow.pop %v3267
        %v3269 = vmul.f32 %v3266, 1.442695
        %v3270 = vpow.pop %v3269
        %v3271 = vadd.f32 %v3268, 1.0
        %v3272 = vadd.f32 %v3270, 1.0
        %v3273 = vrcp.pop %v3271
        %v3274 = vmul.f32 1.0, %v3273
        %v3275 = vrcp.pop %v3272
        %v3276 = vmul.f32 1.0, %v3275
        %v3277 = vld [vmem:[#allocation2 + $0x4f0] sm:$0xff]
        %v3278 = vld [vmem:[#allocation2 + $0x4f8] sm:$0xff]
        %v3279 = vld [vmem:[#allocation2 + $0x500] sm:$0x1]
        %v3280 = vlaneseq
        %v3281 = vshrl.u32 %v3280, 7
        %v3282 = vsub.s32 0, %v3281
        %v3283 = vrot.slane %v3279, %v3282
        %v3285 = vsel %vm534, %v2907, 0
        %v3288 = vsel %vm534, %v2908, 0
        %3290 = vmatprep.subr.mxu0 0.0
        %3291 = vmatpush1.msra.mxu0 0.0
        %3292 = vmatprep.subr.mxu0 0.0
        %3293 = vmatpush1.msra.mxu0 0.0
        %3294 = vmatprep.subr.mxu0 0.0
        %3295 = vmatpush1.msra.mxu0 0.0
        %3296 = vmatprep.subr.mxu0 0.0
        %3297 = vmatpush1.msra.mxu0 0.0
        %3298 = vmatprep.subr.mxu0 0.0
        %3299 = vmatpush1.msra.mxu0 0.0
        %3300 = vmatprep.subr.mxu0 0.0
        %3301 = vmatpush1.msra.mxu0 0.0
        %3302 = vmatprep.subr.mxu0 0.0
        %3303 = vmatpush1.msra.mxu0 0.0
        %3304 = vmatprep.subr.mxu0 0.0
        %3305 = vmatpush1.msra.mxu0 0.0
        %3306 = vmatprep.subr.mxu0 0.0
        %3307 = vmatpush1.msra.mxu0 0.0
        %3308 = vmatprep.subr.mxu0 0.0
        %3309 = vmatpush1.msra.mxu0 0.0
        %3310 = vmatprep.subr.mxu0 0.0
        %3311 = vmatpush1.msra.mxu0 0.0
        %3312 = vmatprep.subr.mxu0 0.0
        %3313 = vmatpush1.msra.mxu0 0.0
        %3314 = vmatprep.subr.mxu0 0.0
        %3315 = vmatpush1.msra.mxu0 0.0
        %3316 = vmatprep.subr.mxu0 0.0
        %3317 = vmatpush1.msra.mxu0 0.0
        %3318 = vmatprep.subr.mxu0 0.0
        %3319 = vmatpush1.msra.mxu0 %v3278
        %3320 = vmatprep.subr.mxu0 0.0
        %3321 = vmatpush1.msra.mxu0 %v3277
        %3322 = vmatprep.subr.mxu0 0.0
        %3323 = vmatpush2.msra.mxu0 0.0
        %3324 = vmatprep.subr.mxu0 0.0
        %3325 = vmatpush2.msra.mxu0 0.0
        %3326 = vmatprep.subr.mxu0 0.0
        %3327 = vmatpush2.msra.mxu0 0.0
        %3328 = vmatprep.subr.mxu0 0.0
        %3329 = vmatpush2.msra.mxu0 0.0
        %3330 = vmatprep.subr.mxu0 0.0
        %3331 = vmatpush2.msra.mxu0 0.0
        %3332 = vmatprep.subr.mxu0 0.0
        %3333 = vmatpush2.msra.mxu0 0.0
        %3334 = vmatprep.subr.mxu0 0.0
        %3335 = vmatpush2.msra.mxu0 0.0
        %3336 = vmatprep.subr.mxu0 0.0
        %3337 = vmatpush2.msra.mxu0 0.0
        %3338 = vmatprep.subr.mxu0 0.0
        %3339 = vmatpush2.msra.mxu0 0.0
        %3340 = vmatprep.subr.mxu0 0.0
        %3341 = vmatpush2.msra.mxu0 0.0
        %3342 = vmatprep.subr.mxu0 0.0
        %3343 = vmatpush2.msra.mxu0 0.0
        %3344 = vmatprep.subr.mxu0 0.0
        %3345 = vmatpush2.msra.mxu0 0.0
        %3346 = vmatprep.subr.mxu0 0.0
        %3347 = vmatpush2.msra.mxu0 0.0
        %3348 = vmatprep.subr.mxu0 0.0
        %3349 = vmatpush2.msra.mxu0 0.0
        %3350 = vmatprep.subr.mxu0 0.0
        %3351 = vmatpush2.msra.mxu0 0.0
        %3352 = vmatprep.subr.mxu0 0.0
        %3353 = vmatpush2.msra.mxu0 0.0
        %3354 = vmatprep.mubr.f32.mxu0 0.0
        %3355 = vmatmul.mubr.f32.gmra.mxu0 %v3285
        %v3356 = vpop.f32.mrf.mxu0
        %v3357 = vadd.f32 %v3283, %v3356
        %v3358 = vpop.f32.mrf.mxu0
        %3359 = vmatprep.mubr.f32.mxu0 0.0
        %3360 = vmatmul.mubr.f32.gmra.mxu0 %v3288
        %v3361 = vpop.f32.mrf.mxu0
        %v3362 = vadd.f32 %v3283, %v3361
        %v3363 = vpop.f32.mrf.mxu0
        %3364 = vdwg.mxu0
        %v3365 = vsel %vm534, %v3357, 1.0
        %v3366 = vsel %vm534, %v3362, 1.0
        %3369 = vrot.lane.b32.xlu0 %v3274, 112
        %v3370 = vpop.permute.xlu0 %3369
        %3371 = vrot.lane.b32.xlu0 %v3276, 112
        %v3372 = vpop.permute.xlu0 %3371
        %3375 = vxpose.xlu0.b32.start [1/16] %v3370, 128
        %3376 = vxpose.xlu0.b32.cont [2/16] %v3372, 128
        %3377 = vxpose.xlu0.b32.cont [3/16] 0.0, 128
        %3378 = vxpose.xlu0.b32.cont [4/16] 0.0, 128
        %3379 = vxpose.xlu0.b32.cont [5/16] 0.0, 128
        %3380 = vxpose.xlu0.b32.cont [6/16] 0.0, 128
        %3381 = vxpose.xlu0.b32.cont [7/16] 0.0, 128
        %3382 = vxpose.xlu0.b32.cont [8/16] 0.0, 128
        %3383 = vxpose.xlu0.b32.cont [9/16] 0.0, 128
        %3384 = vxpose.xlu0.b32.cont [10/16] 0.0, 128
        %3385 = vxpose.xlu0.b32.cont [11/16] 0.0, 128
        %3386 = vxpose.xlu0.b32.cont [12/16] 0.0, 128
        %3387 = vxpose.xlu0.b32.cont [13/16] 0.0, 128
        %3388 = vxpose.xlu0.b32.cont [14/16] 0.0, 128
        %3389 = vxpose.xlu0.b32.cont [15/16] 0.0, 128
        %3390 = vxpose.xlu0.b32.end [16/16] 0.0, 128
        %v3391 = vpop.trf.xlu0
        %v3392 = vpop.trf.xlu0
        %v3393 = vpop.trf.xlu0
        %v3394 = vpop.trf.xlu0
        %v3395 = vpop.trf.xlu0
        %v3396 = vpop.trf.xlu0
        %v3397 = vpop.trf.xlu0
        %v3398 = vpop.trf.xlu0
        %v3399 = vpop.trf.xlu0
        %v3400 = vpop.trf.xlu0
        %v3401 = vpop.trf.xlu0
        %v3402 = vpop.trf.xlu0
        %v3403 = vpop.trf.xlu0
        %v3404 = vpop.trf.xlu0
        %v3405 = vpop.trf.xlu0
        %v3406 = vpop.trf.xlu0
        %v3408 = vsel %vm534, %v3391, 0
        %v3411 = vsel %vm534, %v3392, 0
        %3413 = vmatprep.subr.mxu0 0.0
        %3414 = vmatpush1.msra.mxu0 0.0
        %3415 = vmatprep.subr.mxu0 0.0
        %3416 = vmatpush1.msra.mxu0 0.0
        %3417 = vmatprep.subr.mxu0 0.0
        %3418 = vmatpush1.msra.mxu0 0.0
        %3419 = vmatprep.subr.mxu0 0.0
        %3420 = vmatpush1.msra.mxu0 0.0
        %3421 = vmatprep.subr.mxu0 0.0
        %3422 = vmatpush1.msra.mxu0 0.0
        %3423 = vmatprep.subr.mxu0 0.0
        %3424 = vmatpush1.msra.mxu0 0.0
        %3425 = vmatprep.subr.mxu0 0.0
        %3426 = vmatpush1.msra.mxu0 0.0
        %3427 = vmatprep.subr.mxu0 0.0
        %3428 = vmatpush1.msra.mxu0 0.0
        %3429 = vmatprep.subr.mxu0 0.0
        %3430 = vmatpush1.msra.mxu0 0.0
        %3431 = vmatprep.subr.mxu0 0.0
        %3432 = vmatpush1.msra.mxu0 0.0
        %3433 = vmatprep.subr.mxu0 0.0
        %3434 = vmatpush1.msra.mxu0 0.0
        %3435 = vmatprep.subr.mxu0 0.0
        %3436 = vmatpush1.msra.mxu0 0.0
        %3437 = vmatprep.subr.mxu0 0.0
        %3438 = vmatpush1.msra.mxu0 0.0
        %3439 = vmatprep.subr.mxu0 0.0
        %3440 = vmatpush1.msra.mxu0 0.0
        %3441 = vmatprep.subr.mxu0 0.0
        %3442 = vmatpush1.msra.mxu0 %v3366
        %3443 = vmatprep.subr.mxu0 0.0
        %3444 = vmatpush1.msra.mxu0 %v3365
        %3445 = vmatprep.subr.mxu0 0.0
        %3446 = vmatpush2.msra.mxu0 0.0
        %3447 = vmatprep.subr.mxu0 0.0
        %3448 = vmatpush2.msra.mxu0 0.0
        %3449 = vmatprep.subr.mxu0 0.0
        %3450 = vmatpush2.msra.mxu0 0.0
        %3451 = vmatprep.subr.mxu0 0.0
        %3452 = vmatpush2.msra.mxu0 0.0
        %3453 = vmatprep.subr.mxu0 0.0
        %3454 = vmatpush2.msra.mxu0 0.0
        %3455 = vmatprep.subr.mxu0 0.0
        %3456 = vmatpush2.msra.mxu0 0.0
        %3457 = vmatprep.subr.mxu0 0.0
        %3458 = vmatpush2.msra.mxu0 0.0
        %3459 = vmatprep.subr.mxu0 0.0
        %3460 = vmatpush2.msra.mxu0 0.0
        %3461 = vmatprep.subr.mxu0 0.0
        %3462 = vmatpush2.msra.mxu0 0.0
        %3463 = vmatprep.subr.mxu0 0.0
        %3464 = vmatpush2.msra.mxu0 0.0
        %3465 = vmatprep.subr.mxu0 0.0
        %3466 = vmatpush2.msra.mxu0 0.0
        %3467 = vmatprep.subr.mxu0 0.0
        %3468 = vmatpush2.msra.mxu0 0.0
        %3469 = vmatprep.subr.mxu0 0.0
        %3470 = vmatpush2.msra.mxu0 0.0
        %3471 = vmatprep.subr.mxu0 0.0
        %3472 = vmatpush2.msra.mxu0 0.0
        %3473 = vmatprep.subr.mxu0 0.0
        %3474 = vmatpush2.msra.mxu0 0.0
        %3475 = vmatprep.subr.mxu0 0.0
        %3476 = vmatpush2.msra.mxu0 0.0
        %3477 = vmatprep.mubr.f32.mxu0 0.0
        %3478 = vmatmul.mubr.f32.gmra.mxu0 %v3408
        %v3479 = vpop.f32.mrf.mxu0
        %v3480 = vadd.f32 0.0, %v3479
        %v3481 = vpop.f32.mrf.mxu0
        %3482 = vmatprep.mubr.f32.mxu0 0.0
        %3483 = vmatmul.mubr.f32.gmra.mxu0 %v3411
        %v3484 = vpop.f32.mrf.mxu0
        %v3485 = vadd.f32 0.0, %v3484
        %v3486 = vpop.f32.mrf.mxu0
        %3487 = vdwg.mxu0
        %v3488 = vmul.f32 %v3480, %v237
        %v3489 = vmul.f32 %v3485, %v238
        %v3490 = vadd.f32 %v3480, 1e-06
        %v3491 = vadd.f32 %v3485, 1e-06
        %3493 = vset.pattern.permute.xlu0 16
        %3494 = vperm.xlu0 %3493, %v3490
        %v3495 = vpop.permute.xlu0 %3494
        %3498 = vset.pattern.permute.xlu0 16
        %3499 = vperm.xlu0 %3498, %v3491
        %v3500 = vpop.permute.xlu0 %3499
        %v3502 = vmul.f32 %v237, %v3495
        %v3503 = vmul.f32 %v238, %v3500
        %3506 = vrot.lane.b32.xlu0 %v3502, 16
        %v3507 = vpop.permute.xlu0 %3506
        %3508 = vrot.lane.b32.xlu0 %v3503, 16
        %v3509 = vpop.permute.xlu0 %3508
        %v3512 = vsel %vm534, %v3488, %v3507
        %v3513 = vsel %vm534, %v3489, %v3509
        %v3514 = vsel %vm534, %v3274, 0
        %v3516 = vsel %vm534, %v3276, 0
        %3518 = vmatprep.subr.mxu0 0.0
        %3519 = vmatpush1.msra.mxu0 0.0
        %3520 = vmatprep.subr.mxu0 0.0
        %3521 = vmatpush1.msra.mxu0 0.0
        %3522 = vmatprep.subr.mxu0 0.0
        %3523 = vmatpush1.msra.mxu0 0.0
        %3524 = vmatprep.subr.mxu0 0.0
        %3525 = vmatpush1.msra.mxu0 0.0
        %3526 = vmatprep.subr.mxu0 0.0
        %3527 = vmatpush1.msra.mxu0 0.0
        %3528 = vmatprep.subr.mxu0 0.0
        %3529 = vmatpush1.msra.mxu0 0.0
        %3530 = vmatprep.subr.mxu0 0.0
        %3531 = vmatpush1.msra.mxu0 0.0
        %3532 = vmatprep.subr.mxu0 0.0
        %3533 = vmatpush1.msra.mxu0 0.0
        %3534 = vmatprep.subr.mxu0 0.0
        %3535 = vmatpush1.msra.mxu0 0.0
        %3536 = vmatprep.subr.mxu0 0.0
        %3537 = vmatpush1.msra.mxu0 0.0
        %3538 = vmatprep.subr.mxu0 0.0
        %3539 = vmatpush1.msra.mxu0 0.0
        %3540 = vmatprep.subr.mxu0 0.0
        %3541 = vmatpush1.msra.mxu0 0.0
        %3542 = vmatprep.subr.mxu0 0.0
        %3543 = vmatpush1.msra.mxu0 0.0
        %3544 = vmatprep.subr.mxu0 0.0
        %3545 = vmatpush1.msra.mxu0 0.0
        %3546 = vmatprep.subr.mxu0 0.0
        %3547 = vmatpush1.msra.mxu0 %v3513
        %3548 = vmatprep.subr.mxu0 0.0
        %3549 = vmatpush1.msra.mxu0 %v3512
        %3550 = vmatprep.subr.mxu0 0.0
        %3551 = vmatpush2.msra.mxu0 0.0
        %3552 = vmatprep.subr.mxu0 0.0
        %3553 = vmatpush2.msra.mxu0 0.0
        %3554 = vmatprep.subr.mxu0 0.0
        %3555 = vmatpush2.msra.mxu0 0.0
        %3556 = vmatprep.subr.mxu0 0.0
        %3557 = vmatpush2.msra.mxu0 0.0
        %3558 = vmatprep.subr.mxu0 0.0
        %3559 = vmatpush2.msra.mxu0 0.0
        %3560 = vmatprep.subr.mxu0 0.0
        %3561 = vmatpush2.msra.mxu0 0.0
        %3562 = vmatprep.subr.mxu0 0.0
        %3563 = vmatpush2.msra.mxu0 0.0
        %3564 = vmatprep.subr.mxu0 0.0
        %3565 = vmatpush2.msra.mxu0 0.0
        %3566 = vmatprep.subr.mxu0 0.0
        %3567 = vmatpush2.msra.mxu0 0.0
        %3568 = vmatprep.subr.mxu0 0.0
        %3569 = vmatpush2.msra.mxu0 0.0
        %3570 = vmatprep.subr.mxu0 0.0
        %3571 = vmatpush2.msra.mxu0 0.0
        %3572 = vmatprep.subr.mxu0 0.0
        %3573 = vmatpush2.msra.mxu0 0.0
        %3574 = vmatprep.subr.mxu0 0.0
        %3575 = vmatpush2.msra.mxu0 0.0
        %3576 = vmatprep.subr.mxu0 0.0
        %3577 = vmatpush2.msra.mxu0 0.0
        %3578 = vmatprep.subr.mxu0 0.0
        %3579 = vmatpush2.msra.mxu0 0.0
        %3580 = vmatprep.subr.mxu0 0.0
        %3581 = vmatpush2.msra.mxu0 0.0
        %3582 = vmatprep.mubr.f32.mxu0 0.0
        %3583 = vmatmul.mubr.f32.gmra.mxu0 %v3514
        %v3584 = vpop.f32.mrf.mxu0
        %v3585 = vadd.f32 0.0, %v3584
        %v3586 = vpop.f32.mrf.mxu0
        %3587 = vmatprep.mubr.f32.mxu0 0.0
        %3588 = vmatmul.mubr.f32.gmra.mxu0 %v3516
        %v3589 = vpop.f32.mrf.mxu0
        %v3590 = vadd.f32 0.0, %v3589
        %v3591 = vpop.f32.mrf.mxu0
        %3592 = vdwg.mxu0
        %3595 = vrot.lane.b32.xlu0 %v3585, 112
        %v3596 = vpop.permute.xlu0 %3595
        %3597 = vrot.lane.b32.xlu0 %v3590, 112
        %v3598 = vpop.permute.xlu0 %3597
        %v3601 = vrcp.pop %v3596
        %v3602 = vmul.f32 %v3585, %v3601
        %v3603 = vrcp.pop %v3598
        %v3604 = vmul.f32 %v3590, %v3603
        %v3605 = vld [vmem:[#allocation2 + $0x508] sm:$0xff]
        %v3606 = vld [vmem:[#allocation2 + $0x510] sm:$0xff]
        %v3607 = vld [vmem:[#allocation2 + $0x518] sm:$0x1]
        %v3608 = vlaneseq
        %v3609 = vshrl.u32 %v3608, 7
        %v3610 = vsub.s32 0, %v3609
        %v3611 = vrot.slane %v3607, %v3610
        %v3613 = vsel %vm534, %v3602, 0
        %v3616 = vsel %vm534, %v3604, 0
        %3618 = vmatprep.subr.mxu0 0.0
        %3619 = vmatpush1.msra.mxu0 0.0
        %3620 = vmatprep.subr.mxu0 0.0
        %3621 = vmatpush1.msra.mxu0 0.0
        %3622 = vmatprep.subr.mxu0 0.0
        %3623 = vmatpush1.msra.mxu0 0.0
        %3624 = vmatprep.subr.mxu0 0.0
        %3625 = vmatpush1.msra.mxu0 0.0
        %3626 = vmatprep.subr.mxu0 0.0
        %3627 = vmatpush1.msra.mxu0 0.0
        %3628 = vmatprep.subr.mxu0 0.0
        %3629 = vmatpush1.msra.mxu0 0.0
        %3630 = vmatprep.subr.mxu0 0.0
        %3631 = vmatpush1.msra.mxu0 0.0
        %3632 = vmatprep.subr.mxu0 0.0
        %3633 = vmatpush1.msra.mxu0 0.0
        %3634 = vmatprep.subr.mxu0 0.0
        %3635 = vmatpush1.msra.mxu0 0.0
        %3636 = vmatprep.subr.mxu0 0.0
        %3637 = vmatpush1.msra.mxu0 0.0
        %3638 = vmatprep.subr.mxu0 0.0
        %3639 = vmatpush1.msra.mxu0 0.0
        %3640 = vmatprep.subr.mxu0 0.0
        %3641 = vmatpush1.msra.mxu0 0.0
        %3642 = vmatprep.subr.mxu0 0.0
        %3643 = vmatpush1.msra.mxu0 0.0
        %3644 = vmatprep.subr.mxu0 0.0
        %3645 = vmatpush1.msra.mxu0 0.0
        %3646 = vmatprep.subr.mxu0 0.0
        %3647 = vmatpush1.msra.mxu0 %v3606
        %3648 = vmatprep.subr.mxu0 0.0
        %3649 = vmatpush1.msra.mxu0 %v3605
        %3650 = vmatprep.subr.mxu0 0.0
        %3651 = vmatpush2.msra.mxu0 0.0
        %3652 = vmatprep.subr.mxu0 0.0
        %3653 = vmatpush2.msra.mxu0 0.0
        %3654 = vmatprep.subr.mxu0 0.0
        %3655 = vmatpush2.msra.mxu0 0.0
        %3656 = vmatprep.subr.mxu0 0.0
        %3657 = vmatpush2.msra.mxu0 0.0
        %3658 = vmatprep.subr.mxu0 0.0
        %3659 = vmatpush2.msra.mxu0 0.0
        %3660 = vmatprep.subr.mxu0 0.0
        %3661 = vmatpush2.msra.mxu0 0.0
        %3662 = vmatprep.subr.mxu0 0.0
        %3663 = vmatpush2.msra.mxu0 0.0
        %3664 = vmatprep.subr.mxu0 0.0
        %3665 = vmatpush2.msra.mxu0 0.0
        %3666 = vmatprep.subr.mxu0 0.0
        %3667 = vmatpush2.msra.mxu0 0.0
        %3668 = vmatprep.subr.mxu0 0.0
        %3669 = vmatpush2.msra.mxu0 0.0
        %3670 = vmatprep.subr.mxu0 0.0
        %3671 = vmatpush2.msra.mxu0 0.0
        %3672 = vmatprep.subr.mxu0 0.0
        %3673 = vmatpush2.msra.mxu0 0.0
        %3674 = vmatprep.subr.mxu0 0.0
        %3675 = vmatpush2.msra.mxu0 0.0
        %3676 = vmatprep.subr.mxu0 0.0
        %3677 = vmatpush2.msra.mxu0 0.0
        %3678 = vmatprep.subr.mxu0 0.0
        %3679 = vmatpush2.msra.mxu0 0.0
        %3680 = vmatprep.subr.mxu0 0.0
        %3681 = vmatpush2.msra.mxu0 0.0
        %3682 = vmatprep.mubr.f32.mxu0 0.0
        %3683 = vmatmul.mubr.f32.gmra.mxu0 %v3613
        %v3684 = vpop.f32.mrf.mxu0
        %v3685 = vadd.f32 %v3611, %v3684
        %v3686 = vpop.f32.mrf.mxu0
        %3687 = vmatprep.mubr.f32.mxu0 0.0
        %3688 = vmatmul.mubr.f32.gmra.mxu0 %v3616
        %v3689 = vpop.f32.mrf.mxu0
        %v3690 = vadd.f32 %v3611, %v3689
        %v3691 = vpop.f32.mrf.mxu0
        %3692 = vdwg.mxu0
        %v3693 = vmul.f32 %v3685, %v464
        %v3694 = vmul.f32 %v3690, %v469
        %v3695 = vadd.f32 %v3693, %v3147
        %v3696 = vadd.f32 %v3694, %v3148
        %v3697 = vld [vmem:[#allocation2 + $0x520] sm:$0xff]
        %v3698 = vld [vmem:[#allocation2 + $0x528] sm:$0xff]
        %v3699 = vld [vmem:[#allocation2 + $0x530] sm:$0x1]
        %v3700 = vlaneseq
        %v3701 = vshrl.u32 %v3700, 7
        %v3702 = vsub.s32 0, %v3701
        %v3703 = vrot.slane %v3699, %v3702
        %v3705 = vsel %vm534, %v3695, 0
        %v3708 = vsel %vm534, %v3696, 0
        %3710 = vmatprep.subr.mxu0 0.0
        %3711 = vmatpush1.msra.mxu0 0.0
        %3712 = vmatprep.subr.mxu0 0.0
        %3713 = vmatpush1.msra.mxu0 0.0
        %3714 = vmatprep.subr.mxu0 0.0
        %3715 = vmatpush1.msra.mxu0 0.0
        %3716 = vmatprep.subr.mxu0 0.0
        %3717 = vmatpush1.msra.mxu0 0.0
        %3718 = vmatprep.subr.mxu0 0.0
        %3719 = vmatpush1.msra.mxu0 0.0
        %3720 = vmatprep.subr.mxu0 0.0
        %3721 = vmatpush1.msra.mxu0 0.0
        %3722 = vmatprep.subr.mxu0 0.0
        %3723 = vmatpush1.msra.mxu0 0.0
        %3724 = vmatprep.subr.mxu0 0.0
        %3725 = vmatpush1.msra.mxu0 0.0
        %3726 = vmatprep.subr.mxu0 0.0
        %3727 = vmatpush1.msra.mxu0 0.0
        %3728 = vmatprep.subr.mxu0 0.0
        %3729 = vmatpush1.msra.mxu0 0.0
        %3730 = vmatprep.subr.mxu0 0.0
        %3731 = vmatpush1.msra.mxu0 0.0
        %3732 = vmatprep.subr.mxu0 0.0
        %3733 = vmatpush1.msra.mxu0 0.0
        %3734 = vmatprep.subr.mxu0 0.0
        %3735 = vmatpush1.msra.mxu0 0.0
        %3736 = vmatprep.subr.mxu0 0.0
        %3737 = vmatpush1.msra.mxu0 0.0
        %3738 = vmatprep.subr.mxu0 0.0
        %3739 = vmatpush1.msra.mxu0 %v3698
        %3740 = vmatprep.subr.mxu0 0.0
        %3741 = vmatpush1.msra.mxu0 %v3697
        %3742 = vmatprep.subr.mxu0 0.0
        %3743 = vmatpush2.msra.mxu0 0.0
        %3744 = vmatprep.subr.mxu0 0.0
        %3745 = vmatpush2.msra.mxu0 0.0
        %3746 = vmatprep.subr.mxu0 0.0
        %3747 = vmatpush2.msra.mxu0 0.0
        %3748 = vmatprep.subr.mxu0 0.0
        %3749 = vmatpush2.msra.mxu0 0.0
        %3750 = vmatprep.subr.mxu0 0.0
        %3751 = vmatpush2.msra.mxu0 0.0
        %3752 = vmatprep.subr.mxu0 0.0
        %3753 = vmatpush2.msra.mxu0 0.0
        %3754 = vmatprep.subr.mxu0 0.0
        %3755 = vmatpush2.msra.mxu0 0.0
        %3756 = vmatprep.subr.mxu0 0.0
        %3757 = vmatpush2.msra.mxu0 0.0
        %3758 = vmatprep.subr.mxu0 0.0
        %3759 = vmatpush2.msra.mxu0 0.0
        %3760 = vmatprep.subr.mxu0 0.0
        %3761 = vmatpush2.msra.mxu0 0.0
        %3762 = vmatprep.subr.mxu0 0.0
        %3763 = vmatpush2.msra.mxu0 0.0
        %3764 = vmatprep.subr.mxu0 0.0
        %3765 = vmatpush2.msra.mxu0 0.0
        %3766 = vmatprep.subr.mxu0 0.0
        %3767 = vmatpush2.msra.mxu0 0.0
        %3768 = vmatprep.subr.mxu0 0.0
        %3769 = vmatpush2.msra.mxu0 0.0
        %3770 = vmatprep.subr.mxu0 0.0
        %3771 = vmatpush2.msra.mxu0 0.0
        %3772 = vmatprep.subr.mxu0 0.0
        %3773 = vmatpush2.msra.mxu0 0.0
        %3774 = vmatprep.mubr.f32.mxu0 0.0
        %3775 = vmatmul.mubr.f32.gmra.mxu0 %v3705
        %v3776 = vpop.f32.mrf.mxu0
        %v3777 = vadd.f32 %v3703, %v3776
        %v3778 = vpop.f32.mrf.mxu0
        %3779 = vmatprep.mubr.f32.mxu0 0.0
        %3780 = vmatmul.mubr.f32.gmra.mxu0 %v3708
        %v3781 = vpop.f32.mrf.mxu0
        %v3782 = vadd.f32 %v3703, %v3781
        %v3783 = vpop.f32.mrf.mxu0
        %3784 = vdwg.mxu0
        %v3785 = vadd.f32 %v3017, %v3777
        %v3786 = vadd.f32 %v3022, %v3782
        %v3787 = vmul.f32 %v3785, %v464
        %v3788 = vmul.f32 %v3786, %v469
        %v3791 = vrot.slane %v3787, 6
        %v3792 = vrot.slane %v3788, 6
        %v3793 = vsel %vm2045, %v3791, %v3792
        %v3796 = vsel %vm2045, 0.0, %v3791
        %v3797 = vrot.slane %v3787, 2
        %v3798 = vrot.slane %v3788, 2
        %v3799 = vsel %vm2052, %v3797, %v3798
        %v3801 = vsel %vm2052, %v3798, 0.0
        %3802 = vrot.lane.b32.xlu0 %v3787, 16
        %v3803 = vpop.permute.xlu0 %3802
        %3804 = vrot.lane.b32.xlu0 %v3788, 16
        %v3805 = vpop.permute.xlu0 %3804
        %3809 = vrot.lane.b32.xlu0 %v3799, 32
        %v3810 = vpop.permute.xlu0 %3809
        %3811 = vrot.lane.b32.xlu0 %v3801, 32
        %v3812 = vpop.permute.xlu0 %3811
        %v3815 = vsel %vm534, %v3796, %v3803
        %v3816 = vsel %vm534, %v3793, %v3805
        %v3817 = vsel %vm1384, %v3815, %v3810
        %v3818 = vsel %vm1384, %v3816, %v3812
        %v3819 = vld [vmem:[#allocation2 + $0x538] sm:$0xff]
        %v3820 = vld [vmem:[#allocation2 + $0x540] sm:$0xff]
        %v3821 = vld [vmem:[#allocation2 + $0x548] sm:$0xff]
        %v3822 = vld [vmem:[#allocation2 + $0x550] sm:$0xff]
        %v3823 = vld [vmem:[#allocation2 + $0x558] sm:$0xff]
        %v3824 = vld [vmem:[#allocation2 + $0x560] sm:$0xff]
        %v3825 = vld [vmem:[#allocation2 + $0x568] sm:$0x1]
        %v3826 = vlaneseq
        %v3827 = vshrl.u32 %v3826, 7
        %v3828 = vsub.s32 0, %v3827
        %v3829 = vrot.slane %v3825, %v3828
        %v3831 = vsel %vm1398, %v3817, 0
        %v3834 = vsel %vm1398, %v3818, 0
        %3836 = vmatprep.subr.mxu0 0.0
        %3837 = vmatpush1.msra.mxu0 0.0
        %3838 = vmatprep.subr.mxu0 0.0
        %3839 = vmatpush1.msra.mxu0 0.0
        %3840 = vmatprep.subr.mxu0 0.0
        %3841 = vmatpush1.msra.mxu0 0.0
        %3842 = vmatprep.subr.mxu0 0.0
        %3843 = vmatpush1.msra.mxu0 0.0
        %3844 = vmatprep.subr.mxu0 0.0
        %3845 = vmatpush1.msra.mxu0 0.0
        %3846 = vmatprep.subr.mxu0 0.0
        %3847 = vmatpush1.msra.mxu0 0.0
        %3848 = vmatprep.subr.mxu0 0.0
        %3849 = vmatpush1.msra.mxu0 0.0
        %3850 = vmatprep.subr.mxu0 0.0
        %3851 = vmatpush1.msra.mxu0 0.0
        %3852 = vmatprep.subr.mxu0 0.0
        %3853 = vmatpush1.msra.mxu0 0.0
        %3854 = vmatprep.subr.mxu0 0.0
        %3855 = vmatpush1.msra.mxu0 0.0
        %3856 = vmatprep.subr.mxu0 0.0
        %3857 = vmatpush1.msra.mxu0 %v3824
        %3858 = vmatprep.subr.mxu0 0.0
        %3859 = vmatpush1.msra.mxu0 %v3823
        %3860 = vmatprep.subr.mxu0 0.0
        %3861 = vmatpush1.msra.mxu0 %v3822
        %3862 = vmatprep.subr.mxu0 0.0
        %3863 = vmatpush1.msra.mxu0 %v3821
        %3864 = vmatprep.subr.mxu0 0.0
        %3865 = vmatpush1.msra.mxu0 %v3820
        %3866 = vmatprep.subr.mxu0 0.0
        %3867 = vmatpush1.msra.mxu0 %v3819
        %3868 = vmatprep.subr.mxu0 0.0
        %3869 = vmatpush2.msra.mxu0 0.0
        %3870 = vmatprep.subr.mxu0 0.0
        %3871 = vmatpush2.msra.mxu0 0.0
        %3872 = vmatprep.subr.mxu0 0.0
        %3873 = vmatpush2.msra.mxu0 0.0
        %3874 = vmatprep.subr.mxu0 0.0
        %3875 = vmatpush2.msra.mxu0 0.0
        %3876 = vmatprep.subr.mxu0 0.0
        %3877 = vmatpush2.msra.mxu0 0.0
        %3878 = vmatprep.subr.mxu0 0.0
        %3879 = vmatpush2.msra.mxu0 0.0
        %3880 = vmatprep.subr.mxu0 0.0
        %3881 = vmatpush2.msra.mxu0 0.0
        %3882 = vmatprep.subr.mxu0 0.0
        %3883 = vmatpush2.msra.mxu0 0.0
        %3884 = vmatprep.subr.mxu0 0.0
        %3885 = vmatpush2.msra.mxu0 0.0
        %3886 = vmatprep.subr.mxu0 0.0
        %3887 = vmatpush2.msra.mxu0 0.0
        %3888 = vmatprep.subr.mxu0 0.0
        %3889 = vmatpush2.msra.mxu0 0.0
        %3890 = vmatprep.subr.mxu0 0.0
        %3891 = vmatpush2.msra.mxu0 0.0
        %3892 = vmatprep.subr.mxu0 0.0
        %3893 = vmatpush2.msra.mxu0 0.0
        %3894 = vmatprep.subr.mxu0 0.0
        %3895 = vmatpush2.msra.mxu0 0.0
        %3896 = vmatprep.subr.mxu0 0.0
        %3897 = vmatpush2.msra.mxu0 0.0
        %3898 = vmatprep.subr.mxu0 0.0
        %3899 = vmatpush2.msra.mxu0 0.0
        %3900 = vmatprep.mubr.f32.mxu0 0.0
        %3901 = vmatmul.mubr.f32.gmra.mxu0 %v3831
        %v3902 = vpop.f32.mrf.mxu0
        %v3903 = vadd.f32 %v3829, %v3902
        %v3904 = vpop.f32.mrf.mxu0
        %3905 = vmatprep.mubr.f32.mxu0 0.0
        %3906 = vmatmul.mubr.f32.gmra.mxu0 %v3834
        %v3907 = vpop.f32.mrf.mxu0
        %v3908 = vadd.f32 %v3829, %v3907
        %v3909 = vpop.f32.mrf.mxu0
        %3910 = vdwg.mxu0
        %v3911 = vmax.f32 %v3903, 0.0
        %v3912 = vmax.f32 %v3908, 0.0
        %v3913 = vsel %vm534, %v3911, 0.0
        %v3914 = vsel %vm534, %v3912, 0.0
        %v3915 = vadd.f32 %v3913, %v3914
        %v3916 = vrot.slane %v3915, 4
        %v3917 = vadd.f32 %v3915, %v3916
        %v3918 = vrot.slane %v3917, 2
        %v3919 = vadd.f32 %v3917, %v3918
        %v3920 = vrot.slane %v3919, 1
        %v3921 = vadd.f32 %v3919, %v3920
        %v3922 = vmul.f32 %v3921, %v1491
        %v3923 = vsub.f32 %v3911, %v3922
        %v3924 = vsub.f32 %v3912, %v3922
        %v3925 = vmul.f32 %v3923, %v3923
        %v3926 = vmul.f32 %v3924, %v3924
        %v3927 = vsel %vm534, %v3925, 0.0
        %v3928 = vsel %vm534, %v3926, 0.0
        %v3929 = vadd.f32 %v3927, %v3928
        %v3930 = vrot.slane %v3929, 4
        %v3931 = vadd.f32 %v3929, %v3930
        %v3932 = vrot.slane %v3931, 2
        %v3933 = vadd.f32 %v3931, %v3932
        %v3934 = vrot.slane %v3933, 1
        %v3935 = vadd.f32 %v3933, %v3934
        %v3936 = vmul.f32 %v3935, %v1491
        %v3937 = vadd.f32 %v3936, 1e-05
        %v3938 = vrsqrt.pop %v3937
        %v3939 = vmul.f32 %v3923, %v3938
        %v3940 = vmul.f32 %v3924, %v3938
        %v3941 = vld [vmem:[#allocation2 + $0x570] sm:$0xff]
        %v3942 = vld [vmem:[#allocation2 + $0x578] sm:$0xff]
        %v3943 = vld [vmem:[#allocation2 + $0x580] sm:$0x1]
        %v3944 = vlaneseq
        %v3945 = vshrl.u32 %v3944, 7
        %v3946 = vsub.s32 0, %v3945
        %v3947 = vrot.slane %v3943, %v3946
        %v3949 = vsel %vm534, %v3939, 0
        %v3952 = vsel %vm534, %v3940, 0
        %3954 = vmatprep.subr.mxu0 0.0
        %3955 = vmatpush1.msra.mxu0 0.0
        %3956 = vmatprep.subr.mxu0 0.0
        %3957 = vmatpush1.msra.mxu0 0.0
        %3958 = vmatprep.subr.mxu0 0.0
        %3959 = vmatpush1.msra.mxu0 0.0
        %3960 = vmatprep.subr.mxu0 0.0
        %3961 = vmatpush1.msra.mxu0 0.0
        %3962 = vmatprep.subr.mxu0 0.0
        %3963 = vmatpush1.msra.mxu0 0.0
        %3964 = vmatprep.subr.mxu0 0.0
        %3965 = vmatpush1.msra.mxu0 0.0
        %3966 = vmatprep.subr.mxu0 0.0
        %3967 = vmatpush1.msra.mxu0 0.0
        %3968 = vmatprep.subr.mxu0 0.0
        %3969 = vmatpush1.msra.mxu0 0.0
        %3970 = vmatprep.subr.mxu0 0.0
        %3971 = vmatpush1.msra.mxu0 0.0
        %3972 = vmatprep.subr.mxu0 0.0
        %3973 = vmatpush1.msra.mxu0 0.0
        %3974 = vmatprep.subr.mxu0 0.0
        %3975 = vmatpush1.msra.mxu0 0.0
        %3976 = vmatprep.subr.mxu0 0.0
        %3977 = vmatpush1.msra.mxu0 0.0
        %3978 = vmatprep.subr.mxu0 0.0
        %3979 = vmatpush1.msra.mxu0 0.0
        %3980 = vmatprep.subr.mxu0 0.0
        %3981 = vmatpush1.msra.mxu0 0.0
        %3982 = vmatprep.subr.mxu0 0.0
        %3983 = vmatpush1.msra.mxu0 %v3942
        %3984 = vmatprep.subr.mxu0 0.0
        %3985 = vmatpush1.msra.mxu0 %v3941
        %3986 = vmatprep.subr.mxu0 0.0
        %3987 = vmatpush2.msra.mxu0 0.0
        %3988 = vmatprep.subr.mxu0 0.0
        %3989 = vmatpush2.msra.mxu0 0.0
        %3990 = vmatprep.subr.mxu0 0.0
        %3991 = vmatpush2.msra.mxu0 0.0
        %3992 = vmatprep.subr.mxu0 0.0
        %3993 = vmatpush2.msra.mxu0 0.0
        %3994 = vmatprep.subr.mxu0 0.0
        %3995 = vmatpush2.msra.mxu0 0.0
        %3996 = vmatprep.subr.mxu0 0.0
        %3997 = vmatpush2.msra.mxu0 0.0
        %3998 = vmatprep.subr.mxu0 0.0
        %3999 = vmatpush2.msra.mxu0 0.0
        %4000 = vmatprep.subr.mxu0 0.0
        %4001 = vmatpush2.msra.mxu0 0.0
        %4002 = vmatprep.subr.mxu0 0.0
        %4003 = vmatpush2.msra.mxu0 0.0
        %4004 = vmatprep.subr.mxu0 0.0
        %4005 = vmatpush2.msra.mxu0 0.0
        %4006 = vmatprep.subr.mxu0 0.0
        %4007 = vmatpush2.msra.mxu0 0.0
        %4008 = vmatprep.subr.mxu0 0.0
        %4009 = vmatpush2.msra.mxu0 0.0
        %4010 = vmatprep.subr.mxu0 0.0
        %4011 = vmatpush2.msra.mxu0 0.0
        %4012 = vmatprep.subr.mxu0 0.0
        %4013 = vmatpush2.msra.mxu0 0.0
        %4014 = vmatprep.subr.mxu0 0.0
        %4015 = vmatpush2.msra.mxu0 0.0
        %4016 = vmatprep.subr.mxu0 0.0
        %4017 = vmatpush2.msra.mxu0 0.0
        %4018 = vmatprep.mubr.f32.mxu0 0.0
        %4019 = vmatmul.mubr.f32.gmra.mxu0 %v3949
        %v4020 = vpop.f32.mrf.mxu0
        %v4021 = vadd.f32 %v3947, %v4020
        %v4022 = vpop.f32.mrf.mxu0
        %4023 = vmatprep.mubr.f32.mxu0 0.0
        %4024 = vmatmul.mubr.f32.gmra.mxu0 %v3952
        %v4025 = vpop.f32.mrf.mxu0
        %v4026 = vadd.f32 %v3947, %v4025
        %v4027 = vpop.f32.mrf.mxu0
        %4028 = vdwg.mxu0
        %v4029 = vxor.u32 %v4021, 2147483648
        %v4030 = vxor.u32 %v4026, 2147483648
        %v4031 = vmul.f32 %v4029, 1.442695
        %v4032 = vpow.pop %v4031
        %v4033 = vmul.f32 %v4030, 1.442695
        %v4034 = vpow.pop %v4033
        %v4035 = vadd.f32 %v4032, 1.0
        %v4036 = vadd.f32 %v4034, 1.0
        %v4037 = vrcp.pop %v4035
        %v4038 = vmul.f32 1.0, %v4037
        %v4039 = vrcp.pop %v4036
        %v4040 = vmul.f32 1.0, %v4039
        %v4041 = vld [vmem:[#allocation2 + $0x588] sm:$0xff]
        %v4042 = vld [vmem:[#allocation2 + $0x590] sm:$0xff]
        %v4043 = vld [vmem:[#allocation2 + $0x598] sm:$0x1]
        %v4044 = vlaneseq
        %v4045 = vshrl.u32 %v4044, 7
        %v4046 = vsub.s32 0, %v4045
        %v4047 = vrot.slane %v4043, %v4046
        %4048 = vmatprep.subr.mxu0 0.0
        %4049 = vmatpush1.msra.mxu0 0.0
        %4050 = vmatprep.subr.mxu0 0.0
        %4051 = vmatpush1.msra.mxu0 0.0
        %4052 = vmatprep.subr.mxu0 0.0
        %4053 = vmatpush1.msra.mxu0 0.0
        %4054 = vmatprep.subr.mxu0 0.0
        %4055 = vmatpush1.msra.mxu0 0.0
        %4056 = vmatprep.subr.mxu0 0.0
        %4057 = vmatpush1.msra.mxu0 0.0
        %4058 = vmatprep.subr.mxu0 0.0
        %4059 = vmatpush1.msra.mxu0 0.0
        %4060 = vmatprep.subr.mxu0 0.0
        %4061 = vmatpush1.msra.mxu0 0.0
        %4062 = vmatprep.subr.mxu0 0.0
        %4063 = vmatpush1.msra.mxu0 0.0
        %4064 = vmatprep.subr.mxu0 0.0
        %4065 = vmatpush1.msra.mxu0 0.0
        %4066 = vmatprep.subr.mxu0 0.0
        %4067 = vmatpush1.msra.mxu0 0.0
        %4068 = vmatprep.subr.mxu0 0.0
        %4069 = vmatpush1.msra.mxu0 0.0
        %4070 = vmatprep.subr.mxu0 0.0
        %4071 = vmatpush1.msra.mxu0 0.0
        %4072 = vmatprep.subr.mxu0 0.0
        %4073 = vmatpush1.msra.mxu0 0.0
        %4074 = vmatprep.subr.mxu0 0.0
        %4075 = vmatpush1.msra.mxu0 0.0
        %4076 = vmatprep.subr.mxu0 0.0
        %4077 = vmatpush1.msra.mxu0 %v4042
        %4078 = vmatprep.subr.mxu0 0.0
        %4079 = vmatpush1.msra.mxu0 %v4041
        %4080 = vmatprep.subr.mxu0 0.0
        %4081 = vmatpush2.msra.mxu0 0.0
        %4082 = vmatprep.subr.mxu0 0.0
        %4083 = vmatpush2.msra.mxu0 0.0
        %4084 = vmatprep.subr.mxu0 0.0
        %4085 = vmatpush2.msra.mxu0 0.0
        %4086 = vmatprep.subr.mxu0 0.0
        %4087 = vmatpush2.msra.mxu0 0.0
        %4088 = vmatprep.subr.mxu0 0.0
        %4089 = vmatpush2.msra.mxu0 0.0
        %4090 = vmatprep.subr.mxu0 0.0
        %4091 = vmatpush2.msra.mxu0 0.0
        %4092 = vmatprep.subr.mxu0 0.0
        %4093 = vmatpush2.msra.mxu0 0.0
        %4094 = vmatprep.subr.mxu0 0.0
        %4095 = vmatpush2.msra.mxu0 0.0
        %4096 = vmatprep.subr.mxu0 0.0
        %4097 = vmatpush2.msra.mxu0 0.0
        %4098 = vmatprep.subr.mxu0 0.0
        %4099 = vmatpush2.msra.mxu0 0.0
        %4100 = vmatprep.subr.mxu0 0.0
        %4101 = vmatpush2.msra.mxu0 0.0
        %4102 = vmatprep.subr.mxu0 0.0
        %4103 = vmatpush2.msra.mxu0 0.0
        %4104 = vmatprep.subr.mxu0 0.0
        %4105 = vmatpush2.msra.mxu0 0.0
        %4106 = vmatprep.subr.mxu0 0.0
        %4107 = vmatpush2.msra.mxu0 0.0
        %4108 = vmatprep.subr.mxu0 0.0
        %4109 = vmatpush2.msra.mxu0 0.0
        %4110 = vmatprep.subr.mxu0 0.0
        %4111 = vmatpush2.msra.mxu0 0.0
        %4112 = vmatprep.mubr.f32.mxu0 0.0
        %4113 = vmatmul.mubr.f32.gmra.mxu0 %v3285
        %v4114 = vpop.f32.mrf.mxu0
        %v4115 = vadd.f32 %v4047, %v4114
        %v4116 = vpop.f32.mrf.mxu0
        %4117 = vmatprep.mubr.f32.mxu0 0.0
        %4118 = vmatmul.mubr.f32.gmra.mxu0 %v3288
        %v4119 = vpop.f32.mrf.mxu0
        %v4120 = vadd.f32 %v4047, %v4119
        %v4121 = vpop.f32.mrf.mxu0
        %4122 = vdwg.mxu0
        %v4123 = vsel %vm534, %v4115, 1.0
        %v4124 = vsel %vm534, %v4120, 1.0
        %4127 = vrot.lane.b32.xlu0 %v4038, 112
        %v4128 = vpop.permute.xlu0 %4127
        %4129 = vrot.lane.b32.xlu0 %v4040, 112
        %v4130 = vpop.permute.xlu0 %4129
        %4133 = vxpose.xlu0.b32.start [1/16] %v4128, 128
        %4134 = vxpose.xlu0.b32.cont [2/16] %v4130, 128
        %4135 = vxpose.xlu0.b32.cont [3/16] 0.0, 128
        %4136 = vxpose.xlu0.b32.cont [4/16] 0.0, 128
        %4137 = vxpose.xlu0.b32.cont [5/16] 0.0, 128
        %4138 = vxpose.xlu0.b32.cont [6/16] 0.0, 128
        %4139 = vxpose.xlu0.b32.cont [7/16] 0.0, 128
        %4140 = vxpose.xlu0.b32.cont [8/16] 0.0, 128
        %4141 = vxpose.xlu0.b32.cont [9/16] 0.0, 128
        %4142 = vxpose.xlu0.b32.cont [10/16] 0.0, 128
        %4143 = vxpose.xlu0.b32.cont [11/16] 0.0, 128
        %4144 = vxpose.xlu0.b32.cont [12/16] 0.0, 128
        %4145 = vxpose.xlu0.b32.cont [13/16] 0.0, 128
        %4146 = vxpose.xlu0.b32.cont [14/16] 0.0, 128
        %4147 = vxpose.xlu0.b32.cont [15/16] 0.0, 128
        %4148 = vxpose.xlu0.b32.end [16/16] 0.0, 128
        %v4149 = vpop.trf.xlu0
        %v4150 = vpop.trf.xlu0
        %v4151 = vpop.trf.xlu0
        %v4152 = vpop.trf.xlu0
        %v4153 = vpop.trf.xlu0
        %v4154 = vpop.trf.xlu0
        %v4155 = vpop.trf.xlu0
        %v4156 = vpop.trf.xlu0
        %v4157 = vpop.trf.xlu0
        %v4158 = vpop.trf.xlu0
        %v4159 = vpop.trf.xlu0
        %v4160 = vpop.trf.xlu0
        %v4161 = vpop.trf.xlu0
        %v4162 = vpop.trf.xlu0
        %v4163 = vpop.trf.xlu0
        %v4164 = vpop.trf.xlu0
        %v4166 = vsel %vm534, %v4149, 0
        %v4169 = vsel %vm534, %v4150, 0
        %4171 = vmatprep.subr.mxu0 0.0
        %4172 = vmatpush1.msra.mxu0 0.0
        %4173 = vmatprep.subr.mxu0 0.0
        %4174 = vmatpush1.msra.mxu0 0.0
        %4175 = vmatprep.subr.mxu0 0.0
        %4176 = vmatpush1.msra.mxu0 0.0
        %4177 = vmatprep.subr.mxu0 0.0
        %4178 = vmatpush1.msra.mxu0 0.0
        %4179 = vmatprep.subr.mxu0 0.0
        %4180 = vmatpush1.msra.mxu0 0.0
        %4181 = vmatprep.subr.mxu0 0.0
        %4182 = vmatpush1.msra.mxu0 0.0
        %4183 = vmatprep.subr.mxu0 0.0
        %4184 = vmatpush1.msra.mxu0 0.0
        %4185 = vmatprep.subr.mxu0 0.0
        %4186 = vmatpush1.msra.mxu0 0.0
        %4187 = vmatprep.subr.mxu0 0.0
        %4188 = vmatpush1.msra.mxu0 0.0
        %4189 = vmatprep.subr.mxu0 0.0
        %4190 = vmatpush1.msra.mxu0 0.0
        %4191 = vmatprep.subr.mxu0 0.0
        %4192 = vmatpush1.msra.mxu0 0.0
        %4193 = vmatprep.subr.mxu0 0.0
        %4194 = vmatpush1.msra.mxu0 0.0
        %4195 = vmatprep.subr.mxu0 0.0
        %4196 = vmatpush1.msra.mxu0 0.0
        %4197 = vmatprep.subr.mxu0 0.0
        %4198 = vmatpush1.msra.mxu0 0.0
        %4199 = vmatprep.subr.mxu0 0.0
        %4200 = vmatpush1.msra.mxu0 %v4124
        %4201 = vmatprep.subr.mxu0 0.0
        %4202 = vmatpush1.msra.mxu0 %v4123
        %4203 = vmatprep.subr.mxu0 0.0
        %4204 = vmatpush2.msra.mxu0 0.0
        %4205 = vmatprep.subr.mxu0 0.0
        %4206 = vmatpush2.msra.mxu0 0.0
        %4207 = vmatprep.subr.mxu0 0.0
        %4208 = vmatpush2.msra.mxu0 0.0
        %4209 = vmatprep.subr.mxu0 0.0
        %4210 = vmatpush2.msra.mxu0 0.0
        %4211 = vmatprep.subr.mxu0 0.0
        %4212 = vmatpush2.msra.mxu0 0.0
        %4213 = vmatprep.subr.mxu0 0.0
        %4214 = vmatpush2.msra.mxu0 0.0
        %4215 = vmatprep.subr.mxu0 0.0
        %4216 = vmatpush2.msra.mxu0 0.0
        %4217 = vmatprep.subr.mxu0 0.0
        %4218 = vmatpush2.msra.mxu0 0.0
        %4219 = vmatprep.subr.mxu0 0.0
        %4220 = vmatpush2.msra.mxu0 0.0
        %4221 = vmatprep.subr.mxu0 0.0
        %4222 = vmatpush2.msra.mxu0 0.0
        %4223 = vmatprep.subr.mxu0 0.0
        %4224 = vmatpush2.msra.mxu0 0.0
        %4225 = vmatprep.subr.mxu0 0.0
        %4226 = vmatpush2.msra.mxu0 0.0
        %4227 = vmatprep.subr.mxu0 0.0
        %4228 = vmatpush2.msra.mxu0 0.0
        %4229 = vmatprep.subr.mxu0 0.0
        %4230 = vmatpush2.msra.mxu0 0.0
        %4231 = vmatprep.subr.mxu0 0.0
        %4232 = vmatpush2.msra.mxu0 0.0
        %4233 = vmatprep.subr.mxu0 0.0
        %4234 = vmatpush2.msra.mxu0 0.0
        %4235 = vmatprep.mubr.f32.mxu0 0.0
        %4236 = vmatmul.mubr.f32.gmra.mxu0 %v4166
        %v4237 = vpop.f32.mrf.mxu0
        %v4238 = vadd.f32 0.0, %v4237
        %v4239 = vpop.f32.mrf.mxu0
        %4240 = vmatprep.mubr.f32.mxu0 0.0
        %4241 = vmatmul.mubr.f32.gmra.mxu0 %v4169
        %v4242 = vpop.f32.mrf.mxu0
        %v4243 = vadd.f32 0.0, %v4242
        %v4244 = vpop.f32.mrf.mxu0
        %4245 = vdwg.mxu0
        %v4246 = vmul.f32 %v4238, %v237
        %v4247 = vmul.f32 %v4243, %v238
        %v4248 = vadd.f32 %v4238, 1e-06
        %v4249 = vadd.f32 %v4243, 1e-06
        %4251 = vset.pattern.permute.xlu0 16
        %4252 = vperm.xlu0 %4251, %v4248
        %v4253 = vpop.permute.xlu0 %4252
        %4256 = vset.pattern.permute.xlu0 16
        %4257 = vperm.xlu0 %4256, %v4249
        %v4258 = vpop.permute.xlu0 %4257
        %v4260 = vmul.f32 %v237, %v4253
        %v4261 = vmul.f32 %v238, %v4258
        %4264 = vrot.lane.b32.xlu0 %v4260, 16
        %v4265 = vpop.permute.xlu0 %4264
        %4266 = vrot.lane.b32.xlu0 %v4261, 16
        %v4267 = vpop.permute.xlu0 %4266
        %v4270 = vsel %vm534, %v4246, %v4265
        %v4271 = vsel %vm534, %v4247, %v4267
        %v4272 = vsel %vm534, %v4038, 0
        %v4274 = vsel %vm534, %v4040, 0
        %4276 = vmatprep.subr.mxu0 0.0
        %4277 = vmatpush1.msra.mxu0 0.0
        %4278 = vmatprep.subr.mxu0 0.0
        %4279 = vmatpush1.msra.mxu0 0.0
        %4280 = vmatprep.subr.mxu0 0.0
        %4281 = vmatpush1.msra.mxu0 0.0
        %4282 = vmatprep.subr.mxu0 0.0
        %4283 = vmatpush1.msra.mxu0 0.0
        %4284 = vmatprep.subr.mxu0 0.0
        %4285 = vmatpush1.msra.mxu0 0.0
        %4286 = vmatprep.subr.mxu0 0.0
        %4287 = vmatpush1.msra.mxu0 0.0
        %4288 = vmatprep.subr.mxu0 0.0
        %4289 = vmatpush1.msra.mxu0 0.0
        %4290 = vmatprep.subr.mxu0 0.0
        %4291 = vmatpush1.msra.mxu0 0.0
        %4292 = vmatprep.subr.mxu0 0.0
        %4293 = vmatpush1.msra.mxu0 0.0
        %4294 = vmatprep.subr.mxu0 0.0
        %4295 = vmatpush1.msra.mxu0 0.0
        %4296 = vmatprep.subr.mxu0 0.0
        %4297 = vmatpush1.msra.mxu0 0.0
        %4298 = vmatprep.subr.mxu0 0.0
        %4299 = vmatpush1.msra.mxu0 0.0
        %4300 = vmatprep.subr.mxu0 0.0
        %4301 = vmatpush1.msra.mxu0 0.0
        %4302 = vmatprep.subr.mxu0 0.0
        %4303 = vmatpush1.msra.mxu0 0.0
        %4304 = vmatprep.subr.mxu0 0.0
        %4305 = vmatpush1.msra.mxu0 %v4271
        %4306 = vmatprep.subr.mxu0 0.0
        %4307 = vmatpush1.msra.mxu0 %v4270
        %4308 = vmatprep.subr.mxu0 0.0
        %4309 = vmatpush2.msra.mxu0 0.0
        %4310 = vmatprep.subr.mxu0 0.0
        %4311 = vmatpush2.msra.mxu0 0.0
        %4312 = vmatprep.subr.mxu0 0.0
        %4313 = vmatpush2.msra.mxu0 0.0
        %4314 = vmatprep.subr.mxu0 0.0
        %4315 = vmatpush2.msra.mxu0 0.0
        %4316 = vmatprep.subr.mxu0 0.0
        %4317 = vmatpush2.msra.mxu0 0.0
        %4318 = vmatprep.subr.mxu0 0.0
        %4319 = vmatpush2.msra.mxu0 0.0
        %4320 = vmatprep.subr.mxu0 0.0
        %4321 = vmatpush2.msra.mxu0 0.0
        %4322 = vmatprep.subr.mxu0 0.0
        %4323 = vmatpush2.msra.mxu0 0.0
        %4324 = vmatprep.subr.mxu0 0.0
        %4325 = vmatpush2.msra.mxu0 0.0
        %4326 = vmatprep.subr.mxu0 0.0
        %4327 = vmatpush2.msra.mxu0 0.0
        %4328 = vmatprep.subr.mxu0 0.0
        %4329 = vmatpush2.msra.mxu0 0.0
        %4330 = vmatprep.subr.mxu0 0.0
        %4331 = vmatpush2.msra.mxu0 0.0
        %4332 = vmatprep.subr.mxu0 0.0
        %4333 = vmatpush2.msra.mxu0 0.0
        %4334 = vmatprep.subr.mxu0 0.0
        %4335 = vmatpush2.msra.mxu0 0.0
        %4336 = vmatprep.subr.mxu0 0.0
        %4337 = vmatpush2.msra.mxu0 0.0
        %4338 = vmatprep.subr.mxu0 0.0
        %4339 = vmatpush2.msra.mxu0 0.0
        %4340 = vmatprep.mubr.f32.mxu0 0.0
        %4341 = vmatmul.mubr.f32.gmra.mxu0 %v4272
        %v4342 = vpop.f32.mrf.mxu0
        %v4343 = vadd.f32 0.0, %v4342
        %v4344 = vpop.f32.mrf.mxu0
        %4345 = vmatprep.mubr.f32.mxu0 0.0
        %4346 = vmatmul.mubr.f32.gmra.mxu0 %v4274
        %v4347 = vpop.f32.mrf.mxu0
        %v4348 = vadd.f32 0.0, %v4347
        %v4349 = vpop.f32.mrf.mxu0
        %4350 = vdwg.mxu0
        %4353 = vrot.lane.b32.xlu0 %v4343, 112
        %v4354 = vpop.permute.xlu0 %4353
        %4355 = vrot.lane.b32.xlu0 %v4348, 112
        %v4356 = vpop.permute.xlu0 %4355
        %v4359 = vrcp.pop %v4354
        %v4360 = vmul.f32 %v4343, %v4359
        %v4361 = vrcp.pop %v4356
        %v4362 = vmul.f32 %v4348, %v4361
        %v4363 = vld [vmem:[#allocation2 + $0x5a0] sm:$0xff]
        %v4364 = vld [vmem:[#allocation2 + $0x5a8] sm:$0xff]
        %v4365 = vld [vmem:[#allocation2 + $0x5b0] sm:$0x1]
        %v4366 = vlaneseq
        %v4367 = vshrl.u32 %v4366, 7
        %v4368 = vsub.s32 0, %v4367
        %v4369 = vrot.slane %v4365, %v4368
        %v4371 = vsel %vm534, %v4360, 0
        %v4374 = vsel %vm534, %v4362, 0
        %4376 = vmatprep.subr.mxu0 0.0
        %4377 = vmatpush1.msra.mxu0 0.0
        %4378 = vmatprep.subr.mxu0 0.0
        %4379 = vmatpush1.msra.mxu0 0.0
        %4380 = vmatprep.subr.mxu0 0.0
        %4381 = vmatpush1.msra.mxu0 0.0
        %4382 = vmatprep.subr.mxu0 0.0
        %4383 = vmatpush1.msra.mxu0 0.0
        %4384 = vmatprep.subr.mxu0 0.0
        %4385 = vmatpush1.msra.mxu0 0.0
        %4386 = vmatprep.subr.mxu0 0.0
        %4387 = vmatpush1.msra.mxu0 0.0
        %4388 = vmatprep.subr.mxu0 0.0
        %4389 = vmatpush1.msra.mxu0 0.0
        %4390 = vmatprep.subr.mxu0 0.0
        %4391 = vmatpush1.msra.mxu0 0.0
        %4392 = vmatprep.subr.mxu0 0.0
        %4393 = vmatpush1.msra.mxu0 0.0
        %4394 = vmatprep.subr.mxu0 0.0
        %4395 = vmatpush1.msra.mxu0 0.0
        %4396 = vmatprep.subr.mxu0 0.0
        %4397 = vmatpush1.msra.mxu0 0.0
        %4398 = vmatprep.subr.mxu0 0.0
        %4399 = vmatpush1.msra.mxu0 0.0
        %4400 = vmatprep.subr.mxu0 0.0
        %4401 = vmatpush1.msra.mxu0 0.0
        %4402 = vmatprep.subr.mxu0 0.0
        %4403 = vmatpush1.msra.mxu0 0.0
        %4404 = vmatprep.subr.mxu0 0.0
        %4405 = vmatpush1.msra.mxu0 %v4364
        %4406 = vmatprep.subr.mxu0 0.0
        %4407 = vmatpush1.msra.mxu0 %v4363
        %4408 = vmatprep.subr.mxu0 0.0
        %4409 = vmatpush2.msra.mxu0 0.0
        %4410 = vmatprep.subr.mxu0 0.0
        %4411 = vmatpush2.msra.mxu0 0.0
        %4412 = vmatprep.subr.mxu0 0.0
        %4413 = vmatpush2.msra.mxu0 0.0
        %4414 = vmatprep.subr.mxu0 0.0
        %4415 = vmatpush2.msra.mxu0 0.0
        %4416 = vmatprep.subr.mxu0 0.0
        %4417 = vmatpush2.msra.mxu0 0.0
        %4418 = vmatprep.subr.mxu0 0.0
        %4419 = vmatpush2.msra.mxu0 0.0
        %4420 = vmatprep.subr.mxu0 0.0
        %4421 = vmatpush2.msra.mxu0 0.0
        %4422 = vmatprep.subr.mxu0 0.0
        %4423 = vmatpush2.msra.mxu0 0.0
        %4424 = vmatprep.subr.mxu0 0.0
        %4425 = vmatpush2.msra.mxu0 0.0
        %4426 = vmatprep.subr.mxu0 0.0
        %4427 = vmatpush2.msra.mxu0 0.0
        %4428 = vmatprep.subr.mxu0 0.0
        %4429 = vmatpush2.msra.mxu0 0.0
        %4430 = vmatprep.subr.mxu0 0.0
        %4431 = vmatpush2.msra.mxu0 0.0
        %4432 = vmatprep.subr.mxu0 0.0
        %4433 = vmatpush2.msra.mxu0 0.0
        %4434 = vmatprep.subr.mxu0 0.0
        %4435 = vmatpush2.msra.mxu0 0.0
        %4436 = vmatprep.subr.mxu0 0.0
        %4437 = vmatpush2.msra.mxu0 0.0
        %4438 = vmatprep.subr.mxu0 0.0
        %4439 = vmatpush2.msra.mxu0 0.0
        %4440 = vmatprep.mubr.f32.mxu0 0.0
        %4441 = vmatmul.mubr.f32.gmra.mxu0 %v4371
        %v4442 = vpop.f32.mrf.mxu0
        %v4443 = vadd.f32 %v4369, %v4442
        %v4444 = vpop.f32.mrf.mxu0
        %4445 = vmatprep.mubr.f32.mxu0 0.0
        %4446 = vmatmul.mubr.f32.gmra.mxu0 %v4374
        %v4447 = vpop.f32.mrf.mxu0
        %v4448 = vadd.f32 %v4369, %v4447
        %v4449 = vpop.f32.mrf.mxu0
        %4450 = vdwg.mxu0
        %v4451 = vmul.f32 %v4443, %v464
        %v4452 = vmul.f32 %v4448, %v469
        %v4453 = vadd.f32 %v4451, %v3911
        %v4454 = vadd.f32 %v4452, %v3912
        %v4455 = vld [vmem:[#allocation2 + $0x5b8] sm:$0xff]
        %v4456 = vld [vmem:[#allocation2 + $0x5c0] sm:$0xff]
        %v4457 = vld [vmem:[#allocation2 + $0x5c8] sm:$0x1]
        %v4458 = vlaneseq
        %v4459 = vshrl.u32 %v4458, 7
        %v4460 = vsub.s32 0, %v4459
        %v4461 = vrot.slane %v4457, %v4460
        %v4463 = vsel %vm534, %v4453, 0
        %v4466 = vsel %vm534, %v4454, 0
        %4468 = vmatprep.subr.mxu0 0.0
        %4469 = vmatpush1.msra.mxu0 0.0
        %4470 = vmatprep.subr.mxu0 0.0
        %4471 = vmatpush1.msra.mxu0 0.0
        %4472 = vmatprep.subr.mxu0 0.0
        %4473 = vmatpush1.msra.mxu0 0.0
        %4474 = vmatprep.subr.mxu0 0.0
        %4475 = vmatpush1.msra.mxu0 0.0
        %4476 = vmatprep.subr.mxu0 0.0
        %4477 = vmatpush1.msra.mxu0 0.0
        %4478 = vmatprep.subr.mxu0 0.0
        %4479 = vmatpush1.msra.mxu0 0.0
        %4480 = vmatprep.subr.mxu0 0.0
        %4481 = vmatpush1.msra.mxu0 0.0
        %4482 = vmatprep.subr.mxu0 0.0
        %4483 = vmatpush1.msra.mxu0 0.0
        %4484 = vmatprep.subr.mxu0 0.0
        %4485 = vmatpush1.msra.mxu0 0.0
        %4486 = vmatprep.subr.mxu0 0.0
        %4487 = vmatpush1.msra.mxu0 0.0
        %4488 = vmatprep.subr.mxu0 0.0
        %4489 = vmatpush1.msra.mxu0 0.0
        %4490 = vmatprep.subr.mxu0 0.0
        %4491 = vmatpush1.msra.mxu0 0.0
        %4492 = vmatprep.subr.mxu0 0.0
        %4493 = vmatpush1.msra.mxu0 0.0
        %4494 = vmatprep.subr.mxu0 0.0
        %4495 = vmatpush1.msra.mxu0 0.0
        %4496 = vmatprep.subr.mxu0 0.0
        %4497 = vmatpush1.msra.mxu0 %v4456
        %4498 = vmatprep.subr.mxu0 0.0
        %4499 = vmatpush1.msra.mxu0 %v4455
        %4500 = vmatprep.subr.mxu0 0.0
        %4501 = vmatpush2.msra.mxu0 0.0
        %4502 = vmatprep.subr.mxu0 0.0
        %4503 = vmatpush2.msra.mxu0 0.0
        %4504 = vmatprep.subr.mxu0 0.0
        %4505 = vmatpush2.msra.mxu0 0.0
        %4506 = vmatprep.subr.mxu0 0.0
        %4507 = vmatpush2.msra.mxu0 0.0
        %4508 = vmatprep.subr.mxu0 0.0
        %4509 = vmatpush2.msra.mxu0 0.0
        %4510 = vmatprep.subr.mxu0 0.0
        %4511 = vmatpush2.msra.mxu0 0.0
        %4512 = vmatprep.subr.mxu0 0.0
        %4513 = vmatpush2.msra.mxu0 0.0
        %4514 = vmatprep.subr.mxu0 0.0
        %4515 = vmatpush2.msra.mxu0 0.0
        %4516 = vmatprep.subr.mxu0 0.0
        %4517 = vmatpush2.msra.mxu0 0.0
        %4518 = vmatprep.subr.mxu0 0.0
        %4519 = vmatpush2.msra.mxu0 0.0
        %4520 = vmatprep.subr.mxu0 0.0
        %4521 = vmatpush2.msra.mxu0 0.0
        %4522 = vmatprep.subr.mxu0 0.0
        %4523 = vmatpush2.msra.mxu0 0.0
        %4524 = vmatprep.subr.mxu0 0.0
        %4525 = vmatpush2.msra.mxu0 0.0
        %4526 = vmatprep.subr.mxu0 0.0
        %4527 = vmatpush2.msra.mxu0 0.0
        %4528 = vmatprep.subr.mxu0 0.0
        %4529 = vmatpush2.msra.mxu0 0.0
        %4530 = vmatprep.subr.mxu0 0.0
        %4531 = vmatpush2.msra.mxu0 0.0
        %4532 = vmatprep.mubr.f32.mxu0 0.0
        %4533 = vmatmul.mubr.f32.gmra.mxu0 %v4463
        %v4534 = vpop.f32.mrf.mxu0
        %v4535 = vadd.f32 %v4461, %v4534
        %v4536 = vpop.f32.mrf.mxu0
        %4537 = vmatprep.mubr.f32.mxu0 0.0
        %4538 = vmatmul.mubr.f32.gmra.mxu0 %v4466
        %v4539 = vpop.f32.mrf.mxu0
        %v4540 = vadd.f32 %v4461, %v4539
        %v4541 = vpop.f32.mrf.mxu0
        %4542 = vdwg.mxu0
        %v4543 = vadd.f32 %v3787, %v4535
        %v4544 = vadd.f32 %v3788, %v4540
        %v4545 = vmul.f32 %v4543, %v464
        %v4546 = vmul.f32 %v4544, %v469
        %v4547 = vld [vmem:[#allocation2 + $0x5d0] sm:$0xff]
        %v4548 = vld [vmem:[#allocation2 + $0x5d8] sm:$0xff]
        %v4549 = vld [vmem:[#allocation2 + $0x5e0] sm:$0x1]
        %v4550 = vlaneseq
        %v4551 = vshrl.u32 %v4550, 7
        %v4552 = vsub.s32 0, %v4551
        %v4553 = vrot.slane %v4549, %v4552
        %v4555 = vsel %vm534, %v4545, 0
        %v4558 = vsel %vm534, %v4546, 0
        %4560 = vmatprep.subr.mxu0 0.0
        %4561 = vmatpush1.msra.mxu0 0.0
        %4562 = vmatprep.subr.mxu0 0.0
        %4563 = vmatpush1.msra.mxu0 0.0
        %4564 = vmatprep.subr.mxu0 0.0
        %4565 = vmatpush1.msra.mxu0 0.0
        %4566 = vmatprep.subr.mxu0 0.0
        %4567 = vmatpush1.msra.mxu0 0.0
        %4568 = vmatprep.subr.mxu0 0.0
        %4569 = vmatpush1.msra.mxu0 0.0
        %4570 = vmatprep.subr.mxu0 0.0
        %4571 = vmatpush1.msra.mxu0 0.0
        %4572 = vmatprep.subr.mxu0 0.0
        %4573 = vmatpush1.msra.mxu0 0.0
        %4574 = vmatprep.subr.mxu0 0.0
        %4575 = vmatpush1.msra.mxu0 0.0
        %4576 = vmatprep.subr.mxu0 0.0
        %4577 = vmatpush1.msra.mxu0 0.0
        %4578 = vmatprep.subr.mxu0 0.0
        %4579 = vmatpush1.msra.mxu0 0.0
        %4580 = vmatprep.subr.mxu0 0.0
        %4581 = vmatpush1.msra.mxu0 0.0
        %4582 = vmatprep.subr.mxu0 0.0
        %4583 = vmatpush1.msra.mxu0 0.0
        %4584 = vmatprep.subr.mxu0 0.0
        %4585 = vmatpush1.msra.mxu0 0.0
        %4586 = vmatprep.subr.mxu0 0.0
        %4587 = vmatpush1.msra.mxu0 0.0
        %4588 = vmatprep.subr.mxu0 0.0
        %4589 = vmatpush1.msra.mxu0 %v4548
        %4590 = vmatprep.subr.mxu0 0.0
        %4591 = vmatpush1.msra.mxu0 %v4547
        %4592 = vmatprep.subr.mxu0 0.0
        %4593 = vmatpush2.msra.mxu0 0.0
        %4594 = vmatprep.subr.mxu0 0.0
        %4595 = vmatpush2.msra.mxu0 0.0
        %4596 = vmatprep.subr.mxu0 0.0
        %4597 = vmatpush2.msra.mxu0 0.0
        %4598 = vmatprep.subr.mxu0 0.0
        %4599 = vmatpush2.msra.mxu0 0.0
        %4600 = vmatprep.subr.mxu0 0.0
        %4601 = vmatpush2.msra.mxu0 0.0
        %4602 = vmatprep.subr.mxu0 0.0
        %4603 = vmatpush2.msra.mxu0 0.0
        %4604 = vmatprep.subr.mxu0 0.0
        %4605 = vmatpush2.msra.mxu0 0.0
        %4606 = vmatprep.subr.mxu0 0.0
        %4607 = vmatpush2.msra.mxu0 0.0
        %4608 = vmatprep.subr.mxu0 0.0
        %4609 = vmatpush2.msra.mxu0 0.0
        %4610 = vmatprep.subr.mxu0 0.0
        %4611 = vmatpush2.msra.mxu0 0.0
        %4612 = vmatprep.subr.mxu0 0.0
        %4613 = vmatpush2.msra.mxu0 0.0
        %4614 = vmatprep.subr.mxu0 0.0
        %4615 = vmatpush2.msra.mxu0 0.0
        %4616 = vmatprep.subr.mxu0 0.0
        %4617 = vmatpush2.msra.mxu0 0.0
        %4618 = vmatprep.subr.mxu0 0.0
        %4619 = vmatpush2.msra.mxu0 0.0
        %4620 = vmatprep.subr.mxu0 0.0
        %4621 = vmatpush2.msra.mxu0 0.0
        %4622 = vmatprep.subr.mxu0 0.0
        %4623 = vmatpush2.msra.mxu0 0.0
        %4624 = vmatprep.mubr.f32.mxu0 0.0
        %4625 = vmatmul.mubr.f32.gmra.mxu0 %v4555
        %v4626 = vpop.f32.mrf.mxu0
        %v4627 = vadd.f32 %v4553, %v4626
        %v4628 = vpop.f32.mrf.mxu0
        %4629 = vmatprep.mubr.f32.mxu0 0.0
        %4630 = vmatmul.mubr.f32.gmra.mxu0 %v4558
        %v4631 = vpop.f32.mrf.mxu0
        %v4632 = vadd.f32 %v4553, %v4631
        %v4633 = vpop.f32.mrf.mxu0
        %4634 = vdwg.mxu0
        %v4635 = vxor.u32 %v2899, 2147483648
        %v4636 = vxor.u32 %v2904, 2147483648
        %v4637 = vmul.f32 %v4635, 1.442695
        %v4638 = vpow.pop %v4637
        %v4639 = vmul.f32 %v4636, 1.442695
        %v4640 = vpow.pop %v4639
        %v4641 = vadd.f32 %v4638, 1.0
        %v4642 = vadd.f32 %v4640, 1.0
        %v4643 = vrcp.pop %v4641
        %v4644 = vmul.f32 1.0, %v4643
        %v4645 = vrcp.pop %v4642
        %v4646 = vmul.f32 1.0, %v4645
        %v4647 = vld [vmem:[#allocation2 + $0x5e8] sm:$0x1]
        %4649 = vset.pattern.permute.xlu0 5
        %4650 = vperm.xlu0 %4649, %v4644
        %v4651 = vpop.permute.xlu0 %4650
        %4654 = vset.pattern.permute.xlu0 5
        %4655 = vperm.xlu0 %4654, %v4646
        %v4656 = vpop.permute.xlu0 %4655
        %v4658 = vlaneseq
        %v4659 = vshrl.u32 %v4658, 7
        %v4660 = vsub.s32 0, %v4659
        %v4661 = vrot.slane %v4647, %v4660
        %v4662 = vmul.f32 %v4651, %v4661
        %v4663 = vmul.f32 %v4656, %v4661
        %v4664 = vld [vmem:[#allocation2 + $0x5f0] sm:$0x1]
        %v4665 = vlaneseq
        %v4666 = vshrl.u32 %v4665, 7
        %v4667 = vsub.s32 0, %v4666
        %v4668 = vrot.slane %v4664, %v4667
        %v4669 = vadd.f32 %v4662, %v4668
        %v4670 = vadd.f32 %v4663, %v4668
        %v4673 = vrot.slane %v4669, 7
        %v4674 = vrot.slane %v4670, 7
        %v4675 = vsel %vm1356, %v4673, %v4674
        %v4678 = vsel %vm1356, 0.0, %v4673
        %v4679 = vrot.slane %v4669, 1
        %v4680 = vrot.slane %v4670, 1
        %v4681 = vsel %vm1363, %v4679, %v4680
        %v4683 = vsel %vm1363, %v4680, 0.0
        %4684 = vrot.lane.b32.xlu0 %v4669, 16
        %v4685 = vpop.permute.xlu0 %4684
        %4686 = vrot.lane.b32.xlu0 %v4670, 16
        %v4687 = vpop.permute.xlu0 %4686
        %4691 = vrot.lane.b32.xlu0 %v4681, 32
        %v4692 = vpop.permute.xlu0 %4691
        %4693 = vrot.lane.b32.xlu0 %v4683, 32
        %v4694 = vpop.permute.xlu0 %4693
        %v4697 = vsel %vm534, %v4678, %v4685
        %v4698 = vsel %vm534, %v4675, %v4687
        %v4699 = vsel %vm1384, %v4697, %v4692
        %v4700 = vsel %vm1384, %v4698, %v4694
        %v4701 = vld [vmem:[#allocation2 + $0x5f8] sm:$0xff]
        %v4702 = vld [vmem:[#allocation2 + $0x600] sm:$0xff]
        %v4703 = vld [vmem:[#allocation2 + $0x608] sm:$0xff]
        %v4704 = vld [vmem:[#allocation2 + $0x610] sm:$0xff]
        %v4705 = vld [vmem:[#allocation2 + $0x618] sm:$0xff]
        %v4706 = vld [vmem:[#allocation2 + $0x620] sm:$0xff]
        %v4707 = vld [vmem:[#allocation2 + $0x628] sm:$0x1]
        %v4708 = vlaneseq
        %v4709 = vshrl.u32 %v4708, 7
        %v4710 = vsub.s32 0, %v4709
        %v4711 = vrot.slane %v4707, %v4710
        %v4713 = vsel %vm1398, %v4699, 0
        %v4716 = vsel %vm1398, %v4700, 0
        %4718 = vmatprep.subr.mxu0 0.0
        %4719 = vmatpush1.msra.mxu0 0.0
        %4720 = vmatprep.subr.mxu0 0.0
        %4721 = vmatpush1.msra.mxu0 0.0
        %4722 = vmatprep.subr.mxu0 0.0
        %4723 = vmatpush1.msra.mxu0 0.0
        %4724 = vmatprep.subr.mxu0 0.0
        %4725 = vmatpush1.msra.mxu0 0.0
        %4726 = vmatprep.subr.mxu0 0.0
        %4727 = vmatpush1.msra.mxu0 0.0
        %4728 = vmatprep.subr.mxu0 0.0
        %4729 = vmatpush1.msra.mxu0 0.0
        %4730 = vmatprep.subr.mxu0 0.0
        %4731 = vmatpush1.msra.mxu0 0.0
        %4732 = vmatprep.subr.mxu0 0.0
        %4733 = vmatpush1.msra.mxu0 0.0
        %4734 = vmatprep.subr.mxu0 0.0
        %4735 = vmatpush1.msra.mxu0 0.0
        %4736 = vmatprep.subr.mxu0 0.0
        %4737 = vmatpush1.msra.mxu0 0.0
        %4738 = vmatprep.subr.mxu0 0.0
        %4739 = vmatpush1.msra.mxu0 %v4706
        %4740 = vmatprep.subr.mxu0 0.0
        %4741 = vmatpush1.msra.mxu0 %v4705
        %4742 = vmatprep.subr.mxu0 0.0
        %4743 = vmatpush1.msra.mxu0 %v4704
        %4744 = vmatprep.subr.mxu0 0.0
        %4745 = vmatpush1.msra.mxu0 %v4703
        %4746 = vmatprep.subr.mxu0 0.0
        %4747 = vmatpush1.msra.mxu0 %v4702
        %4748 = vmatprep.subr.mxu0 0.0
        %4749 = vmatpush1.msra.mxu0 %v4701
        %4750 = vmatprep.subr.mxu0 0.0
        %4751 = vmatpush2.msra.mxu0 0.0
        %4752 = vmatprep.subr.mxu0 0.0
        %4753 = vmatpush2.msra.mxu0 0.0
        %4754 = vmatprep.subr.mxu0 0.0
        %4755 = vmatpush2.msra.mxu0 0.0
        %4756 = vmatprep.subr.mxu0 0.0
        %4757 = vmatpush2.msra.mxu0 0.0
        %4758 = vmatprep.subr.mxu0 0.0
        %4759 = vmatpush2.msra.mxu0 0.0
        %4760 = vmatprep.subr.mxu0 0.0
        %4761 = vmatpush2.msra.mxu0 0.0
        %4762 = vmatprep.subr.mxu0 0.0
        %4763 = vmatpush2.msra.mxu0 0.0
        %4764 = vmatprep.subr.mxu0 0.0
        %4765 = vmatpush2.msra.mxu0 0.0
        %4766 = vmatprep.subr.mxu0 0.0
        %4767 = vmatpush2.msra.mxu0 0.0
        %4768 = vmatprep.subr.mxu0 0.0
        %4769 = vmatpush2.msra.mxu0 0.0
        %4770 = vmatprep.subr.mxu0 0.0
        %4771 = vmatpush2.msra.mxu0 0.0
        %4772 = vmatprep.subr.mxu0 0.0
        %4773 = vmatpush2.msra.mxu0 0.0
        %4774 = vmatprep.subr.mxu0 0.0
        %4775 = vmatpush2.msra.mxu0 0.0
        %4776 = vmatprep.subr.mxu0 0.0
        %4777 = vmatpush2.msra.mxu0 0.0
        %4778 = vmatprep.subr.mxu0 0.0
        %4779 = vmatpush2.msra.mxu0 0.0
        %4780 = vmatprep.subr.mxu0 0.0
        %4781 = vmatpush2.msra.mxu0 0.0
        %4782 = vmatprep.mubr.f32.mxu0 0.0
        %4783 = vmatmul.mubr.f32.gmra.mxu0 %v4713
        %v4784 = vpop.f32.mrf.mxu0
        %v4785 = vadd.f32 %v4711, %v4784
        %v4786 = vpop.f32.mrf.mxu0
        %4787 = vmatprep.mubr.f32.mxu0 0.0
        %4788 = vmatmul.mubr.f32.gmra.mxu0 %v4716
        %v4789 = vpop.f32.mrf.mxu0
        %v4790 = vadd.f32 %v4711, %v4789
        %v4791 = vpop.f32.mrf.mxu0
        %4792 = vdwg.mxu0
        %v4793 = vmax.f32 %v4785, 0.0
        %v4794 = vmax.f32 %v4790, 0.0
        %v4795 = vld [vmem:[#allocation2 + $0x630] sm:$0xff]
        %v4796 = vld [vmem:[#allocation2 + $0x638] sm:$0xff]
        %v4797 = vld [vmem:[#allocation2 + $0x640] sm:$0x1]
        %v4798 = vlaneseq
        %v4799 = vshrl.u32 %v4798, 7
        %v4800 = vsub.s32 0, %v4799
        %v4801 = vrot.slane %v4797, %v4800
        %v4803 = vsel %vm534, %v4793, 0
        %v4806 = vsel %vm534, %v4794, 0
        %4808 = vmatprep.subr.mxu0 0.0
        %4809 = vmatpush1.msra.mxu0 0.0
        %4810 = vmatprep.subr.mxu0 0.0
        %4811 = vmatpush1.msra.mxu0 0.0
        %4812 = vmatprep.subr.mxu0 0.0
        %4813 = vmatpush1.msra.mxu0 0.0
        %4814 = vmatprep.subr.mxu0 0.0
        %4815 = vmatpush1.msra.mxu0 0.0
        %4816 = vmatprep.subr.mxu0 0.0
        %4817 = vmatpush1.msra.mxu0 0.0
        %4818 = vmatprep.subr.mxu0 0.0
        %4819 = vmatpush1.msra.mxu0 0.0
        %4820 = vmatprep.subr.mxu0 0.0
        %4821 = vmatpush1.msra.mxu0 0.0
        %4822 = vmatprep.subr.mxu0 0.0
        %4823 = vmatpush1.msra.mxu0 0.0
        %4824 = vmatprep.subr.mxu0 0.0
        %4825 = vmatpush1.msra.mxu0 0.0
        %4826 = vmatprep.subr.mxu0 0.0
        %4827 = vmatpush1.msra.mxu0 0.0
        %4828 = vmatprep.subr.mxu0 0.0
        %4829 = vmatpush1.msra.mxu0 0.0
        %4830 = vmatprep.subr.mxu0 0.0
        %4831 = vmatpush1.msra.mxu0 0.0
        %4832 = vmatprep.subr.mxu0 0.0
        %4833 = vmatpush1.msra.mxu0 0.0
        %4834 = vmatprep.subr.mxu0 0.0
        %4835 = vmatpush1.msra.mxu0 0.0
        %4836 = vmatprep.subr.mxu0 0.0
        %4837 = vmatpush1.msra.mxu0 %v4796
        %4838 = vmatprep.subr.mxu0 0.0
        %4839 = vmatpush1.msra.mxu0 %v4795
        %4840 = vmatprep.subr.mxu0 0.0
        %4841 = vmatpush2.msra.mxu0 0.0
        %4842 = vmatprep.subr.mxu0 0.0
        %4843 = vmatpush2.msra.mxu0 0.0
        %4844 = vmatprep.subr.mxu0 0.0
        %4845 = vmatpush2.msra.mxu0 0.0
        %4846 = vmatprep.subr.mxu0 0.0
        %4847 = vmatpush2.msra.mxu0 0.0
        %4848 = vmatprep.subr.mxu0 0.0
        %4849 = vmatpush2.msra.mxu0 0.0
        %4850 = vmatprep.subr.mxu0 0.0
        %4851 = vmatpush2.msra.mxu0 0.0
        %4852 = vmatprep.subr.mxu0 0.0
        %4853 = vmatpush2.msra.mxu0 0.0
        %4854 = vmatprep.subr.mxu0 0.0
        %4855 = vmatpush2.msra.mxu0 0.0
        %4856 = vmatprep.subr.mxu0 0.0
        %4857 = vmatpush2.msra.mxu0 0.0
        %4858 = vmatprep.subr.mxu0 0.0
        %4859 = vmatpush2.msra.mxu0 0.0
        %4860 = vmatprep.subr.mxu0 0.0
        %4861 = vmatpush2.msra.mxu0 0.0
        %4862 = vmatprep.subr.mxu0 0.0
        %4863 = vmatpush2.msra.mxu0 0.0
        %4864 = vmatprep.subr.mxu0 0.0
        %4865 = vmatpush2.msra.mxu0 0.0
        %4866 = vmatprep.subr.mxu0 0.0
        %4867 = vmatpush2.msra.mxu0 0.0
        %4868 = vmatprep.subr.mxu0 0.0
        %4869 = vmatpush2.msra.mxu0 0.0
        %4870 = vmatprep.subr.mxu0 0.0
        %4871 = vmatpush2.msra.mxu0 0.0
        %4872 = vmatprep.mubr.f32.mxu0 0.0
        %4873 = vmatmul.mubr.f32.gmra.mxu0 %v4803
        %v4874 = vpop.f32.mrf.mxu0
        %v4875 = vadd.f32 %v4801, %v4874
        %v4876 = vpop.f32.mrf.mxu0
        %4877 = vmatprep.mubr.f32.mxu0 0.0
        %4878 = vmatmul.mubr.f32.gmra.mxu0 %v4806
        %v4879 = vpop.f32.mrf.mxu0
        %v4880 = vadd.f32 %v4801, %v4879
        %v4881 = vpop.f32.mrf.mxu0
        %4882 = vdwg.mxu0
        %v4883 = vadd.f32 %v4669, %v4875
        %v4884 = vadd.f32 %v4670, %v4880
        %v4885 = vmul.f32 %v4883, %v464
        %v4886 = vmul.f32 %v4884, %v469
        %v4889 = vrot.slane %v4885, 6
        %v4890 = vrot.slane %v4886, 6
        %v4891 = vsel %vm2045, %v4889, %v4890
        %v4894 = vsel %vm2045, 0.0, %v4889
        %v4895 = vrot.slane %v4885, 2
        %v4896 = vrot.slane %v4886, 2
        %v4897 = vsel %vm2052, %v4895, %v4896
        %v4899 = vsel %vm2052, %v4896, 0.0
        %4900 = vrot.lane.b32.xlu0 %v4885, 16
        %v4901 = vpop.permute.xlu0 %4900
        %4902 = vrot.lane.b32.xlu0 %v4886, 16
        %v4903 = vpop.permute.xlu0 %4902
        %4907 = vrot.lane.b32.xlu0 %v4897, 32
        %v4908 = vpop.permute.xlu0 %4907
        %4909 = vrot.lane.b32.xlu0 %v4899, 32
        %v4910 = vpop.permute.xlu0 %4909
        %v4913 = vsel %vm534, %v4894, %v4901
        %v4914 = vsel %vm534, %v4891, %v4903
        %v4915 = vsel %vm1384, %v4913, %v4908
        %v4916 = vsel %vm1384, %v4914, %v4910
        %v4917 = vld [vmem:[#allocation2 + $0x648] sm:$0xff]
        %v4918 = vld [vmem:[#allocation2 + $0x650] sm:$0xff]
        %v4919 = vld [vmem:[#allocation2 + $0x658] sm:$0xff]
        %v4920 = vld [vmem:[#allocation2 + $0x660] sm:$0xff]
        %v4921 = vld [vmem:[#allocation2 + $0x668] sm:$0xff]
        %v4922 = vld [vmem:[#allocation2 + $0x670] sm:$0xff]
        %v4923 = vld [vmem:[#allocation2 + $0x678] sm:$0x1]
        %v4924 = vlaneseq
        %v4925 = vshrl.u32 %v4924, 7
        %v4926 = vsub.s32 0, %v4925
        %v4927 = vrot.slane %v4923, %v4926
        %v4929 = vsel %vm1398, %v4915, 0
        %v4932 = vsel %vm1398, %v4916, 0
        %4934 = vmatprep.subr.mxu0 0.0
        %4935 = vmatpush1.msra.mxu0 0.0
        %4936 = vmatprep.subr.mxu0 0.0
        %4937 = vmatpush1.msra.mxu0 0.0
        %4938 = vmatprep.subr.mxu0 0.0
        %4939 = vmatpush1.msra.mxu0 0.0
        %4940 = vmatprep.subr.mxu0 0.0
        %4941 = vmatpush1.msra.mxu0 0.0
        %4942 = vmatprep.subr.mxu0 0.0
        %4943 = vmatpush1.msra.mxu0 0.0
        %4944 = vmatprep.subr.mxu0 0.0
        %4945 = vmatpush1.msra.mxu0 0.0
        %4946 = vmatprep.subr.mxu0 0.0
        %4947 = vmatpush1.msra.mxu0 0.0
        %4948 = vmatprep.subr.mxu0 0.0
        %4949 = vmatpush1.msra.mxu0 0.0
        %4950 = vmatprep.subr.mxu0 0.0
        %4951 = vmatpush1.msra.mxu0 0.0
        %4952 = vmatprep.subr.mxu0 0.0
        %4953 = vmatpush1.msra.mxu0 0.0
        %4954 = vmatprep.subr.mxu0 0.0
        %4955 = vmatpush1.msra.mxu0 %v4922
        %4956 = vmatprep.subr.mxu0 0.0
        %4957 = vmatpush1.msra.mxu0 %v4921
        %4958 = vmatprep.subr.mxu0 0.0
        %4959 = vmatpush1.msra.mxu0 %v4920
        %4960 = vmatprep.subr.mxu0 0.0
        %4961 = vmatpush1.msra.mxu0 %v4919
        %4962 = vmatprep.subr.mxu0 0.0
        %4963 = vmatpush1.msra.mxu0 %v4918
        %4964 = vmatprep.subr.mxu0 0.0
        %4965 = vmatpush1.msra.mxu0 %v4917
        %4966 = vmatprep.subr.mxu0 0.0
        %4967 = vmatpush2.msra.mxu0 0.0
        %4968 = vmatprep.subr.mxu0 0.0
        %4969 = vmatpush2.msra.mxu0 0.0
        %4970 = vmatprep.subr.mxu0 0.0
        %4971 = vmatpush2.msra.mxu0 0.0
        %4972 = vmatprep.subr.mxu0 0.0
        %4973 = vmatpush2.msra.mxu0 0.0
        %4974 = vmatprep.subr.mxu0 0.0
        %4975 = vmatpush2.msra.mxu0 0.0
        %4976 = vmatprep.subr.mxu0 0.0
        %4977 = vmatpush2.msra.mxu0 0.0
        %4978 = vmatprep.subr.mxu0 0.0
        %4979 = vmatpush2.msra.mxu0 0.0
        %4980 = vmatprep.subr.mxu0 0.0
        %4981 = vmatpush2.msra.mxu0 0.0
        %4982 = vmatprep.subr.mxu0 0.0
        %4983 = vmatpush2.msra.mxu0 0.0
        %4984 = vmatprep.subr.mxu0 0.0
        %4985 = vmatpush2.msra.mxu0 0.0
        %4986 = vmatprep.subr.mxu0 0.0
        %4987 = vmatpush2.msra.mxu0 0.0
        %4988 = vmatprep.subr.mxu0 0.0
        %4989 = vmatpush2.msra.mxu0 0.0
        %4990 = vmatprep.subr.mxu0 0.0
        %4991 = vmatpush2.msra.mxu0 0.0
        %4992 = vmatprep.subr.mxu0 0.0
        %4993 = vmatpush2.msra.mxu0 0.0
        %4994 = vmatprep.subr.mxu0 0.0
        %4995 = vmatpush2.msra.mxu0 0.0
        %4996 = vmatprep.subr.mxu0 0.0
        %4997 = vmatpush2.msra.mxu0 0.0
        %4998 = vmatprep.mubr.f32.mxu0 0.0
        %4999 = vmatmul.mubr.f32.gmra.mxu0 %v4929
        %v5000 = vpop.f32.mrf.mxu0
        %v5001 = vadd.f32 %v4927, %v5000
        %v5002 = vpop.f32.mrf.mxu0
        %5003 = vmatprep.mubr.f32.mxu0 0.0
        %5004 = vmatmul.mubr.f32.gmra.mxu0 %v4932
        %v5005 = vpop.f32.mrf.mxu0
        %v5006 = vadd.f32 %v4927, %v5005
        %v5007 = vpop.f32.mrf.mxu0
        %5008 = vdwg.mxu0
        %v5009 = vmax.f32 %v5001, 0.0
        %v5010 = vmax.f32 %v5006, 0.0
        %v5011 = vld [vmem:[#allocation2 + $0x680] sm:$0xff]
        %v5012 = vld [vmem:[#allocation2 + $0x688] sm:$0xff]
        %v5013 = vld [vmem:[#allocation2 + $0x690] sm:$0x1]
        %v5014 = vlaneseq
        %v5015 = vshrl.u32 %v5014, 7
        %v5016 = vsub.s32 0, %v5015
        %v5017 = vrot.slane %v5013, %v5016
        %v5019 = vsel %vm534, %v5009, 0
        %v5022 = vsel %vm534, %v5010, 0
        %5024 = vmatprep.subr.mxu0 0.0
        %5025 = vmatpush1.msra.mxu0 0.0
        %5026 = vmatprep.subr.mxu0 0.0
        %5027 = vmatpush1.msra.mxu0 0.0
        %5028 = vmatprep.subr.mxu0 0.0
        %5029 = vmatpush1.msra.mxu0 0.0
        %5030 = vmatprep.subr.mxu0 0.0
        %5031 = vmatpush1.msra.mxu0 0.0
        %5032 = vmatprep.subr.mxu0 0.0
        %5033 = vmatpush1.msra.mxu0 0.0
        %5034 = vmatprep.subr.mxu0 0.0
        %5035 = vmatpush1.msra.mxu0 0.0
        %5036 = vmatprep.subr.mxu0 0.0
        %5037 = vmatpush1.msra.mxu0 0.0
        %5038 = vmatprep.subr.mxu0 0.0
        %5039 = vmatpush1.msra.mxu0 0.0
        %5040 = vmatprep.subr.mxu0 0.0
        %5041 = vmatpush1.msra.mxu0 0.0
        %5042 = vmatprep.subr.mxu0 0.0
        %5043 = vmatpush1.msra.mxu0 0.0
        %5044 = vmatprep.subr.mxu0 0.0
        %5045 = vmatpush1.msra.mxu0 0.0
        %5046 = vmatprep.subr.mxu0 0.0
        %5047 = vmatpush1.msra.mxu0 0.0
        %5048 = vmatprep.subr.mxu0 0.0
        %5049 = vmatpush1.msra.mxu0 0.0
        %5050 = vmatprep.subr.mxu0 0.0
        %5051 = vmatpush1.msra.mxu0 0.0
        %5052 = vmatprep.subr.mxu0 0.0
        %5053 = vmatpush1.msra.mxu0 %v5012
        %5054 = vmatprep.subr.mxu0 0.0
        %5055 = vmatpush1.msra.mxu0 %v5011
        %5056 = vmatprep.subr.mxu0 0.0
        %5057 = vmatpush2.msra.mxu0 0.0
        %5058 = vmatprep.subr.mxu0 0.0
        %5059 = vmatpush2.msra.mxu0 0.0
        %5060 = vmatprep.subr.mxu0 0.0
        %5061 = vmatpush2.msra.mxu0 0.0
        %5062 = vmatprep.subr.mxu0 0.0
        %5063 = vmatpush2.msra.mxu0 0.0
        %5064 = vmatprep.subr.mxu0 0.0
        %5065 = vmatpush2.msra.mxu0 0.0
        %5066 = vmatprep.subr.mxu0 0.0
        %5067 = vmatpush2.msra.mxu0 0.0
        %5068 = vmatprep.subr.mxu0 0.0
        %5069 = vmatpush2.msra.mxu0 0.0
        %5070 = vmatprep.subr.mxu0 0.0
        %5071 = vmatpush2.msra.mxu0 0.0
        %5072 = vmatprep.subr.mxu0 0.0
        %5073 = vmatpush2.msra.mxu0 0.0
        %5074 = vmatprep.subr.mxu0 0.0
        %5075 = vmatpush2.msra.mxu0 0.0
        %5076 = vmatprep.subr.mxu0 0.0
        %5077 = vmatpush2.msra.mxu0 0.0
        %5078 = vmatprep.subr.mxu0 0.0
        %5079 = vmatpush2.msra.mxu0 0.0
        %5080 = vmatprep.subr.mxu0 0.0
        %5081 = vmatpush2.msra.mxu0 0.0
        %5082 = vmatprep.subr.mxu0 0.0
        %5083 = vmatpush2.msra.mxu0 0.0
        %5084 = vmatprep.subr.mxu0 0.0
        %5085 = vmatpush2.msra.mxu0 0.0
        %5086 = vmatprep.subr.mxu0 0.0
        %5087 = vmatpush2.msra.mxu0 0.0
        %5088 = vmatprep.mubr.f32.mxu0 0.0
        %5089 = vmatmul.mubr.f32.gmra.mxu0 %v5019
        %v5090 = vpop.f32.mrf.mxu0
        %v5091 = vadd.f32 %v5017, %v5090
        %v5092 = vpop.f32.mrf.mxu0
        %5093 = vmatprep.mubr.f32.mxu0 0.0
        %5094 = vmatmul.mubr.f32.gmra.mxu0 %v5022
        %v5095 = vpop.f32.mrf.mxu0
        %v5096 = vadd.f32 %v5017, %v5095
        %v5097 = vpop.f32.mrf.mxu0
        %5098 = vdwg.mxu0
        %v5099 = vadd.f32 %v4885, %v5091
        %v5100 = vadd.f32 %v4886, %v5096
        %v5101 = vmul.f32 %v5099, %v464
        %v5102 = vmul.f32 %v5100, %v469
        %v5103 = vld [vmem:[#allocation2 + $0x698] sm:$0xff]
        %v5104 = vld [vmem:[#allocation2 + $0x6a0] sm:$0xff]
        %v5105 = vld [vmem:[#allocation2 + $0x6a8] sm:$0x1]
        %v5106 = vlaneseq
        %v5107 = vshrl.u32 %v5106, 7
        %v5108 = vsub.s32 0, %v5107
        %v5109 = vrot.slane %v5105, %v5108
        %v5111 = vsel %vm534, %v5101, 0
        %v5114 = vsel %vm534, %v5102, 0
        %5116 = vmatprep.subr.mxu0 0.0
        %5117 = vmatpush1.msra.mxu0 0.0
        %5118 = vmatprep.subr.mxu0 0.0
        %5119 = vmatpush1.msra.mxu0 0.0
        %5120 = vmatprep.subr.mxu0 0.0
        %5121 = vmatpush1.msra.mxu0 0.0
        %5122 = vmatprep.subr.mxu0 0.0
        %5123 = vmatpush1.msra.mxu0 0.0
        %5124 = vmatprep.subr.mxu0 0.0
        %5125 = vmatpush1.msra.mxu0 0.0
        %5126 = vmatprep.subr.mxu0 0.0
        %5127 = vmatpush1.msra.mxu0 0.0
        %5128 = vmatprep.subr.mxu0 0.0
        %5129 = vmatpush1.msra.mxu0 0.0
        %5130 = vmatprep.subr.mxu0 0.0
        %5131 = vmatpush1.msra.mxu0 0.0
        %5132 = vmatprep.subr.mxu0 0.0
        %5133 = vmatpush1.msra.mxu0 0.0
        %5134 = vmatprep.subr.mxu0 0.0
        %5135 = vmatpush1.msra.mxu0 0.0
        %5136 = vmatprep.subr.mxu0 0.0
        %5137 = vmatpush1.msra.mxu0 0.0
        %5138 = vmatprep.subr.mxu0 0.0
        %5139 = vmatpush1.msra.mxu0 0.0
        %5140 = vmatprep.subr.mxu0 0.0
        %5141 = vmatpush1.msra.mxu0 0.0
        %5142 = vmatprep.subr.mxu0 0.0
        %5143 = vmatpush1.msra.mxu0 0.0
        %5144 = vmatprep.subr.mxu0 0.0
        %5145 = vmatpush1.msra.mxu0 %v5104
        %5146 = vmatprep.subr.mxu0 0.0
        %5147 = vmatpush1.msra.mxu0 %v5103
        %5148 = vmatprep.subr.mxu0 0.0
        %5149 = vmatpush2.msra.mxu0 0.0
        %5150 = vmatprep.subr.mxu0 0.0
        %5151 = vmatpush2.msra.mxu0 0.0
        %5152 = vmatprep.subr.mxu0 0.0
        %5153 = vmatpush2.msra.mxu0 0.0
        %5154 = vmatprep.subr.mxu0 0.0
        %5155 = vmatpush2.msra.mxu0 0.0
        %5156 = vmatprep.subr.mxu0 0.0
        %5157 = vmatpush2.msra.mxu0 0.0
        %5158 = vmatprep.subr.mxu0 0.0
        %5159 = vmatpush2.msra.mxu0 0.0
        %5160 = vmatprep.subr.mxu0 0.0
        %5161 = vmatpush2.msra.mxu0 0.0
        %5162 = vmatprep.subr.mxu0 0.0
        %5163 = vmatpush2.msra.mxu0 0.0
        %5164 = vmatprep.subr.mxu0 0.0
        %5165 = vmatpush2.msra.mxu0 0.0
        %5166 = vmatprep.subr.mxu0 0.0
        %5167 = vmatpush2.msra.mxu0 0.0
        %5168 = vmatprep.subr.mxu0 0.0
        %5169 = vmatpush2.msra.mxu0 0.0
        %5170 = vmatprep.subr.mxu0 0.0
        %5171 = vmatpush2.msra.mxu0 0.0
        %5172 = vmatprep.subr.mxu0 0.0
        %5173 = vmatpush2.msra.mxu0 0.0
        %5174 = vmatprep.subr.mxu0 0.0
        %5175 = vmatpush2.msra.mxu0 0.0
        %5176 = vmatprep.subr.mxu0 0.0
        %5177 = vmatpush2.msra.mxu0 0.0
        %5178 = vmatprep.subr.mxu0 0.0
        %5179 = vmatpush2.msra.mxu0 0.0
        %5180 = vmatprep.mubr.f32.mxu0 0.0
        %5181 = vmatmul.mubr.f32.gmra.mxu0 %v5111
        %v5182 = vpop.f32.mrf.mxu0
        %v5183 = vadd.f32 %v5109, %v5182
        %v5184 = vpop.f32.mrf.mxu0
        %5185 = vmatprep.mubr.f32.mxu0 0.0
        %5186 = vmatmul.mubr.f32.gmra.mxu0 %v5114
        %v5187 = vpop.f32.mrf.mxu0
        %v5188 = vadd.f32 %v5109, %v5187
        %v5189 = vpop.f32.mrf.mxu0
        %5190 = vdwg.mxu0
        %v5191 = vmul.f32 %v5183, %v233
        %v5192 = vmul.f32 %v5188, %v234
        %5195 = vrot.lane.b32.xlu0 %v5191, 5
        %v5196 = vpop.permute.xlu0 %5195
        %5197 = vrot.lane.b32.xlu0 %v5192, 5
        %v5198 = vpop.permute.xlu0 %5197
        %v5201 = vsel %vm2909, %v4627, %v5196
        %v5202 = vsel %vm2909, %v4632, %v5198
        %vm5203 = vcmask 48128
        %5204 = vst.msk [vmem:[%s232] sm:$0xff] %vm5203, %v5201
        %5205 = vst.msk [vmem:[%s232 + $0x8] sm:$0xff] %vm5203, %v5202
        %p5206 = scmp.lt.s32.totalorder %s16, 1
        %s5207 = scalar_select %p5206, %s16, 1
        %s5208 = smul.addr %s5207, 2
        %s5209 = smul.addr %s5208, 8
        %s5210 = scalar_lea.vmem %s4, %s5209
        // Predicated region
        $region41: #{forward.1} parent=35 // pred_check
          %p5211 = pneg %p128
        $region42: #{forward.1} parent=35 // pred_check_branch
          %5213 = sbr.rel (%p5211) target = $region44
        $region43: #{forward.1} parent=35 // pred_region
          _
        $region44: #{forward.1} parent=35 // pred_fallthru
          _
      $region36: #{forward.1} parent=5 // pred_fallthru
        _
      %p5214 = scmp.le.s32.totalorder 2, %s11
      // Predicated region
      $region45: #{forward.1} parent=5 // pred_check
        %p5215 = pneg %p5214
      $region46: #{forward.1} parent=5 // pred_check_branch
        %5217 = sbr.rel (%p5215) target = $region48
      $region47: #{forward.1} parent=5 // pred_region
        %s5218 = ssub.s32 %s11, 2
        // Predicated region
        $region49: #{forward.1} parent=47 // pred_check
          %p5219 = pneg %p134
        $region50: #{forward.1} parent=47 // pred_check_branch
          %5221 = sbr.rel (%p5219) target = $region52
        $region51: #{forward.1} parent=47 // pred_region
          %p5222 = scmp.lt.s32.totalorder %s17, 1
          %s5223 = scalar_select %p5222, %s17, 1
          %s5224 = smul.addr %s5223, 2
          %s5225 = smul.addr %s5224, 8
          %s5226 = scalar_lea.vmem %s4, %s5225
        $region52: #{forward.1} parent=47 // pred_fallthru
          _
      $region48: #{forward.1} parent=5 // pred_fallthru
        _
    $region6: #{forward.1} parent=1 // loop_footer
      %s15 = sadd.s32 1, %s11
    $region7: #{forward.1} parent=1 // loop_footer_branch
      %10 = sbr.rel target = $region3
    $region8: #{forward.1} parent=1 // loop_exit
      _
    %5227 = vsyncpa [#allocation3], 1
    %s5228 = scalar_lea.sflag [#allocation3], 1
    %5229 = vsyncpa %s5228, 1

</llo_original>
